<compile_context>
chip_gen: v7x
topology: tpu7x:2x2x1
jax: 0.10.0
libtpu: 0.0.40
codegen_flags: <defaults>
</compile_context>

<pallas_src>
import functools
import math

import jax
import jax.numpy as jnp
import numpy as np
from jax.experimental import pallas as pl
from jax.experimental.pallas import tpu as pltpu


def cross_attention_kernel(
    d1_ref,        # [1, D, N]  channels-first (Conv1d layout)
    d2_ref,        # [1, D, M]
    wqv_ref,       # [D, 2D]  bf16  columns = [Wq^T * scale | Wv^T]
    bqv_ref,       # [1, 2D]  f32   [bq * scale | bv]
    wk_ref,        # [D, D]   bf16  torch layout [out, in] -> K computed channels-first
    bk_ref,        # [D, 1]   f32
    wo_ref,        # [D, D]   bf16  Wo^T
    bo_ref,        # [1, D]   f32
    wff1d_ref,     # [D, 2D]  bf16  ff[0] weight rows multiplying the descriptor half
    wff1a_ref,     # [D, 2D]  bf16  ff[0] weight rows multiplying the attention half
    bff1_ref,      # [1, 2D]  f32
    wff2_ref,      # [2D, D]  bf16
    bff2_ref,      # [1, D]   f32
    out1_ref,      # [1, D, N]
    out2_ref,      # [1, D, M]
    *,
    heads,
):
    f32 = jnp.float32
    bf16 = jnp.bfloat16

    d1_cf = d1_ref[0]                                       # [D, N]
    d2_cf = d2_ref[0]                                       # [D, M]
    D, N = d1_cf.shape
    M = d2_cf.shape[1]
    dk = D // heads

    # Channels-first slab (lane axis = points): feeds the K projection and the
    # final channels-first store.  Channels-last slab (lane axis = channels):
    # feeds Q/V, the attention context and the FF matmuls.  Both directions
    # are concatenated so every shared matmul is issued once.
    d_cf = jnp.concatenate([d1_cf, d2_cf], axis=1)          # [D, N+M] f32
    d_cl = jnp.transpose(d_cf)                              # [N+M, D] f32
    d_cf_bf = d_cf.astype(bf16)
    d_cl_bf = d_cl.astype(bf16)

    # ---- projections (bf16 inputs, f32 accumulation) ------------------------
    qv = (jnp.dot(d_cl_bf, wqv_ref[...], preferred_element_type=f32)
          + bqv_ref[...])                                    # [N+M, 2D]
    # K produced directly in transposed (channels-first) layout: no in-kernel
    # K transpose, and per-head K slices are cheap sublane slices.
    kT = (jnp.dot(wk_ref[...], d_cf_bf, preferred_element_type=f32)
          + bk_ref[...]).astype(bf16)                        # [D, N+M]

    q_bf = qv[:, :D].astype(bf16)                            # [N+M, D] (scale folded in)
    v_bf = qv[:, D:].astype(bf16)                            # [N+M, D]

    q1, q2 = q_bf[:N], q_bf[N:]
    v1, v2 = v_bf[:N], v_bf[N:]
    kT1, kT2 = kT[:, :N], kT[:, N:]

    wo = wo_ref[...]

    def softmax_rows(s):                                     # f32 in / f32 out
        m = jnp.max(s, axis=-1, keepdims=True)
        e = jnp.exp(s - m)
        return e * pl.reciprocal(jnp.sum(e, axis=-1, keepdims=True), approx=True)

    # ---- multi-head attention, both directions, Wo folded into the head loop
    attn = jnp.zeros((N + M, D), f32)
    for h in range(heads):
        lo, hi = h * dk, (h + 1) * dk
        # direction 1: desc1 queries attend over desc2 keys/values
        p1 = softmax_rows(jnp.dot(q1[:, lo:hi], kT2[lo:hi, :],
                                  preferred_element_type=f32))              # [N, M]
        c1 = jnp.dot(p1.astype(bf16), v2[:, lo:hi],
                     preferred_element_type=f32)                            # [N, dk]
        # direction 2: desc2 queries attend over desc1 keys/values
        p2 = softmax_rows(jnp.dot(q2[:, lo:hi], kT1[lo:hi, :],
                                  preferred_element_type=f32))              # [M, N]
        c2 = jnp.dot(p2.astype(bf16), v1[:, lo:hi],
                     preferred_element_type=f32)                            # [M, dk]
        # output projection folded per head: ctx_h @ Wo^T[h*dk:(h+1)*dk, :]
        ctx = jnp.concatenate([c1, c2], axis=0).astype(bf16)                # [N+M, dk]
        attn = attn + jnp.dot(ctx, wo[lo:hi, :], preferred_element_type=f32)
    attn = attn + bo_ref[...]                                               # [N+M, D]

    # ---- ff(cat([desc, attn], channel)) with the concat folded into a weight
    # ---- split, both directions in one pass, then residual add --------------
    h1 = (jnp.dot(d_cl_bf, wff1d_ref[...], preferred_element_type=f32)
          + jnp.dot(attn.astype(bf16), wff1a_ref[...], preferred_element_type=f32)
          + bff1_ref[...])                                                  # [N+M, 2D]
    y = (jnp.dot(h1.astype(bf16), wff2_ref[...], preferred_element_type=f32)
         + bff2_ref[...])                                                   # [N+M, D]
    out_cl = d_cl + y                                                       # [N+M, D] f32

    # back to channels-first so the stores are lane-dense (lane axis = points)
    out_cf = jnp.transpose(out_cl)                                          # [D, N+M]
    out1_ref[0] = out_cf[:, :N].astype(out1_ref.dtype)
    out2_ref[0] = out_cf[:, N:].astype(out2_ref.dtype)


def cross_attention(desc1, desc2, params, *, heads=4):
    """Pallas implementation.  desc1: [B, D, N], desc2: [B, D, M] (Conv1d layout).
    Returns (desc1_ca, desc2_ca) in the same layout as the PyTorch module."""
    B, D, N = desc1.shape
    M = desc2.shape[2]
    assert D % heads == 0
    f32 = jnp.float32
    bf16 = jnp.bfloat16
    scale = 1.0 / math.sqrt(D // heads)

    def t(w):  # torch Linear / 1x1-conv weight [out, in] -> matmul weight [in, out]
        return jnp.transpose(w, (1, 0))

    # Q gets the 1/sqrt(dk) score scale folded into its weight & bias.
    wqv = jnp.concatenate([t(params["wq"]) * scale, t(params["wv"])],
                          axis=1).astype(bf16)                   # [D, 2D]
    bqv = jnp.concatenate([params["bq"] * scale,
                           params["bv"]]).reshape(1, 2 * D).astype(f32)
    wk = params["wk"].astype(bf16)                               # [out, in]
    bk = params["bk"].reshape(D, 1).astype(f32)
    wo = t(params["wo"]).astype(bf16)
    bo = params["bo"].reshape(1, D).astype(f32)
    wff1 = t(params["wff1"][:, :, 0])                            # [2D_in, 2D_out]
    wff1_desc = wff1[:D].astype(bf16)
    wff1_attn = wff1[D:].astype(bf16)
    bff1 = params["bff1"].reshape(1, 2 * D).astype(f32)
    wff2 = t(params["wff2"][:, :, 0]).astype(bf16)               # [2D_in, D_out]
    bff2 = params["bff2"].reshape(1, D).astype(f32)

    desc1 = desc1.astype(f32)
    desc2 = desc2.astype(f32)

    def wspec(shape):  # weights: constant index map -> stays VMEM-resident
        return pl.BlockSpec(shape, lambda b, _r=len(shape): (0,) * _r)

    kernel = functools.partial(cross_attention_kernel, heads=heads)

    out1, out2 = pl.pallas_call(
        kernel,
        out_shape=(jax.ShapeDtypeStruct((B, D, N), f32),
                   jax.ShapeDtypeStruct((B, D, M), f32)),
        grid=(B,),
        in_specs=[
            pl.BlockSpec((1, D, N), lambda b: (b, 0, 0)),
            pl.BlockSpec((1, D, M), lambda b: (b, 0, 0)),
            wspec(wqv.shape), wspec(bqv.shape),
            wspec(wk.shape), wspec(bk.shape),
            wspec(wo.shape), wspec(bo.shape),
            wspec(wff1_desc.shape), wspec(wff1_attn.shape), wspec(bff1.shape),
            wspec(wff2.shape), wspec(bff2.shape),
        ],
        out_specs=(pl.BlockSpec((1, D, N), lambda b: (b, 0, 0)),
                   pl.BlockSpec((1, D, M), lambda b: (b, 0, 0))),
        compiler_params=pltpu.CompilerParams(
            dimension_semantics=("parallel",)),
    )(desc1, desc2, wqv, bqv, wk, bk, wo, bo,
      wff1_desc, wff1_attn, bff1, wff2, bff2)

    return out1, out2


def cross_attention_ref(desc1, desc2, params, *, heads=4):
    """Pure-JAX mirror of the PyTorch forward, for correctness checking."""
    def linear(x, w, b):  # x [B, N, D], torch w [out, in]
        return jnp.einsum("bnd,od->bno", x, w) + b

    def mha(q_in, k_in, v_in):
        B, D, _ = q_in.shape
        dk = D // heads
        q = linear(jnp.transpose(q_in, (0, 2, 1)), params["wq"], params["bq"])
        k = linear(jnp.transpose(k_in, (0, 2, 1)), params["wk"], params["bk"])
        v = linear(jnp.transpose(v_in, (0, 2, 1)), params["wv"], params["bv"])

        def split(x):
            return jnp.transpose(x.reshape(B, -1, heads, dk), (0, 2, 1, 3))

        q, k, v = split(q), split(k), split(v)
        scores = jnp.einsum("bhnd,bhmd->bhnm", q, k) / math.sqrt(dk)
        p = jax.nn.softmax(scores, axis=-1)
        x = jnp.einsum("bhnm,bhmd->bhnd", p, v)
        x = jnp.transpose(x, (0, 2, 1, 3)).reshape(B, -1, heads * dk)
        x = linear(x, params["wo"], params["bo"])
        return jnp.transpose(x, (0, 2, 1))   # [B, D, N]

    def ff(x):  # x [B, 2D, N]
        y = (jnp.einsum("oi,bin->bon", params["wff1"][:, :, 0], x)
             + params["bff1"][None, :, None])
        y = (jnp.einsum("oi,bin->bon", params["wff2"][:, :, 0], y)
             + params["bff2"][None, :, None])
        return y

    a1 = mha(desc1, desc2, desc2)
    a2 = mha(desc2, desc1, desc1)
    out1 = desc1 + ff(jnp.concatenate([desc1, a1], axis=1))
    out2 = desc2 + ff(jnp.concatenate([desc2, a2], axis=1))
    return out1, out2


def make_params(key, D):
    ks = jax.random.split(key, 12)
    n = lambda kk, shape, s=0.1: (s * jax.random.normal(kk, shape)).astype(jnp.float32)
    return {
        "wq": n(ks[0], (D, D)), "bq": n(ks[1], (D,)),
        "wk": n(ks[2], (D, D)), "bk": n(ks[3], (D,)),
        "wv": n(ks[4], (D, D)), "bv": n(ks[5], (D,)),
        "wo": n(ks[6], (D, D)), "bo": n(ks[7], (D,)),
        "wff1": n(ks[8], (2 * D, 2 * D, 1)), "bff1": n(ks[9], (2 * D,)),
        "wff2": n(ks[10], (D, 2 * D, 1)),    "bff2": n(ks[11], (D,)),
    }


if __name__ == "__main__":
    descriptor_size, heads = 64, 4
    B, N, M = 2, 128, 96   # two point sets of different sizes

    key = jax.random.PRNGKey(0)
    k1, k2, kp = jax.random.split(key, 3)
    desc1 = jax.random.normal(k1, (B, descriptor_size, N), dtype=jnp.float32)
    desc2 = jax.random.normal(k2, (B, descriptor_size, M), dtype=jnp.float32)
    params = make_params(kp, descriptor_size)

    out1, out2 = cross_attention(desc1, desc2, params, heads=heads)
    out1 = jax.block_until_ready(out1)
    out2 = jax.block_until_ready(out2)

    ref1, ref2 = cross_attention_ref(desc1, desc2, params, heads=heads)
    ref1 = jax.block_until_ready(ref1)
    ref2 = jax.block_until_ready(ref2)

    assert out1.shape == (B, descriptor_size, N), out1.shape
    assert out2.shape == (B, descriptor_size, M), out2.shape
    # bf16 matmul inputs (f32 accumulation) -> slightly looser tolerance than f32.
    np.testing.assert_allclose(np.asarray(out1), np.asarray(ref1),
                               rtol=3e-2, atol=3e-2)
    np.testing.assert_allclose(np.asarray(out2), np.asarray(ref2),
                               rtol=3e-2, atol=3e-2)
    print("KERNEL_OK")
</pallas_src>

<mosaic_0001>
module attributes {stable_mosaic.version = 11 : i64} {
  func.func @cross_attention_kernel(%arg0: i32, %arg1: memref<1x64x128xf32, #tpu.memory_space<vmem>>, %arg2: memref<1x64x96xf32, #tpu.memory_space<vmem>>, %arg3: memref<64x128xbf16, #tpu.memory_space<vmem>>, %arg4: memref<1x128xf32, #tpu.memory_space<vmem>>, %arg5: memref<64x64xbf16, #tpu.memory_space<vmem>>, %arg6: memref<64x1xf32, #tpu.memory_space<vmem>>, %arg7: memref<64x64xbf16, #tpu.memory_space<vmem>>, %arg8: memref<1x64xf32, #tpu.memory_space<vmem>>, %arg9: memref<64x128xbf16, #tpu.memory_space<vmem>>, %arg10: memref<64x128xbf16, #tpu.memory_space<vmem>>, %arg11: memref<1x128xf32, #tpu.memory_space<vmem>>, %arg12: memref<128x64xbf16, #tpu.memory_space<vmem>>, %arg13: memref<1x64xf32, #tpu.memory_space<vmem>>, %arg14: memref<1x64x128xf32, #tpu.memory_space<vmem>>, %arg15: memref<1x64x96xf32, #tpu.memory_space<vmem>>) attributes {dimension_semantics = [#tpu.dimension_semantics<parallel>], iteration_bounds = array<i64: 2>, scalar_prefetch = 0 : i64, scratch_operands = 0 : i64, tpu.core_type = #tpu.core_type<tc>, window_params = [{transform_indices = @transform_0, window_bounds = array<i64: 1, 64, 128>}, {transform_indices = @transform_1, window_bounds = array<i64: 1, 64, 96>}, {pipeline_mode = #tpu.pipeline_mode<synchronous>, transform_indices = @transform_2, window_bounds = array<i64: 64, 128>}, {pipeline_mode = #tpu.pipeline_mode<synchronous>, transform_indices = @transform_3, window_bounds = array<i64: 1, 128>}, {pipeline_mode = #tpu.pipeline_mode<synchronous>, transform_indices = @transform_4, window_bounds = array<i64: 64, 64>}, {pipeline_mode = #tpu.pipeline_mode<synchronous>, transform_indices = @transform_5, window_bounds = array<i64: 64, 1>}, {pipeline_mode = #tpu.pipeline_mode<synchronous>, transform_indices = @transform_6, window_bounds = array<i64: 64, 64>}, {pipeline_mode = #tpu.pipeline_mode<synchronous>, transform_indices = @transform_7, window_bounds = array<i64: 1, 64>}, {pipeline_mode = #tpu.pipeline_mode<synchronous>, transform_indices = @transform_8, window_bounds = array<i64: 64, 128>}, {pipeline_mode = #tpu.pipeline_mode<synchronous>, transform_indices = @transform_9, window_bounds = array<i64: 64, 128>}, {pipeline_mode = #tpu.pipeline_mode<synchronous>, transform_indices = @transform_10, window_bounds = array<i64: 1, 128>}, {pipeline_mode = #tpu.pipeline_mode<synchronous>, transform_indices = @transform_11, window_bounds = array<i64: 128, 64>}, {pipeline_mode = #tpu.pipeline_mode<synchronous>, transform_indices = @transform_12, window_bounds = array<i64: 1, 64>}, {transform_indices = @transform_13, window_bounds = array<i64: 1, 64, 128>}, {transform_indices = @transform_14, window_bounds = array<i64: 1, 64, 96>}]} {
    %c0 = arith.constant 0 : index
    %c0_0 = arith.constant 0 : index
    %c0_1 = arith.constant 0 : index
    %0 = vector.load %arg1[%c0, %c0_0, %c0_1] : memref<1x64x128xf32, #tpu.memory_space<vmem>>, vector<1x64x128xf32>
    %1 = vector.shape_cast %0 : vector<1x64x128xf32> to vector<64x128xf32>
    %c0_2 = arith.constant 0 : index
    %c0_3 = arith.constant 0 : index
    %c0_4 = arith.constant 0 : index
    %2 = vector.load %arg2[%c0_2, %c0_3, %c0_4] : memref<1x64x96xf32, #tpu.memory_space<vmem>>, vector<1x64x96xf32>
    %3 = vector.shape_cast %2 : vector<1x64x96xf32> to vector<64x96xf32>
    %4 = tpu.concatenate %1, %3 in 1 : vector<64x128xf32>, vector<64x96xf32> -> vector<64x224xf32>
    %5 = tpu.transpose %4, [1, 0] : vector<64x224xf32> -> vector<224x64xf32>
    %6 = arith.truncf %4 : vector<64x224xf32> to vector<64x224xbf16>
    %7 = arith.truncf %5 : vector<224x64xf32> to vector<224x64xbf16>
    %c0_5 = arith.constant 0 : index
    %c0_6 = arith.constant 0 : index
    %8 = vector.load %arg3[%c0_5, %c0_6] : memref<64x128xbf16, #tpu.memory_space<vmem>>, vector<64x128xbf16>
    %cst = arith.constant dense<0.000000e+00> : vector<224x128xf32>
    %9 = tpu.matmul %7, %8, %cst {dimension_numbers = #tpu.dot_dimension_numbers<[1], [0], [0], [1], [0, 0, 1, 1], [], []>} : vector<224x64xbf16>, vector<64x128xbf16>, vector<224x128xf32> -> vector<224x128xf32>
    %c0_7 = arith.constant 0 : index
    %c0_8 = arith.constant 0 : index
    %10 = vector.load %arg4[%c0_7, %c0_8] : memref<1x128xf32, #tpu.memory_space<vmem>>, vector<1x128xf32>
    %11 = vector.broadcast %10 : vector<1x128xf32> to vector<224x128xf32>
    %12 = arith.addf %9, %11 : vector<224x128xf32>
    %c0_9 = arith.constant 0 : index
    %c0_10 = arith.constant 0 : index
    %13 = vector.load %arg5[%c0_9, %c0_10] : memref<64x64xbf16, #tpu.memory_space<vmem>>, vector<64x64xbf16>
    %cst_11 = arith.constant dense<0.000000e+00> : vector<64x224xf32>
    %14 = tpu.matmul %13, %6, %cst_11 {dimension_numbers = #tpu.dot_dimension_numbers<[1], [0], [0], [1], [0, 0, 1, 1], [], []>} : vector<64x64xbf16>, vector<64x224xbf16>, vector<64x224xf32> -> vector<64x224xf32>
    %c0_12 = arith.constant 0 : index
    %c0_13 = arith.constant 0 : index
    %15 = vector.load %arg6[%c0_12, %c0_13] : memref<64x1xf32, #tpu.memory_space<vmem>>, vector<64x1xf32>
    %16 = vector.broadcast %15 : vector<64x1xf32> to vector<64x224xf32>
    %17 = arith.addf %14, %16 : vector<64x224xf32>
    %18 = arith.truncf %17 : vector<64x224xf32> to vector<64x224xbf16>
    %19 = vector.extract_strided_slice %12 {offsets = [0, 0], sizes = [224, 64], strides = [1, 1]} : vector<224x128xf32> to vector<224x64xf32>
    %20 = arith.truncf %19 : vector<224x64xf32> to vector<224x64xbf16>
    %21 = vector.extract_strided_slice %12 {offsets = [0, 64], sizes = [224, 64], strides = [1, 1]} : vector<224x128xf32> to vector<224x64xf32>
    %22 = arith.truncf %21 : vector<224x64xf32> to vector<224x64xbf16>
    %23 = vector.extract_strided_slice %20 {offsets = [0, 0], sizes = [128, 64], strides = [1, 1]} : vector<224x64xbf16> to vector<128x64xbf16>
    %24 = vector.extract_strided_slice %20 {offsets = [128, 0], sizes = [96, 64], strides = [1, 1]} : vector<224x64xbf16> to vector<96x64xbf16>
    %25 = vector.extract_strided_slice %22 {offsets = [0, 0], sizes = [128, 64], strides = [1, 1]} : vector<224x64xbf16> to vector<128x64xbf16>
    %26 = vector.extract_strided_slice %22 {offsets = [128, 0], sizes = [96, 64], strides = [1, 1]} : vector<224x64xbf16> to vector<96x64xbf16>
    %27 = vector.extract_strided_slice %18 {offsets = [0, 0], sizes = [64, 128], strides = [1, 1]} : vector<64x224xbf16> to vector<64x128xbf16>
    %28 = vector.extract_strided_slice %18 {offsets = [0, 128], sizes = [64, 96], strides = [1, 1]} : vector<64x224xbf16> to vector<64x96xbf16>
    %c0_14 = arith.constant 0 : index
    %c0_15 = arith.constant 0 : index
    %29 = vector.load %arg7[%c0_14, %c0_15] : memref<64x64xbf16, #tpu.memory_space<vmem>>, vector<64x64xbf16>
    %cst_16 = arith.constant 0.000000e+00 : f32
    %30 = vector.broadcast %cst_16 : f32 to vector<224x64xf32>
    %31 = vector.extract_strided_slice %23 {offsets = [0, 0], sizes = [128, 16], strides = [1, 1]} : vector<128x64xbf16> to vector<128x16xbf16>
    %32 = vector.extract_strided_slice %28 {offsets = [0, 0], sizes = [16, 96], strides = [1, 1]} : vector<64x96xbf16> to vector<16x96xbf16>
    %cst_17 = arith.constant dense<0.000000e+00> : vector<128x96xf32>
    %33 = tpu.matmul %31, %32, %cst_17 {dimension_numbers = #tpu.dot_dimension_numbers<[1], [0], [0], [1], [0, 0, 1, 1], [], []>} : vector<128x16xbf16>, vector<16x96xbf16>, vector<128x96xf32> -> vector<128x96xf32>
    %cst_18 = arith.constant dense<0xFF800000> : vector<128xf32>
    %34 = vector.multi_reduction <maximumf>, %33, %cst_18 [1] : vector<128x96xf32> to vector<128xf32>
    %35 = vector.shape_cast %34 : vector<128xf32> to vector<128x1xf32>
    %36 = vector.broadcast %35 : vector<128x1xf32> to vector<128x96xf32>
    %37 = arith.subf %33, %36 : vector<128x96xf32>
    %38 = math.exp %37 : vector<128x96xf32>
    %cst_19 = arith.constant dense<0.000000e+00> : vector<128xf32>
    %39 = vector.multi_reduction <add>, %38, %cst_19 [1] : vector<128x96xf32> to vector<128xf32>
    %40 = vector.shape_cast %39 : vector<128xf32> to vector<128x1xf32>
    %41 = tpu.reciprocal %40 {approx = true} : vector<128x1xf32> -> vector<128x1xf32>
    %42 = vector.broadcast %41 : vector<128x1xf32> to vector<128x96xf32>
    %43 = arith.mulf %38, %42 : vector<128x96xf32>
    %44 = arith.truncf %43 : vector<128x96xf32> to vector<128x96xbf16>
    %45 = vector.extract_strided_slice %26 {offsets = [0, 0], sizes = [96, 16], strides = [1, 1]} : vector<96x64xbf16> to vector<96x16xbf16>
    %cst_20 = arith.constant dense<0.000000e+00> : vector<128x16xf32>
    %46 = tpu.matmul %44, %45, %cst_20 {dimension_numbers = #tpu.dot_dimension_numbers<[1], [0], [0], [1], [0, 0, 1, 1], [], []>} : vector<128x96xbf16>, vector<96x16xbf16>, vector<128x16xf32> -> vector<128x16xf32>
    %47 = vector.extract_strided_slice %24 {offsets = [0, 0], sizes = [96, 16], strides = [1, 1]} : vector<96x64xbf16> to vector<96x16xbf16>
    %48 = vector.extract_strided_slice %27 {offsets = [0, 0], sizes = [16, 128], strides = [1, 1]} : vector<64x128xbf16> to vector<16x128xbf16>
    %cst_21 = arith.constant dense<0.000000e+00> : vector<96x128xf32>
    %49 = tpu.matmul %47, %48, %cst_21 {dimension_numbers = #tpu.dot_dimension_numbers<[1], [0], [0], [1], [0, 0, 1, 1], [], []>} : vector<96x16xbf16>, vector<16x128xbf16>, vector<96x128xf32> -> vector<96x128xf32>
    %cst_22 = arith.constant dense<0xFF800000> : vector<96xf32>
    %50 = vector.multi_reduction <maximumf>, %49, %cst_22 [1] : vector<96x128xf32> to vector<96xf32>
    %51 = vector.shape_cast %50 : vector<96xf32> to vector<96x1xf32>
    %52 = vector.broadcast %51 : vector<96x1xf32> to vector<96x128xf32>
    %53 = arith.subf %49, %52 : vector<96x128xf32>
    %54 = math.exp %53 : vector<96x128xf32>
    %cst_23 = arith.constant dense<0.000000e+00> : vector<96xf32>
    %55 = vector.multi_reduction <add>, %54, %cst_23 [1] : vector<96x128xf32> to vector<96xf32>
    %56 = vector.shape_cast %55 : vector<96xf32> to vector<96x1xf32>
    %57 = tpu.reciprocal %56 {approx = true} : vector<96x1xf32> -> vector<96x1xf32>
    %58 = vector.broadcast %57 : vector<96x1xf32> to vector<96x128xf32>
    %59 = arith.mulf %54, %58 : vector<96x128xf32>
    %60 = arith.truncf %59 : vector<96x128xf32> to vector<96x128xbf16>
    %61 = vector.extract_strided_slice %25 {offsets = [0, 0], sizes = [128, 16], strides = [1, 1]} : vector<128x64xbf16> to vector<128x16xbf16>
    %cst_24 = arith.constant dense<0.000000e+00> : vector<96x16xf32>
    %62 = tpu.matmul %60, %61, %cst_24 {dimension_numbers = #tpu.dot_dimension_numbers<[1], [0], [0], [1], [0, 0, 1, 1], [], []>} : vector<96x128xbf16>, vector<128x16xbf16>, vector<96x16xf32> -> vector<96x16xf32>
    %63 = tpu.concatenate %46, %62 in 0 : vector<128x16xf32>, vector<96x16xf32> -> vector<224x16xf32>
    %64 = arith.truncf %63 : vector<224x16xf32> to vector<224x16xbf16>
    %65 = vector.extract_strided_slice %29 {offsets = [0, 0], sizes = [16, 64], strides = [1, 1]} : vector<64x64xbf16> to vector<16x64xbf16>
    %cst_25 = arith.constant dense<0.000000e+00> : vector<224x64xf32>
    %66 = tpu.matmul %64, %65, %cst_25 {dimension_numbers = #tpu.dot_dimension_numbers<[1], [0], [0], [1], [0, 0, 1, 1], [], []>} : vector<224x16xbf16>, vector<16x64xbf16>, vector<224x64xf32> -> vector<224x64xf32>
    %67 = arith.addf %30, %66 : vector<224x64xf32>
    %68 = vector.extract_strided_slice %23 {offsets = [0, 16], sizes = [128, 16], strides = [1, 1]} : vector<128x64xbf16> to vector<128x16xbf16>
    %69 = vector.extract_strided_slice %28 {offsets = [16, 0], sizes = [16, 96], strides = [1, 1]} : vector<64x96xbf16> to vector<16x96xbf16>
    %cst_26 = arith.constant dense<0.000000e+00> : vector<128x96xf32>
    %70 = tpu.matmul %68, %69, %cst_26 {dimension_numbers = #tpu.dot_dimension_numbers<[1], [0], [0], [1], [0, 0, 1, 1], [], []>} : vector<128x16xbf16>, vector<16x96xbf16>, vector<128x96xf32> -> vector<128x96xf32>
    %cst_27 = arith.constant dense<0xFF800000> : vector<128xf32>
    %71 = vector.multi_reduction <maximumf>, %70, %cst_27 [1] : vector<128x96xf32> to vector<128xf32>
    %72 = vector.shape_cast %71 : vector<128xf32> to vector<128x1xf32>
    %73 = vector.broadcast %72 : vector<128x1xf32> to vector<128x96xf32>
    %74 = arith.subf %70, %73 : vector<128x96xf32>
    %75 = math.exp %74 : vector<128x96xf32>
    %cst_28 = arith.constant dense<0.000000e+00> : vector<128xf32>
    %76 = vector.multi_reduction <add>, %75, %cst_28 [1] : vector<128x96xf32> to vector<128xf32>
    %77 = vector.shape_cast %76 : vector<128xf32> to vector<128x1xf32>
    %78 = tpu.reciprocal %77 {approx = true} : vector<128x1xf32> -> vector<128x1xf32>
    %79 = vector.broadcast %78 : vector<128x1xf32> to vector<128x96xf32>
    %80 = arith.mulf %75, %79 : vector<128x96xf32>
    %81 = arith.truncf %80 : vector<128x96xf32> to vector<128x96xbf16>
    %82 = vector.extract_strided_slice %26 {offsets = [0, 16], sizes = [96, 16], strides = [1, 1]} : vector<96x64xbf16> to vector<96x16xbf16>
    %cst_29 = arith.constant dense<0.000000e+00> : vector<128x16xf32>
    %83 = tpu.matmul %81, %82, %cst_29 {dimension_numbers = #tpu.dot_dimension_numbers<[1], [0], [0], [1], [0, 0, 1, 1], [], []>} : vector<128x96xbf16>, vector<96x16xbf16>, vector<128x16xf32> -> vector<128x16xf32>
    %84 = vector.extract_strided_slice %24 {offsets = [0, 16], sizes = [96, 16], strides = [1, 1]} : vector<96x64xbf16> to vector<96x16xbf16>
    %85 = vector.extract_strided_slice %27 {offsets = [16, 0], sizes = [16, 128], strides = [1, 1]} : vector<64x128xbf16> to vector<16x128xbf16>
    %cst_30 = arith.constant dense<0.000000e+00> : vector<96x128xf32>
    %86 = tpu.matmul %84, %85, %cst_30 {dimension_numbers = #tpu.dot_dimension_numbers<[1], [0], [0], [1], [0, 0, 1, 1], [], []>} : vector<96x16xbf16>, vector<16x128xbf16>, vector<96x128xf32> -> vector<96x128xf32>
    %cst_31 = arith.constant dense<0xFF800000> : vector<96xf32>
    %87 = vector.multi_reduction <maximumf>, %86, %cst_31 [1] : vector<96x128xf32> to vector<96xf32>
    %88 = vector.shape_cast %87 : vector<96xf32> to vector<96x1xf32>
    %89 = vector.broadcast %88 : vector<96x1xf32> to vector<96x128xf32>
    %90 = arith.subf %86, %89 : vector<96x128xf32>
    %91 = math.exp %90 : vector<96x128xf32>
    %cst_32 = arith.constant dense<0.000000e+00> : vector<96xf32>
    %92 = vector.multi_reduction <add>, %91, %cst_32 [1] : vector<96x128xf32> to vector<96xf32>
    %93 = vector.shape_cast %92 : vector<96xf32> to vector<96x1xf32>
    %94 = tpu.reciprocal %93 {approx = true} : vector<96x1xf32> -> vector<96x1xf32>
    %95 = vector.broadcast %94 : vector<96x1xf32> to vector<96x128xf32>
    %96 = arith.mulf %91, %95 : vector<96x128xf32>
    %97 = arith.truncf %96 : vector<96x128xf32> to vector<96x128xbf16>
    %98 = vector.extract_strided_slice %25 {offsets = [0, 16], sizes = [128, 16], strides = [1, 1]} : vector<128x64xbf16> to vector<128x16xbf16>
    %cst_33 = arith.constant dense<0.000000e+00> : vector<96x16xf32>
    %99 = tpu.matmul %97, %98, %cst_33 {dimension_numbers = #tpu.dot_dimension_numbers<[1], [0], [0], [1], [0, 0, 1, 1], [], []>} : vector<96x128xbf16>, vector<128x16xbf16>, vector<96x16xf32> -> vector<96x16xf32>
    %100 = tpu.concatenate %83, %99 in 0 : vector<128x16xf32>, vector<96x16xf32> -> vector<224x16xf32>
    %101 = arith.truncf %100 : vector<224x16xf32> to vector<224x16xbf16>
    %102 = vector.extract_strided_slice %29 {offsets = [16, 0], sizes = [16, 64], strides = [1, 1]} : vector<64x64xbf16> to vector<16x64xbf16>
    %cst_34 = arith.constant dense<0.000000e+00> : vector<224x64xf32>
    %103 = tpu.matmul %101, %102, %cst_34 {dimension_numbers = #tpu.dot_dimension_numbers<[1], [0], [0], [1], [0, 0, 1, 1], [], []>} : vector<224x16xbf16>, vector<16x64xbf16>, vector<224x64xf32> -> vector<224x64xf32>
    %104 = arith.addf %67, %103 : vector<224x64xf32>
    %105 = vector.extract_strided_slice %23 {offsets = [0, 32], sizes = [128, 16], strides = [1, 1]} : vector<128x64xbf16> to vector<128x16xbf16>
    %106 = vector.extract_strided_slice %28 {offsets = [32, 0], sizes = [16, 96], strides = [1, 1]} : vector<64x96xbf16> to vector<16x96xbf16>
    %cst_35 = arith.constant dense<0.000000e+00> : vector<128x96xf32>
    %107 = tpu.matmul %105, %106, %cst_35 {dimension_numbers = #tpu.dot_dimension_numbers<[1], [0], [0], [1], [0, 0, 1, 1], [], []>} : vector<128x16xbf16>, vector<16x96xbf16>, vector<128x96xf32> -> vector<128x96xf32>
    %cst_36 = arith.constant dense<0xFF800000> : vector<128xf32>
    %108 = vector.multi_reduction <maximumf>, %107, %cst_36 [1] : vector<128x96xf32> to vector<128xf32>
    %109 = vector.shape_cast %108 : vector<128xf32> to vector<128x1xf32>
    %110 = vector.broadcast %109 : vector<128x1xf32> to vector<128x96xf32>
    %111 = arith.subf %107, %110 : vector<128x96xf32>
    %112 = math.exp %111 : vector<128x96xf32>
    %cst_37 = arith.constant dense<0.000000e+00> : vector<128xf32>
    %113 = vector.multi_reduction <add>, %112, %cst_37 [1] : vector<128x96xf32> to vector<128xf32>
    %114 = vector.shape_cast %113 : vector<128xf32> to vector<128x1xf32>
    %115 = tpu.reciprocal %114 {approx = true} : vector<128x1xf32> -> vector<128x1xf32>
    %116 = vector.broadcast %115 : vector<128x1xf32> to vector<128x96xf32>
    %117 = arith.mulf %112, %116 : vector<128x96xf32>
    %118 = arith.truncf %117 : vector<128x96xf32> to vector<128x96xbf16>
    %119 = vector.extract_strided_slice %26 {offsets = [0, 32], sizes = [96, 16], strides = [1, 1]} : vector<96x64xbf16> to vector<96x16xbf16>
    %cst_38 = arith.constant dense<0.000000e+00> : vector<128x16xf32>
    %120 = tpu.matmul %118, %119, %cst_38 {dimension_numbers = #tpu.dot_dimension_numbers<[1], [0], [0], [1], [0, 0, 1, 1], [], []>} : vector<128x96xbf16>, vector<96x16xbf16>, vector<128x16xf32> -> vector<128x16xf32>
    %121 = vector.extract_strided_slice %24 {offsets = [0, 32], sizes = [96, 16], strides = [1, 1]} : vector<96x64xbf16> to vector<96x16xbf16>
    %122 = vector.extract_strided_slice %27 {offsets = [32, 0], sizes = [16, 128], strides = [1, 1]} : vector<64x128xbf16> to vector<16x128xbf16>
    %cst_39 = arith.constant dense<0.000000e+00> : vector<96x128xf32>
    %123 = tpu.matmul %121, %122, %cst_39 {dimension_numbers = #tpu.dot_dimension_numbers<[1], [0], [0], [1], [0, 0, 1, 1], [], []>} : vector<96x16xbf16>, vector<16x128xbf16>, vector<96x128xf32> -> vector<96x128xf32>
    %cst_40 = arith.constant dense<0xFF800000> : vector<96xf32>
    %124 = vector.multi_reduction <maximumf>, %123, %cst_40 [1] : vector<96x128xf32> to vector<96xf32>
    %125 = vector.shape_cast %124 : vector<96xf32> to vector<96x1xf32>
    %126 = vector.broadcast %125 : vector<96x1xf32> to vector<96x128xf32>
    %127 = arith.subf %123, %126 : vector<96x128xf32>
    %128 = math.exp %127 : vector<96x128xf32>
    %cst_41 = arith.constant dense<0.000000e+00> : vector<96xf32>
    %129 = vector.multi_reduction <add>, %128, %cst_41 [1] : vector<96x128xf32> to vector<96xf32>
    %130 = vector.shape_cast %129 : vector<96xf32> to vector<96x1xf32>
    %131 = tpu.reciprocal %130 {approx = true} : vector<96x1xf32> -> vector<96x1xf32>
    %132 = vector.broadcast %131 : vector<96x1xf32> to vector<96x128xf32>
    %133 = arith.mulf %128, %132 : vector<96x128xf32>
    %134 = arith.truncf %133 : vector<96x128xf32> to vector<96x128xbf16>
    %135 = vector.extract_strided_slice %25 {offsets = [0, 32], sizes = [128, 16], strides = [1, 1]} : vector<128x64xbf16> to vector<128x16xbf16>
    %cst_42 = arith.constant dense<0.000000e+00> : vector<96x16xf32>
    %136 = tpu.matmul %134, %135, %cst_42 {dimension_numbers = #tpu.dot_dimension_numbers<[1], [0], [0], [1], [0, 0, 1, 1], [], []>} : vector<96x128xbf16>, vector<128x16xbf16>, vector<96x16xf32> -> vector<96x16xf32>
    %137 = tpu.concatenate %120, %136 in 0 : vector<128x16xf32>, vector<96x16xf32> -> vector<224x16xf32>
    %138 = arith.truncf %137 : vector<224x16xf32> to vector<224x16xbf16>
    %139 = vector.extract_strided_slice %29 {offsets = [32, 0], sizes = [16, 64], strides = [1, 1]} : vector<64x64xbf16> to vector<16x64xbf16>
    %cst_43 = arith.constant dense<0.000000e+00> : vector<224x64xf32>
    %140 = tpu.matmul %138, %139, %cst_43 {dimension_numbers = #tpu.dot_dimension_numbers<[1], [0], [0], [1], [0, 0, 1, 1], [], []>} : vector<224x16xbf16>, vector<16x64xbf16>, vector<224x64xf32> -> vector<224x64xf32>
    %141 = arith.addf %104, %140 : vector<224x64xf32>
    %142 = vector.extract_strided_slice %23 {offsets = [0, 48], sizes = [128, 16], strides = [1, 1]} : vector<128x64xbf16> to vector<128x16xbf16>
    %143 = vector.extract_strided_slice %28 {offsets = [48, 0], sizes = [16, 96], strides = [1, 1]} : vector<64x96xbf16> to vector<16x96xbf16>
    %cst_44 = arith.constant dense<0.000000e+00> : vector<128x96xf32>
    %144 = tpu.matmul %142, %143, %cst_44 {dimension_numbers = #tpu.dot_dimension_numbers<[1], [0], [0], [1], [0, 0, 1, 1], [], []>} : vector<128x16xbf16>, vector<16x96xbf16>, vector<128x96xf32> -> vector<128x96xf32>
    %cst_45 = arith.constant dense<0xFF800000> : vector<128xf32>
    %145 = vector.multi_reduction <maximumf>, %144, %cst_45 [1] : vector<128x96xf32> to vector<128xf32>
    %146 = vector.shape_cast %145 : vector<128xf32> to vector<128x1xf32>
    %147 = vector.broadcast %146 : vector<128x1xf32> to vector<128x96xf32>
    %148 = arith.subf %144, %147 : vector<128x96xf32>
    %149 = math.exp %148 : vector<128x96xf32>
    %cst_46 = arith.constant dense<0.000000e+00> : vector<128xf32>
    %150 = vector.multi_reduction <add>, %149, %cst_46 [1] : vector<128x96xf32> to vector<128xf32>
    %151 = vector.shape_cast %150 : vector<128xf32> to vector<128x1xf32>
    %152 = tpu.reciprocal %151 {approx = true} : vector<128x1xf32> -> vector<128x1xf32>
    %153 = vector.broadcast %152 : vector<128x1xf32> to vector<128x96xf32>
    %154 = arith.mulf %149, %153 : vector<128x96xf32>
    %155 = arith.truncf %154 : vector<128x96xf32> to vector<128x96xbf16>
    %156 = vector.extract_strided_slice %26 {offsets = [0, 48], sizes = [96, 16], strides = [1, 1]} : vector<96x64xbf16> to vector<96x16xbf16>
    %cst_47 = arith.constant dense<0.000000e+00> : vector<128x16xf32>
    %157 = tpu.matmul %155, %156, %cst_47 {dimension_numbers = #tpu.dot_dimension_numbers<[1], [0], [0], [1], [0, 0, 1, 1], [], []>} : vector<128x96xbf16>, vector<96x16xbf16>, vector<128x16xf32> -> vector<128x16xf32>
    %158 = vector.extract_strided_slice %24 {offsets = [0, 48], sizes = [96, 16], strides = [1, 1]} : vector<96x64xbf16> to vector<96x16xbf16>
    %159 = vector.extract_strided_slice %27 {offsets = [48, 0], sizes = [16, 128], strides = [1, 1]} : vector<64x128xbf16> to vector<16x128xbf16>
    %cst_48 = arith.constant dense<0.000000e+00> : vector<96x128xf32>
    %160 = tpu.matmul %158, %159, %cst_48 {dimension_numbers = #tpu.dot_dimension_numbers<[1], [0], [0], [1], [0, 0, 1, 1], [], []>} : vector<96x16xbf16>, vector<16x128xbf16>, vector<96x128xf32> -> vector<96x128xf32>
    %cst_49 = arith.constant dense<0xFF800000> : vector<96xf32>
    %161 = vector.multi_reduction <maximumf>, %160, %cst_49 [1] : vector<96x128xf32> to vector<96xf32>
    %162 = vector.shape_cast %161 : vector<96xf32> to vector<96x1xf32>
    %163 = vector.broadcast %162 : vector<96x1xf32> to vector<96x128xf32>
    %164 = arith.subf %160, %163 : vector<96x128xf32>
    %165 = math.exp %164 : vector<96x128xf32>
    %cst_50 = arith.constant dense<0.000000e+00> : vector<96xf32>
    %166 = vector.multi_reduction <add>, %165, %cst_50 [1] : vector<96x128xf32> to vector<96xf32>
    %167 = vector.shape_cast %166 : vector<96xf32> to vector<96x1xf32>
    %168 = tpu.reciprocal %167 {approx = true} : vector<96x1xf32> -> vector<96x1xf32>
    %169 = vector.broadcast %168 : vector<96x1xf32> to vector<96x128xf32>
    %170 = arith.mulf %165, %169 : vector<96x128xf32>
    %171 = arith.truncf %170 : vector<96x128xf32> to vector<96x128xbf16>
    %172 = vector.extract_strided_slice %25 {offsets = [0, 48], sizes = [128, 16], strides = [1, 1]} : vector<128x64xbf16> to vector<128x16xbf16>
    %cst_51 = arith.constant dense<0.000000e+00> : vector<96x16xf32>
    %173 = tpu.matmul %171, %172, %cst_51 {dimension_numbers = #tpu.dot_dimension_numbers<[1], [0], [0], [1], [0, 0, 1, 1], [], []>} : vector<96x128xbf16>, vector<128x16xbf16>, vector<96x16xf32> -> vector<96x16xf32>
    %174 = tpu.concatenate %157, %173 in 0 : vector<128x16xf32>, vector<96x16xf32> -> vector<224x16xf32>
    %175 = arith.truncf %174 : vector<224x16xf32> to vector<224x16xbf16>
    %176 = vector.extract_strided_slice %29 {offsets = [48, 0], sizes = [16, 64], strides = [1, 1]} : vector<64x64xbf16> to vector<16x64xbf16>
    %cst_52 = arith.constant dense<0.000000e+00> : vector<224x64xf32>
    %177 = tpu.matmul %175, %176, %cst_52 {dimension_numbers = #tpu.dot_dimension_numbers<[1], [0], [0], [1], [0, 0, 1, 1], [], []>} : vector<224x16xbf16>, vector<16x64xbf16>, vector<224x64xf32> -> vector<224x64xf32>
    %178 = arith.addf %141, %177 : vector<224x64xf32>
    %c0_53 = arith.constant 0 : index
    %c0_54 = arith.constant 0 : index
    %179 = vector.load %arg8[%c0_53, %c0_54] : memref<1x64xf32, #tpu.memory_space<vmem>>, vector<1x64xf32>
    %180 = vector.broadcast %179 : vector<1x64xf32> to vector<224x64xf32>
    %181 = arith.addf %178, %180 : vector<224x64xf32>
    %c0_55 = arith.constant 0 : index
    %c0_56 = arith.constant 0 : index
    %182 = vector.load %arg9[%c0_55, %c0_56] : memref<64x128xbf16, #tpu.memory_space<vmem>>, vector<64x128xbf16>
    %cst_57 = arith.constant dense<0.000000e+00> : vector<224x128xf32>
    %183 = tpu.matmul %7, %182, %cst_57 {dimension_numbers = #tpu.dot_dimension_numbers<[1], [0], [0], [1], [0, 0, 1, 1], [], []>} : vector<224x64xbf16>, vector<64x128xbf16>, vector<224x128xf32> -> vector<224x128xf32>
    %184 = arith.truncf %181 : vector<224x64xf32> to vector<224x64xbf16>
    %c0_58 = arith.constant 0 : index
    %c0_59 = arith.constant 0 : index
    %185 = vector.load %arg10[%c0_58, %c0_59] : memref<64x128xbf16, #tpu.memory_space<vmem>>, vector<64x128xbf16>
    %cst_60 = arith.constant dense<0.000000e+00> : vector<224x128xf32>
    %186 = tpu.matmul %184, %185, %cst_60 {dimension_numbers = #tpu.dot_dimension_numbers<[1], [0], [0], [1], [0, 0, 1, 1], [], []>} : vector<224x64xbf16>, vector<64x128xbf16>, vector<224x128xf32> -> vector<224x128xf32>
    %187 = arith.addf %183, %186 : vector<224x128xf32>
    %c0_61 = arith.constant 0 : index
    %c0_62 = arith.constant 0 : index
    %188 = vector.load %arg11[%c0_61, %c0_62] : memref<1x128xf32, #tpu.memory_space<vmem>>, vector<1x128xf32>
    %189 = vector.broadcast %188 : vector<1x128xf32> to vector<224x128xf32>
    %190 = arith.addf %187, %189 : vector<224x128xf32>
    %191 = arith.truncf %190 : vector<224x128xf32> to vector<224x128xbf16>
    %c0_63 = arith.constant 0 : index
    %c0_64 = arith.constant 0 : index
    %192 = vector.load %arg12[%c0_63, %c0_64] : memref<128x64xbf16, #tpu.memory_space<vmem>>, vector<128x64xbf16>
    %cst_65 = arith.constant dense<0.000000e+00> : vector<224x64xf32>
    %193 = tpu.matmul %191, %192, %cst_65 {dimension_numbers = #tpu.dot_dimension_numbers<[1], [0], [0], [1], [0, 0, 1, 1], [], []>} : vector<224x128xbf16>, vector<128x64xbf16>, vector<224x64xf32> -> vector<224x64xf32>
    %c0_66 = arith.constant 0 : index
    %c0_67 = arith.constant 0 : index
    %194 = vector.load %arg13[%c0_66, %c0_67] : memref<1x64xf32, #tpu.memory_space<vmem>>, vector<1x64xf32>
    %195 = vector.broadcast %194 : vector<1x64xf32> to vector<224x64xf32>
    %196 = arith.addf %193, %195 : vector<224x64xf32>
    %197 = arith.addf %5, %196 : vector<224x64xf32>
    %198 = tpu.transpose %197, [1, 0] : vector<224x64xf32> -> vector<64x224xf32>
    %199 = vector.extract_strided_slice %198 {offsets = [0, 0], sizes = [64, 128], strides = [1, 1]} : vector<64x224xf32> to vector<64x128xf32>
    %c0_68 = arith.constant 0 : index
    %c0_69 = arith.constant 0 : index
    %c0_70 = arith.constant 0 : index
    %200 = vector.load %arg14[%c0_68, %c0_69, %c0_70] : memref<1x64x128xf32, #tpu.memory_space<vmem>>, vector<1x64x128xf32>
    %201 = vector.shape_cast %200 : vector<1x64x128xf32> to vector<64x128xf32>
    %202 = vector.shape_cast %199 : vector<64x128xf32> to vector<1x64x128xf32>
    tpu.vector_store %arg14[%c0_68, %c0_69, %c0_70], %202 {strides = array<i32>} : memref<1x64x128xf32, #tpu.memory_space<vmem>>, vector<1x64x128xf32>,
    %203 = vector.extract_strided_slice %198 {offsets = [0, 128], sizes = [64, 96], strides = [1, 1]} : vector<64x224xf32> to vector<64x96xf32>
    %c0_71 = arith.constant 0 : index
    %c0_72 = arith.constant 0 : index
    %c0_73 = arith.constant 0 : index
    %204 = vector.load %arg15[%c0_71, %c0_72, %c0_73] : memref<1x64x96xf32, #tpu.memory_space<vmem>>, vector<1x64x96xf32>
    %205 = vector.shape_cast %204 : vector<1x64x96xf32> to vector<64x96xf32>
    %206 = vector.shape_cast %203 : vector<64x96xf32> to vector<1x64x96xf32>
    tpu.vector_store %arg15[%c0_71, %c0_72, %c0_73], %206 {strides = array<i32>} : memref<1x64x96xf32, #tpu.memory_space<vmem>>, vector<1x64x96xf32>,
    return
  }
  func.func @transform_0(%arg0: i32) -> (i32, i32, i32) {
    %c0_i32 = arith.constant 0 : i32
    %c0_i32_0 = arith.constant 0 : i32
    %c0_i32_1 = arith.constant 0 : i32
    return %arg0, %c0_i32, %c0_i32_0 : i32, i32, i32
  }
  func.func @transform_1(%arg0: i32) -> (i32, i32, i32) {
    %c0_i32 = arith.constant 0 : i32
    %c0_i32_0 = arith.constant 0 : i32
    %c0_i32_1 = arith.constant 0 : i32
    return %arg0, %c0_i32, %c0_i32_0 : i32, i32, i32
  }
  func.func @transform_2(%arg0: i32) -> (i32, i32) {
    %c0_i32 = arith.constant 0 : i32
    %c0_i32_0 = arith.constant 0 : i32
    %c0_i32_1 = arith.constant 0 : i32
    return %c0_i32, %c0_i32_0 : i32, i32
  }
  func.func @transform_3(%arg0: i32) -> (i32, i32) {
    %c0_i32 = arith.constant 0 : i32
    %c0_i32_0 = arith.constant 0 : i32
    %c0_i32_1 = arith.constant 0 : i32
    return %c0_i32, %c0_i32_0 : i32, i32
  }
  func.func @transform_4(%arg0: i32) -> (i32, i32) {
    %c0_i32 = arith.constant 0 : i32
    %c0_i32_0 = arith.constant 0 : i32
    %c0_i32_1 = arith.constant 0 : i32
    return %c0_i32, %c0_i32_0 : i32, i32
  }
  func.func @transform_5(%arg0: i32) -> (i32, i32) {
    %c0_i32 = arith.constant 0 : i32
    %c0_i32_0 = arith.constant 0 : i32
    %c0_i32_1 = arith.constant 0 : i32
    return %c0_i32, %c0_i32_0 : i32, i32
  }
  func.func @transform_6(%arg0: i32) -> (i32, i32) {
    %c0_i32 = arith.constant 0 : i32
    %c0_i32_0 = arith.constant 0 : i32
    %c0_i32_1 = arith.constant 0 : i32
    return %c0_i32, %c0_i32_0 : i32, i32
  }
  func.func @transform_7(%arg0: i32) -> (i32, i32) {
    %c0_i32 = arith.constant 0 : i32
    %c0_i32_0 = arith.constant 0 : i32
    %c0_i32_1 = arith.constant 0 : i32
    return %c0_i32, %c0_i32_0 : i32, i32
  }
  func.func @transform_8(%arg0: i32) -> (i32, i32) {
    %c0_i32 = arith.constant 0 : i32
    %c0_i32_0 = arith.constant 0 : i32
    %c0_i32_1 = arith.constant 0 : i32
    return %c0_i32, %c0_i32_0 : i32, i32
  }
  func.func @transform_9(%arg0: i32) -> (i32, i32) {
    %c0_i32 = arith.constant 0 : i32
    %c0_i32_0 = arith.constant 0 : i32
    %c0_i32_1 = arith.constant 0 : i32
    return %c0_i32, %c0_i32_0 : i32, i32
  }
  func.func @transform_10(%arg0: i32) -> (i32, i32) {
    %c0_i32 = arith.constant 0 : i32
    %c0_i32_0 = arith.constant 0 : i32
    %c0_i32_1 = arith.constant 0 : i32
    return %c0_i32, %c0_i32_0 : i32, i32
  }
  func.func @transform_11(%arg0: i32) -> (i32, i32) {
    %c0_i32 = arith.constant 0 : i32
    %c0_i32_0 = arith.constant 0 : i32
    %c0_i32_1 = arith.constant 0 : i32
    return %c0_i32, %c0_i32_0 : i32, i32
  }
  func.func @transform_12(%arg0: i32) -> (i32, i32) {
    %c0_i32 = arith.constant 0 : i32
    %c0_i32_0 = arith.constant 0 : i32
    %c0_i32_1 = arith.constant 0 : i32
    return %c0_i32, %c0_i32_0 : i32, i32
  }
  func.func @transform_13(%arg0: i32) -> (i32, i32, i32) {
    %c0_i32 = arith.constant 0 : i32
    %c0_i32_0 = arith.constant 0 : i32
    %c0_i32_1 = arith.constant 0 : i32
    return %arg0, %c0_i32, %c0_i32_0 : i32, i32, i32
  }
  func.func @transform_14(%arg0: i32) -> (i32, i32, i32) {
    %c0_i32 = arith.constant 0 : i32
    %c0_i32_0 = arith.constant 0 : i32
    %c0_i32_1 = arith.constant 0 : i32
    return %arg0, %c0_i32, %c0_i32_0 : i32, i32, i32
  }
}

</mosaic_0001>

<llo_original>
// kernel: tpu_custom_call.1
$region0: #{tpu_custom_call.1}
  #allocation0 [shape = 'u32[]', space=smem, size = 0x4, offset = 0x4, fixed_abs, tag = 'smem constant byte address 0x4 - core index']
  #allocation1 [shape = 'u32[144,128]{1,0:T(1,128)}', space=vmem, size = 0x12000, scoped, tag = 'internal scratch']
  %s0 = inlined_call_operand.vmem [shape: f32[2,64,128], index: 0, kind: input, shape index: {}]
  %s1 = inlined_call_operand.hbm [shape: f32[2,64,96], index: 1, kind: input, shape index: {}]
  %s2 = inlined_call_operand.hbm [shape: bf16[64,128], index: 2, kind: input, shape index: {}]
  %s3 = inlined_call_operand.vmem [shape: f32[1,128], index: 3, kind: input, shape index: {}]
  %s4 = inlined_call_operand.hbm [shape: bf16[64,64], index: 4, kind: input, shape index: {}]
  %s5 = inlined_call_operand.vmem [shape: f32[64,1], index: 5, kind: input, shape index: {}]
  %s6 = inlined_call_operand.hbm [shape: bf16[64,64], index: 6, kind: input, shape index: {}]
  %s7 = inlined_call_operand.vmem [shape: f32[1,64], index: 7, kind: input, shape index: {}]
  %s8 = inlined_call_operand.hbm [shape: bf16[64,128], index: 8, kind: input, shape index: {}]
  %s9 = inlined_call_operand.vmem [shape: bf16[64,128], index: 9, kind: input, shape index: {}]
  %s10 = inlined_call_operand.vmem [shape: f32[1,128], index: 10, kind: input, shape index: {}]
  %s11 = inlined_call_operand.vmem [shape: bf16[128,64], index: 11, kind: input, shape index: {}]
  %s12 = inlined_call_operand.vmem [shape: f32[1,64], index: 12, kind: input, shape index: {}]
  %s13 = inlined_call_operand.hbm [shape: f32[2,64,128], index: 13, kind: output, shape index: {0}]
  %s14 = inlined_call_operand.hbm [shape: f32[2,64,96], index: 14, kind: output, shape index: {1}]
  %15 = xla_tuple %s13, %s14
  %s16 = sld [smem:[#allocation0]]
  $region113: #{tpu_custom_call.1} parent=0
    _
  %s18 = ssub.s32 1, %s16
  %s19 = scalar_select 0, %s18, %s16
  $region1: #{tpu_custom_call.1} parent=0
    #allocation2 [shape = 'u8[65536]{0}', space=vmem, size = 0x10000, scoped, tag = 'input window, operand 1']
    #allocation3 [shape = 's32[2]{0}', space=sflag, size = 0x8, scoped, tag = 'scoped memory for tpu_custom_call.1']
    #allocation4 [shape = 's32[2]{0}', space=sflag, size = 0x8, scoped, tag = 'scoped memory for tpu_custom_call.1']
    #allocation5 [shape = 'u8[16384]{0}', space=vmem, size = 0x4000, scoped, tag = 'input window, operand 2, single buffered']
    #allocation6 [shape = 's32[1]{0}', space=sflag, size = 0x4, scoped, tag = 'scoped memory for tpu_custom_call.1']
    #allocation7 [shape = 'u8[16384]{0}', space=vmem, size = 0x4000, scoped, tag = 'input window, operand 4, single buffered']
    #allocation8 [shape = 'u8[16384]{0}', space=vmem, size = 0x4000, scoped, tag = 'input window, operand 6, single buffered']
    #allocation9 [shape = 's32[1]{0}', space=sflag, size = 0x4, scoped, tag = 'scoped memory for tpu_custom_call.1']
    #allocation10 [shape = 'u8[16384]{0}', space=vmem, size = 0x4000, scoped, tag = 'input window, operand 8, single buffered']
    #allocation11 [shape = 'u8[65536]{0}', space=vmem, size = 0x10000, scoped, tag = 'output window, operand 0']
    #allocation12 [shape = 'u8[65536]{0}', space=vmem, size = 0x10000, scoped, tag = 'output window, operand 1']
    #allocation13 [shape = 's32[2]{0}', space=sflag, size = 0x8, scoped, tag = 'scoped memory for tpu_custom_call.1']
    %20 = vsyncpa [#allocation3], 0
    %s21 = scalar_lea.sflag [#allocation3], 1
    %22 = vsyncpa %s21, 0
    %23 = vsyncpa [#allocation6], 0
    %24 = vsyncpa [#allocation9], 0
    %25 = vsyncpa [#allocation4], 0
    %s26 = scalar_lea.sflag [#allocation4], 1
    %27 = vsyncpa %s26, 0
    %28 = vsyncpa [#allocation13], 0
    %s29 = scalar_lea.sflag [#allocation13], 1
    %30 = vsyncpa %s29, 0
    loop: start=0, step=1, limit=4
    $region2: #{tpu_custom_call.1} parent=1 // loop_pre_header
      _
    $region3: #{tpu_custom_call.1} parent=1 // loop_header
      %s32 = sphi 0, %s36
      %p33 = scmp.ge.s32.totalorder %s32, 4
      %s42 = sphi 0, %s44
      %s45 = sphi 0, %s42
      %s46 = sphi 0, %s45
      %s62 = sphi 0, %s46
      %s68 = sphi 0, %s70
      %s71 = sphi 0, %s68
      %s72 = sphi 0, %s71
      %s88 = sphi 0, %s72
      %s92 = sphi 0, %s92
      %s94 = sphi 0, %s92
      %s95 = sphi 0, %s94
      %s109 = sphi 0, %s95
      %s113 = sphi 0, %s113
      %s115 = sphi 0, %s113
      %s116 = sphi 0, %s115
      %s130 = sphi 0, %s116
      %s134 = sphi 0, %s134
      %s136 = sphi 0, %s134
      %s137 = sphi 0, %s136
      %s151 = sphi 0, %s137
      %s155 = sphi 0, %s155
      %s157 = sphi 0, %s155
      %s158 = sphi 0, %s157
      %s172 = sphi 0, %s158
      %s176 = sphi 0, %s176
      %s178 = sphi 0, %s176
      %s179 = sphi 0, %s178
      %s193 = sphi 0, %s179
      %s197 = sphi 0, %s197
      %s199 = sphi 0, %s197
      %s200 = sphi 0, %s199
      %s214 = sphi 0, %s200
      %s218 = sphi 0, %s218
      %s220 = sphi 0, %s218
      %s221 = sphi 0, %s220
      %s235 = sphi 0, %s221
      %s239 = sphi 0, %s239
      %s241 = sphi 0, %s239
      %s242 = sphi 0, %s241
      %s256 = sphi 0, %s242
      %s260 = sphi 0, %s260
      %s262 = sphi 0, %s260
      %s263 = sphi 0, %s262
      %s277 = sphi 0, %s263
      %s281 = sphi 0, %s281
      %s283 = sphi 0, %s281
      %s284 = sphi 0, %s283
      %s298 = sphi 0, %s284
      %s302 = sphi 0, %s302
      %s304 = sphi 0, %s302
      %s305 = sphi 0, %s304
      %s319 = sphi 0, %s305
      %s325 = sphi 0, %s327
      %s328 = sphi 0, %s325
      %s329 = sphi 0, %s328
      %s345 = sphi 0, %s329
      %s351 = sphi 0, %s353
      %s354 = sphi 0, %s351
      %s355 = sphi 0, %s354
      %s371 = sphi 0, %s355
    $region4: #{tpu_custom_call.1} parent=1 // loop_header_branch
      %35 = sbr.rel (%p33) target = $region8
    $region5: #{tpu_custom_call.1} parent=1 // loop_body
      %s37 = ssub.s32 %s32, 1
      %s38 = ssub.s32 %s32, 2
      %s39 = sadd.s32 %s32, 1
      %s40 = ssub.s32 %s32, %s39
      %p41 = scmp.eq.s32.totalorder %s40, 0
      %s43 = sadd.s32 %s42, 1
      %s44 = scalar_select %p41, %s42, %s43
      %p47 = pneg %p41
      %p48 = scmp.eq.s32.totalorder %s32, 1
      %p49 = por %p47, %p48
      %p50 = scmp.ne.s32.totalorder %s42, %s45
      %p51 = scmp.eq.s32.totalorder %s32, 0
      %p52 = por %p50, %p51
      %p53 = scmp.ne.s32.totalorder %s42, %s45
      %p54 = scmp.eq.s32.totalorder %s37, 1
      %p55 = por %p53, %p54
      %p56 = scmp.ne.s32.totalorder %s45, %s46
      %p57 = scmp.eq.s32.totalorder %s37, 0
      %p58 = por %p56, %p57
      %p59 = scmp.ne.s32.totalorder %s45, %s46
      %p60 = scmp.eq.s32.totalorder %s38, 1
      %p61 = por %p59, %p60
      %p63 = scmp.ne.s32.totalorder %s46, %s62
      %p64 = scmp.eq.s32.totalorder %s38, 0
      %p65 = por %p63, %p64
      %s66 = ssub.s32 %s32, %s39
      %p67 = scmp.eq.s32.totalorder %s66, 0
      %s69 = sadd.s32 %s68, 1
      %s70 = scalar_select %p67, %s68, %s69
      %p73 = pneg %p67
      %p74 = scmp.eq.s32.totalorder %s32, 1
      %p75 = por %p73, %p74
      %p76 = scmp.ne.s32.totalorder %s68, %s71
      %p77 = scmp.eq.s32.totalorder %s32, 0
      %p78 = por %p76, %p77
      %p79 = scmp.ne.s32.totalorder %s68, %s71
      %p80 = scmp.eq.s32.totalorder %s37, 1
      %p81 = por %p79, %p80
      %p82 = scmp.ne.s32.totalorder %s71, %s72
      %p83 = scmp.eq.s32.totalorder %s37, 0
      %p84 = por %p82, %p83
      %p85 = scmp.ne.s32.totalorder %s71, %s72
      %p86 = scmp.eq.s32.totalorder %s38, 1
      %p87 = por %p85, %p86
      %p89 = scmp.ne.s32.totalorder %s72, %s88
      %p90 = scmp.eq.s32.totalorder %s38, 0
      %p91 = por %p89, %p90
      %s93 = sadd.s32 %s92, 1
      %p96 = scmp.eq.s32.totalorder %s32, 1
      %p97 = scmp.ne.s32.totalorder %s92, %s94
      %p98 = scmp.eq.s32.totalorder %s32, 0
      %p99 = por %p97, %p98
      %p100 = scmp.ne.s32.totalorder %s92, %s94
      %p101 = scmp.eq.s32.totalorder %s37, 1
      %p102 = por %p100, %p101
      %p103 = scmp.ne.s32.totalorder %s94, %s95
      %p104 = scmp.eq.s32.totalorder %s37, 0
      %p105 = por %p103, %p104
      %p106 = scmp.ne.s32.totalorder %s94, %s95
      %p107 = scmp.eq.s32.totalorder %s38, 1
      %p108 = por %p106, %p107
      %p110 = scmp.ne.s32.totalorder %s95, %s109
      %p111 = scmp.eq.s32.totalorder %s38, 0
      %p112 = por %p110, %p111
      %s114 = sadd.s32 %s113, 1
      %p117 = scmp.eq.s32.totalorder %s32, 1
      %p118 = scmp.ne.s32.totalorder %s113, %s115
      %p119 = scmp.eq.s32.totalorder %s32, 0
      %p120 = por %p118, %p119
      %p121 = scmp.ne.s32.totalorder %s113, %s115
      %p122 = scmp.eq.s32.totalorder %s37, 1
      %p123 = por %p121, %p122
      %p124 = scmp.ne.s32.totalorder %s115, %s116
      %p125 = scmp.eq.s32.totalorder %s37, 0
      %p126 = por %p124, %p125
      %p127 = scmp.ne.s32.totalorder %s115, %s116
      %p128 = scmp.eq.s32.totalorder %s38, 1
      %p129 = por %p127, %p128
      %p131 = scmp.ne.s32.totalorder %s116, %s130
      %p132 = scmp.eq.s32.totalorder %s38, 0
      %p133 = por %p131, %p132
      %s135 = sadd.s32 %s134, 1
      %p138 = scmp.eq.s32.totalorder %s32, 1
      %p139 = scmp.ne.s32.totalorder %s134, %s136
      %p140 = scmp.eq.s32.totalorder %s32, 0
      %p141 = por %p139, %p140
      %p142 = scmp.ne.s32.totalorder %s134, %s136
      %p143 = scmp.eq.s32.totalorder %s37, 1
      %p144 = por %p142, %p143
      %p145 = scmp.ne.s32.totalorder %s136, %s137
      %p146 = scmp.eq.s32.totalorder %s37, 0
      %p147 = por %p145, %p146
      %p148 = scmp.ne.s32.totalorder %s136, %s137
      %p149 = scmp.eq.s32.totalorder %s38, 1
      %p150 = por %p148, %p149
      %p152 = scmp.ne.s32.totalorder %s137, %s151
      %p153 = scmp.eq.s32.totalorder %s38, 0
      %p154 = por %p152, %p153
      %s156 = sadd.s32 %s155, 1
      %p159 = scmp.eq.s32.totalorder %s32, 1
      %p160 = scmp.ne.s32.totalorder %s155, %s157
      %p161 = scmp.eq.s32.totalorder %s32, 0
      %p162 = por %p160, %p161
      %p163 = scmp.ne.s32.totalorder %s155, %s157
      %p164 = scmp.eq.s32.totalorder %s37, 1
      %p165 = por %p163, %p164
      %p166 = scmp.ne.s32.totalorder %s157, %s158
      %p167 = scmp.eq.s32.totalorder %s37, 0
      %p168 = por %p166, %p167
      %p169 = scmp.ne.s32.totalorder %s157, %s158
      %p170 = scmp.eq.s32.totalorder %s38, 1
      %p171 = por %p169, %p170
      %p173 = scmp.ne.s32.totalorder %s158, %s172
      %p174 = scmp.eq.s32.totalorder %s38, 0
      %p175 = por %p173, %p174
      %s177 = sadd.s32 %s176, 1
      %p180 = scmp.eq.s32.totalorder %s32, 1
      %p181 = scmp.ne.s32.totalorder %s176, %s178
      %p182 = scmp.eq.s32.totalorder %s32, 0
      %p183 = por %p181, %p182
      %p184 = scmp.ne.s32.totalorder %s176, %s178
      %p185 = scmp.eq.s32.totalorder %s37, 1
      %p186 = por %p184, %p185
      %p187 = scmp.ne.s32.totalorder %s178, %s179
      %p188 = scmp.eq.s32.totalorder %s37, 0
      %p189 = por %p187, %p188
      %p190 = scmp.ne.s32.totalorder %s178, %s179
      %p191 = scmp.eq.s32.totalorder %s38, 1
      %p192 = por %p190, %p191
      %p194 = scmp.ne.s32.totalorder %s179, %s193
      %p195 = scmp.eq.s32.totalorder %s38, 0
      %p196 = por %p194, %p195
      %s198 = sadd.s32 %s197, 1
      %p201 = scmp.eq.s32.totalorder %s32, 1
      %p202 = scmp.ne.s32.totalorder %s197, %s199
      %p203 = scmp.eq.s32.totalorder %s32, 0
      %p204 = por %p202, %p203
      %p205 = scmp.ne.s32.totalorder %s197, %s199
      %p206 = scmp.eq.s32.totalorder %s37, 1
      %p207 = por %p205, %p206
      %p208 = scmp.ne.s32.totalorder %s199, %s200
      %p209 = scmp.eq.s32.totalorder %s37, 0
      %p210 = por %p208, %p209
      %p211 = scmp.ne.s32.totalorder %s199, %s200
      %p212 = scmp.eq.s32.totalorder %s38, 1
      %p213 = por %p211, %p212
      %p215 = scmp.ne.s32.totalorder %s200, %s214
      %p216 = scmp.eq.s32.totalorder %s38, 0
      %p217 = por %p215, %p216
      %s219 = sadd.s32 %s218, 1
      %p222 = scmp.eq.s32.totalorder %s32, 1
      %p223 = scmp.ne.s32.totalorder %s218, %s220
      %p224 = scmp.eq.s32.totalorder %s32, 0
      %p225 = por %p223, %p224
      %p226 = scmp.ne.s32.totalorder %s218, %s220
      %p227 = scmp.eq.s32.totalorder %s37, 1
      %p228 = por %p226, %p227
      %p229 = scmp.ne.s32.totalorder %s220, %s221
      %p230 = scmp.eq.s32.totalorder %s37, 0
      %p231 = por %p229, %p230
      %p232 = scmp.ne.s32.totalorder %s220, %s221
      %p233 = scmp.eq.s32.totalorder %s38, 1
      %p234 = por %p232, %p233
      %p236 = scmp.ne.s32.totalorder %s221, %s235
      %p237 = scmp.eq.s32.totalorder %s38, 0
      %p238 = por %p236, %p237
      %s240 = sadd.s32 %s239, 1
      %p243 = scmp.eq.s32.totalorder %s32, 1
      %p244 = scmp.ne.s32.totalorder %s239, %s241
      %p245 = scmp.eq.s32.totalorder %s32, 0
      %p246 = por %p244, %p245
      %p247 = scmp.ne.s32.totalorder %s239, %s241
      %p248 = scmp.eq.s32.totalorder %s37, 1
      %p249 = por %p247, %p248
      %p250 = scmp.ne.s32.totalorder %s241, %s242
      %p251 = scmp.eq.s32.totalorder %s37, 0
      %p252 = por %p250, %p251
      %p253 = scmp.ne.s32.totalorder %s241, %s242
      %p254 = scmp.eq.s32.totalorder %s38, 1
      %p255 = por %p253, %p254
      %p257 = scmp.ne.s32.totalorder %s242, %s256
      %p258 = scmp.eq.s32.totalorder %s38, 0
      %p259 = por %p257, %p258
      %s261 = sadd.s32 %s260, 1
      %p264 = scmp.eq.s32.totalorder %s32, 1
      %p265 = scmp.ne.s32.totalorder %s260, %s262
      %p266 = scmp.eq.s32.totalorder %s32, 0
      %p267 = por %p265, %p266
      %p268 = scmp.ne.s32.totalorder %s260, %s262
      %p269 = scmp.eq.s32.totalorder %s37, 1
      %p270 = por %p268, %p269
      %p271 = scmp.ne.s32.totalorder %s262, %s263
      %p272 = scmp.eq.s32.totalorder %s37, 0
      %p273 = por %p271, %p272
      %p274 = scmp.ne.s32.totalorder %s262, %s263
      %p275 = scmp.eq.s32.totalorder %s38, 1
      %p276 = por %p274, %p275
      %p278 = scmp.ne.s32.totalorder %s263, %s277
      %p279 = scmp.eq.s32.totalorder %s38, 0
      %p280 = por %p278, %p279
      %s282 = sadd.s32 %s281, 1
      %p285 = scmp.eq.s32.totalorder %s32, 1
      %p286 = scmp.ne.s32.totalorder %s281, %s283
      %p287 = scmp.eq.s32.totalorder %s32, 0
      %p288 = por %p286, %p287
      %p289 = scmp.ne.s32.totalorder %s281, %s283
      %p290 = scmp.eq.s32.totalorder %s37, 1
      %p291 = por %p289, %p290
      %p292 = scmp.ne.s32.totalorder %s283, %s284
      %p293 = scmp.eq.s32.totalorder %s37, 0
      %p294 = por %p292, %p293
      %p295 = scmp.ne.s32.totalorder %s283, %s284
      %p296 = scmp.eq.s32.totalorder %s38, 1
      %p297 = por %p295, %p296
      %p299 = scmp.ne.s32.totalorder %s284, %s298
      %p300 = scmp.eq.s32.totalorder %s38, 0
      %p301 = por %p299, %p300
      %s303 = sadd.s32 %s302, 1
      %p306 = scmp.eq.s32.totalorder %s32, 1
      %p307 = scmp.ne.s32.totalorder %s302, %s304
      %p308 = scmp.eq.s32.totalorder %s32, 0
      %p309 = por %p307, %p308
      %p310 = scmp.ne.s32.totalorder %s302, %s304
      %p311 = scmp.eq.s32.totalorder %s37, 1
      %p312 = por %p310, %p311
      %p313 = scmp.ne.s32.totalorder %s304, %s305
      %p314 = scmp.eq.s32.totalorder %s37, 0
      %p315 = por %p313, %p314
      %p316 = scmp.ne.s32.totalorder %s304, %s305
      %p317 = scmp.eq.s32.totalorder %s38, 1
      %p318 = por %p316, %p317
      %p320 = scmp.ne.s32.totalorder %s305, %s319
      %p321 = scmp.eq.s32.totalorder %s38, 0
      %p322 = por %p320, %p321
      %s323 = ssub.s32 %s32, %s39
      %p324 = scmp.eq.s32.totalorder %s323, 0
      %s326 = sadd.s32 %s325, 1
      %s327 = scalar_select %p324, %s325, %s326
      %p330 = pneg %p324
      %p331 = scmp.eq.s32.totalorder %s32, 1
      %p332 = por %p330, %p331
      %p333 = scmp.ne.s32.totalorder %s325, %s328
      %p334 = scmp.eq.s32.totalorder %s32, 0
      %p335 = por %p333, %p334
      %p336 = scmp.ne.s32.totalorder %s325, %s328
      %p337 = scmp.eq.s32.totalorder %s37, 1
      %p338 = por %p336, %p337
      %p339 = scmp.ne.s32.totalorder %s328, %s329
      %p340 = scmp.eq.s32.totalorder %s37, 0
      %p341 = por %p339, %p340
      %p342 = scmp.ne.s32.totalorder %s328, %s329
      %p343 = scmp.eq.s32.totalorder %s38, 1
      %p344 = por %p342, %p343
      %p346 = scmp.ne.s32.totalorder %s329, %s345
      %p347 = scmp.eq.s32.totalorder %s38, 0
      %p348 = por %p346, %p347
      %s349 = ssub.s32 %s32, %s39
      %p350 = scmp.eq.s32.totalorder %s349, 0
      %s352 = sadd.s32 %s351, 1
      %s353 = scalar_select %p350, %s351, %s352
      %p356 = pneg %p350
      %p357 = scmp.eq.s32.totalorder %s32, 1
      %p358 = por %p356, %p357
      %p359 = scmp.ne.s32.totalorder %s351, %s354
      %p360 = scmp.eq.s32.totalorder %s32, 0
      %p361 = por %p359, %p360
      %p362 = scmp.ne.s32.totalorder %s351, %s354
      %p363 = scmp.eq.s32.totalorder %s37, 1
      %p364 = por %p362, %p363
      %p365 = scmp.ne.s32.totalorder %s354, %s355
      %p366 = scmp.eq.s32.totalorder %s37, 0
      %p367 = por %p365, %p366
      %p368 = scmp.ne.s32.totalorder %s354, %s355
      %p369 = scmp.eq.s32.totalorder %s38, 1
      %p370 = por %p368, %p369
      %p372 = scmp.ne.s32.totalorder %s355, %s371
      %p373 = scmp.eq.s32.totalorder %s38, 0
      %p374 = por %p372, %p373
      %p375 = scmp.le.s32.totalorder 1, %s32
      %p376 = scmp.lt.s32.totalorder %s32, 3
      %p377 = pnand %p375, %p376
      %p378 = pneg %p377
      // Predicated region
      $region9: #{tpu_custom_call.1} parent=5 // pred_check
        _
      $region10: #{tpu_custom_call.1} parent=5 // pred_check_branch
        %380 = sbr.rel (%p377) target = $region12
      $region11: #{tpu_custom_call.1} parent=5 // pred_region
        %s381 = ssub.s32 %s32, 1
        // Predicated region
        $region13: #{tpu_custom_call.1} parent=11 // pred_check
          %p382 = pneg %p105
        $region14: #{tpu_custom_call.1} parent=11 // pred_check_branch
          %384 = sbr.rel (%p382) target = $region16
        $region15: #{tpu_custom_call.1} parent=11 // pred_region
          %s386 = ssub.s32 512, 512
          %387 = vsyncadd [#allocation6], %s386
          %s388 = sshll.u32 [#allocation5], 4
          %s389 = int_to_ptr.vmem [resolvable:$true] %s388
          %394 = dma.hbm_to_vmem [thread:$0]  %s2, 512, %s389, [#allocation6], 64, 64, 4
        $region16: #{tpu_custom_call.1} parent=11 // pred_fallthru
          _
        // Predicated region
        $region17: #{tpu_custom_call.1} parent=11 // pred_check
          %p395 = pneg %p126
        $region18: #{tpu_custom_call.1} parent=11 // pred_check_branch
          %397 = sbr.rel (%p395) target = $region20
        $region19: #{tpu_custom_call.1} parent=11 // pred_region
          _
        $region20: #{tpu_custom_call.1} parent=11 // pred_fallthru
          _
        // Predicated region
        $region21: #{tpu_custom_call.1} parent=11 // pred_check
          %p398 = pneg %p147
        $region22: #{tpu_custom_call.1} parent=11 // pred_check_branch
          %400 = sbr.rel (%p398) target = $region24
        $region23: #{tpu_custom_call.1} parent=11 // pred_region
          %s402 = ssub.s32 512, 512
          %403 = vsyncadd [#allocation6], %s402
          %s404 = sshll.u32 [#allocation7], 4
          %s405 = int_to_ptr.vmem [resolvable:$true] %s404
          %410 = dma.hbm_to_vmem [thread:$0]  %s4, 512, %s405, [#allocation6], 64, 64, 4
        $region24: #{tpu_custom_call.1} parent=11 // pred_fallthru
          _
        // Predicated region
        $region25: #{tpu_custom_call.1} parent=11 // pred_check
          %p411 = pneg %p168
        $region26: #{tpu_custom_call.1} parent=11 // pred_check_branch
          %413 = sbr.rel (%p411) target = $region28
        $region27: #{tpu_custom_call.1} parent=11 // pred_region
          _
        $region28: #{tpu_custom_call.1} parent=11 // pred_fallthru
          _
        // Predicated region
        $region29: #{tpu_custom_call.1} parent=11 // pred_check
          %p414 = pneg %p189
        $region30: #{tpu_custom_call.1} parent=11 // pred_check_branch
          %416 = sbr.rel (%p414) target = $region32
        $region31: #{tpu_custom_call.1} parent=11 // pred_region
          %s418 = ssub.s32 512, 512
          %419 = vsyncadd [#allocation9], %s418
          %s420 = sshll.u32 [#allocation8], 4
          %s421 = int_to_ptr.vmem [resolvable:$true] %s420
          %426 = dma.hbm_to_vmem [thread:$0]  %s6, 512, %s421, [#allocation9], 64, 64, 4
        $region32: #{tpu_custom_call.1} parent=11 // pred_fallthru
          _
        // Predicated region
        $region33: #{tpu_custom_call.1} parent=11 // pred_check
          %p427 = pneg %p210
        $region34: #{tpu_custom_call.1} parent=11 // pred_check_branch
          %429 = sbr.rel (%p427) target = $region36
        $region35: #{tpu_custom_call.1} parent=11 // pred_region
          _
        $region36: #{tpu_custom_call.1} parent=11 // pred_fallthru
          _
        // Predicated region
        $region37: #{tpu_custom_call.1} parent=11 // pred_check
          %p430 = pneg %p231
        $region38: #{tpu_custom_call.1} parent=11 // pred_check_branch
          %432 = sbr.rel (%p430) target = $region40
        $region39: #{tpu_custom_call.1} parent=11 // pred_region
          %s434 = ssub.s32 512, 512
          %435 = vsyncadd [#allocation9], %s434
          %s436 = sshll.u32 [#allocation10], 4
          %s437 = int_to_ptr.vmem [resolvable:$true] %s436
          %442 = dma.hbm_to_vmem [thread:$0]  %s8, 512, %s437, [#allocation9], 64, 64, 4
        $region40: #{tpu_custom_call.1} parent=11 // pred_fallthru
          _
        // Predicated region
        $region41: #{tpu_custom_call.1} parent=11 // pred_check
          %p443 = pneg %p252
        $region42: #{tpu_custom_call.1} parent=11 // pred_check_branch
          %445 = sbr.rel (%p443) target = $region44
        $region43: #{tpu_custom_call.1} parent=11 // pred_region
          _
        $region44: #{tpu_custom_call.1} parent=11 // pred_fallthru
          _
        // Predicated region
        $region45: #{tpu_custom_call.1} parent=11 // pred_check
          %p446 = pneg %p273
        $region46: #{tpu_custom_call.1} parent=11 // pred_check_branch
          %448 = sbr.rel (%p446) target = $region48
        $region47: #{tpu_custom_call.1} parent=11 // pred_region
          _
        $region48: #{tpu_custom_call.1} parent=11 // pred_fallthru
          _
        // Predicated region
        $region49: #{tpu_custom_call.1} parent=11 // pred_check
          %p449 = pneg %p294
        $region50: #{tpu_custom_call.1} parent=11 // pred_check_branch
          %451 = sbr.rel (%p449) target = $region52
        $region51: #{tpu_custom_call.1} parent=11 // pred_region
          _
        $region52: #{tpu_custom_call.1} parent=11 // pred_fallthru
          _
        // Predicated region
        $region53: #{tpu_custom_call.1} parent=11 // pred_check
          %p452 = pneg %p315
        $region54: #{tpu_custom_call.1} parent=11 // pred_check_branch
          %454 = sbr.rel (%p452) target = $region56
        $region55: #{tpu_custom_call.1} parent=11 // pred_region
          _
        $region56: #{tpu_custom_call.1} parent=11 // pred_fallthru
          _
      $region12: #{tpu_custom_call.1} parent=5 // pred_fallthru
        _
      %p455 = scmp.lt.s32.totalorder %s32, 2
      // Predicated region
      $region57: #{tpu_custom_call.1} parent=5 // pred_check
        %p456 = pneg %p455
      $region58: #{tpu_custom_call.1} parent=5 // pred_check_branch
        %458 = sbr.rel (%p456) target = $region60
      $region59: #{tpu_custom_call.1} parent=5 // pred_region
        // Predicated region
        $region61: #{tpu_custom_call.1} parent=59 // pred_check
          %p459 = pneg %p52
        $region62: #{tpu_custom_call.1} parent=59 // pred_check_branch
          %461 = sbr.rel (%p459) target = $region64
        $region63: #{tpu_custom_call.1} parent=59 // pred_region
          %p462 = scmp.lt.s32.totalorder %s32, 1
          %s463 = scalar_select %p462, %s32, 1
          %s464 = smul.addr %s463, 8
          %s465 = smul.addr %s464, 8
          %s466 = scalar_lea.vmem %s0, %s465
        $region64: #{tpu_custom_call.1} parent=59 // pred_fallthru
          _
        // Predicated region
        $region65: #{tpu_custom_call.1} parent=59 // pred_check
          %p467 = pneg %p78
        $region66: #{tpu_custom_call.1} parent=59 // pred_check_branch
          %469 = sbr.rel (%p467) target = $region68
        $region67: #{tpu_custom_call.1} parent=59 // pred_region
          %s470 = sand.u32 %s68, 1
          %s471 = scalar_lea.sflag [#allocation3], %s470
          %s472 = sand.u32 %s68, 1
          %s473 = smul.addr %s472, 64
          %s474 = scalar_lea.vmem [#allocation2], %s473
          %s476 = ssub.s32 1024, 1024
          %477 = vsyncadd %s471, %s476
          %s478 = smul.addr %s32, 8
          %s479 = smul.addr %s478, 128
          %s480 = scalar_lea.hbm %s1, %s479
          %s481 = sshll.u32 %s474, 4
          %s482 = int_to_ptr.vmem [resolvable:$true] %s481
          %487 = dma.hbm_to_vmem [thread:$0]  %s480, 1024, %s482, %s471, 128, 128, 8
        $region68: #{tpu_custom_call.1} parent=59 // pred_fallthru
          _
      $region60: #{tpu_custom_call.1} parent=5 // pred_fallthru
        _
      %p488 = scmp.le.s32.totalorder 1, %s32
      %p489 = scmp.lt.s32.totalorder %s32, 3
      %p490 = pnand %p488, %p489
      %p491 = pneg %p490
      // Predicated region
      $region69: #{tpu_custom_call.1} parent=5 // pred_check
        _
      $region70: #{tpu_custom_call.1} parent=5 // pred_check_branch
        %493 = sbr.rel (%p490) target = $region72
      $region71: #{tpu_custom_call.1} parent=5 // pred_region
        %s494 = ssub.s32 %s32, 1
        %s495 = sand.u32 %s71, 1
        %s496 = scalar_lea.sflag [#allocation3], %s495
        %s497 = sand.u32 %s71, 1
        %s498 = smul.addr %s497, 64
        %s499 = scalar_lea.vmem [#allocation2], %s498
        // Predicated region
        $region73: #{tpu_custom_call.1} parent=71 // pred_check
          %p500 = pneg %p84
        $region74: #{tpu_custom_call.1} parent=71 // pred_check_branch
          %502 = sbr.rel (%p500) target = $region76
        $region75: #{tpu_custom_call.1} parent=71 // pred_region
          %503 = dma.done %s496, 1024
        $region76: #{tpu_custom_call.1} parent=71 // pred_fallthru
          _
        // Predicated region
        $region77: #{tpu_custom_call.1} parent=71 // pred_check
          %p504 = pneg %p105
        $region78: #{tpu_custom_call.1} parent=71 // pred_check_branch
          %506 = sbr.rel (%p504) target = $region80
        $region79: #{tpu_custom_call.1} parent=71 // pred_region
          %507 = dma.done [#allocation6], 512
        $region80: #{tpu_custom_call.1} parent=71 // pred_fallthru
          _
        // Predicated region
        $region81: #{tpu_custom_call.1} parent=71 // pred_check
          %p508 = pneg %p147
        $region82: #{tpu_custom_call.1} parent=71 // pred_check_branch
          %510 = sbr.rel (%p508) target = $region84
        $region83: #{tpu_custom_call.1} parent=71 // pred_region
          %511 = dma.done [#allocation6], 512
        $region84: #{tpu_custom_call.1} parent=71 // pred_fallthru
          _
        // Predicated region
        $region85: #{tpu_custom_call.1} parent=71 // pred_check
          %p512 = pneg %p189
        $region86: #{tpu_custom_call.1} parent=71 // pred_check_branch
          %514 = sbr.rel (%p512) target = $region88
        $region87: #{tpu_custom_call.1} parent=71 // pred_region
          %515 = dma.done [#allocation9], 512
        $region88: #{tpu_custom_call.1} parent=71 // pred_fallthru
          _
        // Predicated region
        $region89: #{tpu_custom_call.1} parent=71 // pred_check
          %p516 = pneg %p231
        $region90: #{tpu_custom_call.1} parent=71 // pred_check_branch
          %518 = sbr.rel (%p516) target = $region92
        $region91: #{tpu_custom_call.1} parent=71 // pred_region
          %519 = dma.done [#allocation9], 512
        $region92: #{tpu_custom_call.1} parent=71 // pred_fallthru
          _
        %p520 = scmp.lt.s32.totalorder %s37, 1
        %s521 = scalar_select %p520, %s37, 1
        %s522 = smul.addr %s521, 8
        %s523 = smul.addr %s522, 8
        %s524 = scalar_lea.vmem %s0, %s523
        %p525 = pneg %p58
        %p526 = pneg %p55
        %s527 = sand.u32 %s71, 1
        %s528 = scalar_lea.sflag [#allocation3], %s527
        %s529 = sand.u32 %s71, 1
        %s530 = smul.addr %s529, 64
        %s531 = scalar_lea.vmem [#allocation2], %s530
        %p532 = pneg %p84
        %p533 = pneg %p81
        %p534 = pneg %p105
        %p535 = pneg %p102
        %p536 = pneg %p126
        %p537 = pneg %p123
        %p538 = pneg %p147
        %p539 = pneg %p144
        %p540 = pneg %p168
        %p541 = pneg %p165
        %p542 = pneg %p189
        %p543 = pneg %p186
        %p544 = pneg %p210
        %p545 = pneg %p207
        %p546 = pneg %p231
        %p547 = pneg %p228
        %p548 = pneg %p252
        %p549 = pneg %p249
        %p550 = pneg %p273
        %p551 = pneg %p270
        %p552 = pneg %p294
        %p553 = pneg %p291
        %p554 = pneg %p315
        %p555 = pneg %p312
        %p556 = pneg %p341
        %p557 = pneg %p338
        %s558 = sand.u32 %s328, 1
        %s559 = scalar_lea.sflag [#allocation4], %s558
        %s560 = sand.u32 %s328, 1
        %s561 = smul.addr %s560, 64
        %s562 = scalar_lea.vmem [#allocation11], %s561
        %p563 = pneg %p367
        %p564 = pneg %p364
        %s565 = sand.u32 %s354, 1
        %s566 = scalar_lea.sflag [#allocation13], %s565
        %s567 = sand.u32 %s354, 1
        %s568 = smul.addr %s567, 64
        %s569 = scalar_lea.vmem [#allocation12], %s568
        %p570 = scmp.lt.s32.totalorder %s37, 1
        %s571 = scalar_select %p570, %s37, 1
        %s572 = smul.addr %s571, 8
        %s573 = smul.addr %s572, 8
        %s574 = scalar_lea.vmem %s0, %s573
        %v576 = vld [vmem:[%s574] sm:$0xff]
        %v577 = vld [vmem:[%s574 + $0x8] sm:$0xff]
        %v578 = vld [vmem:[%s574 + $0x10] sm:$0xff]
        %v579 = vld [vmem:[%s574 + $0x18] sm:$0xff]
        %v580 = vld [vmem:[%s574 + $0x20] sm:$0xff]
        %v581 = vld [vmem:[%s574 + $0x28] sm:$0xff]
        %v582 = vld [vmem:[%s574 + $0x30] sm:$0xff]
        %v583 = vld [vmem:[%s574 + $0x38] sm:$0xff]
        %v584 = vld [vmem:[%s499] sm:$0xff]
        %v585 = vld [vmem:[%s499 + $0x8] sm:$0xff]
        %v586 = vld [vmem:[%s499 + $0x10] sm:$0xff]
        %v587 = vld [vmem:[%s499 + $0x18] sm:$0xff]
        %v588 = vld [vmem:[%s499 + $0x20] sm:$0xff]
        %v589 = vld [vmem:[%s499 + $0x28] sm:$0xff]
        %v590 = vld [vmem:[%s499 + $0x30] sm:$0xff]
        %v591 = vld [vmem:[%s499 + $0x38] sm:$0xff]
        %592 = vxpose.xlu0.b32.start [1/16] %v576, 128
        %593 = vxpose.xlu0.b32.cont [2/16] %v577, 128
        %594 = vxpose.xlu0.b32.cont [3/16] %v578, 128
        %595 = vxpose.xlu0.b32.cont [4/16] %v579, 128
        %596 = vxpose.xlu0.b32.cont [5/16] %v580, 128
        %597 = vxpose.xlu0.b32.cont [6/16] %v581, 128
        %598 = vxpose.xlu0.b32.cont [7/16] %v582, 128
        %599 = vxpose.xlu0.b32.cont [8/16] %v583, 128
        %600 = vxpose.xlu0.b32.cont [9/16] 0.0, 128
        %601 = vxpose.xlu0.b32.cont [10/16] 0.0, 128
        %602 = vxpose.xlu0.b32.cont [11/16] 0.0, 128
        %603 = vxpose.xlu0.b32.cont [12/16] 0.0, 128
        %604 = vxpose.xlu0.b32.cont [13/16] 0.0, 128
        %605 = vxpose.xlu0.b32.cont [14/16] 0.0, 128
        %606 = vxpose.xlu0.b32.cont [15/16] 0.0, 128
        %607 = vxpose.xlu0.b32.end [16/16] 0.0, 128
        %v608 = vpop.trf.xlu0
        %v609 = vpop.trf.xlu0
        %v610 = vpop.trf.xlu0
        %v611 = vpop.trf.xlu0
        %v612 = vpop.trf.xlu0
        %v613 = vpop.trf.xlu0
        %v614 = vpop.trf.xlu0
        %v615 = vpop.trf.xlu0
        %v616 = vpop.trf.xlu0
        %v617 = vpop.trf.xlu0
        %v618 = vpop.trf.xlu0
        %v619 = vpop.trf.xlu0
        %v620 = vpop.trf.xlu0
        %v621 = vpop.trf.xlu0
        %v622 = vpop.trf.xlu0
        %v623 = vpop.trf.xlu0
        %624 = vxpose.xlu0.b32.start [1/16] %v584, 128
        %625 = vxpose.xlu0.b32.cont [2/16] %v585, 128
        %626 = vxpose.xlu0.b32.cont [3/16] %v586, 128
        %627 = vxpose.xlu0.b32.cont [4/16] %v587, 128
        %628 = vxpose.xlu0.b32.cont [5/16] %v588, 128
        %629 = vxpose.xlu0.b32.cont [6/16] %v589, 128
        %630 = vxpose.xlu0.b32.cont [7/16] %v590, 128
        %631 = vxpose.xlu0.b32.cont [8/16] %v591, 128
        %632 = vxpose.xlu0.b32.cont [9/16] 0.0, 128
        %633 = vxpose.xlu0.b32.cont [10/16] 0.0, 128
        %634 = vxpose.xlu0.b32.cont [11/16] 0.0, 128
        %635 = vxpose.xlu0.b32.cont [12/16] 0.0, 128
        %636 = vxpose.xlu0.b32.cont [13/16] 0.0, 128
        %637 = vxpose.xlu0.b32.cont [14/16] 0.0, 128
        %638 = vxpose.xlu0.b32.cont [15/16] 0.0, 128
        %639 = vxpose.xlu0.b32.end [16/16] 0.0, 128
        %v640 = vpop.trf.xlu0
        %v641 = vpop.trf.xlu0
        %v642 = vpop.trf.xlu0
        %v643 = vpop.trf.xlu0
        %v644 = vpop.trf.xlu0
        %v645 = vpop.trf.xlu0
        %v646 = vpop.trf.xlu0
        %v647 = vpop.trf.xlu0
        %v648 = vpop.trf.xlu0
        %v649 = vpop.trf.xlu0
        %v650 = vpop.trf.xlu0
        %v651 = vpop.trf.xlu0
        %v652 = vpop.trf.xlu0
        %v653 = vpop.trf.xlu0
        %v654 = vpop.trf.xlu0
        %v655 = vpop.trf.xlu0
        %v656 = vpack.c.bf16 %v577, %v576
        %v657 = vpack.c.bf16 %v585, %v584
        %v658 = vpack.c.bf16 %v579, %v578
        %v659 = vpack.c.bf16 %v587, %v586
        %v660 = vpack.c.bf16 %v581, %v580
        %v661 = vpack.c.bf16 %v589, %v588
        %v662 = vpack.c.bf16 %v583, %v582
        %v663 = vpack.c.bf16 %v591, %v590
        %v664 = vpack.c.bf16 %v609, %v608
        %v665 = vpack.c.bf16 %v611, %v610
        %v666 = vpack.c.bf16 %v613, %v612
        %v667 = vpack.c.bf16 %v615, %v614
        %v668 = vpack.c.bf16 %v617, %v616
        %v669 = vpack.c.bf16 %v619, %v618
        %v670 = vpack.c.bf16 %v621, %v620
        %v671 = vpack.c.bf16 %v623, %v622
        %v672 = vpack.c.bf16 %v641, %v640
        %v673 = vpack.c.bf16 %v643, %v642
        %v674 = vpack.c.bf16 %v645, %v644
        %v675 = vpack.c.bf16 %v647, %v646
        %v676 = vpack.c.bf16 %v649, %v648
        %v677 = vpack.c.bf16 %v651, %v650
        %v678 = vld [vmem:[#allocation5] sm:$0xf]
        %v679 = vld [vmem:[#allocation5 + $0x4] sm:$0xf]
        %v680 = vld [vmem:[#allocation5 + $0x8] sm:$0xf]
        %v681 = vld [vmem:[#allocation5 + $0xc] sm:$0xf]
        %v682 = vld [vmem:[#allocation5 + $0x10] sm:$0xf]
        %v683 = vld [vmem:[#allocation5 + $0x14] sm:$0xf]
        %v684 = vld [vmem:[#allocation5 + $0x18] sm:$0xf]
        %v685 = vld [vmem:[#allocation5 + $0x1c] sm:$0xf]
        %v686 = vld [vmem:[%s3] sm:$0x1]
        %v688 = vlaneseq
        %v689 = vshrl.u32 %v688, 7
        %v690 = vsub.s32 0, %v689
        %v691 = vrot.slane %v686, %v690
        %v701 = vunpack.c.l.b16 %v678
        %v702 = vunpack.c.l.b16 %v679
        %v703 = vunpack.c.l.b16 %v680
        %v704 = vunpack.c.l.b16 %v681
        %v705 = vunpack.c.l.b16 %v682
        %v706 = vunpack.c.l.b16 %v683
        %v707 = vunpack.c.l.b16 %v684
        %v708 = vunpack.c.l.b16 %v685
        %v709 = vpack.c.b16 %v702, %v701
        %v710 = vpack.c.b16 %v704, %v703
        %v711 = vpack.c.b16 %v706, %v705
        %v712 = vpack.c.b16 %v708, %v707
        %vm717 = vcmask 523264
        %v719 = vsel %vm717, %v664, 0
        %v722 = vsel %vm717, %v665, 0
        %v725 = vsel %vm717, %v666, 0
        %v728 = vsel %vm717, %v667, 0
        %v731 = vsel %vm717, %v668, 0
        %v734 = vsel %vm717, %v669, 0
        %v737 = vsel %vm717, %v670, 0
        %v740 = vsel %vm717, %v671, 0
        %v743 = vsel %vm717, %v672, 0
        %v746 = vsel %vm717, %v673, 0
        %v749 = vsel %vm717, %v674, 0
        %v752 = vsel %vm717, %v675, 0
        %v755 = vsel %vm717, %v676, 0
        %v758 = vsel %vm717, %v677, 0
        %760 = vmatprep.subr.bf16.mxu0 0
        %761 = vmatpush1.bf16.msra.mxu0 %v709
        %762 = vmatprep.subr.bf16.mxu0 0
        %763 = vmatpush1.bf16.msra.mxu0 %v710
        %764 = vmatprep.subr.bf16.mxu0 0
        %765 = vmatpush1.bf16.msra.mxu0 %v711
        %766 = vmatprep.subr.bf16.mxu0 0
        %767 = vmatpush1.bf16.msra.mxu0 %v712
        %768 = vmatprep.subr.bf16.mxu0 0
        %769 = vmatpush1.bf16.msra.mxu0 0
        %770 = vmatprep.subr.bf16.mxu0 0
        %771 = vmatpush1.bf16.msra.mxu0 0
        %772 = vmatprep.subr.bf16.mxu0 0
        %773 = vmatpush1.bf16.msra.mxu0 0
        %774 = vmatprep.subr.bf16.mxu0 0
        %775 = vmatpush1.bf16.msra.mxu0 0
        %776 = vmatprep.subr.bf16.mxu0 0
        %777 = vmatpush1.bf16.msra.mxu0 0
        %778 = vmatprep.subr.bf16.mxu0 0
        %779 = vmatpush1.bf16.msra.mxu0 0
        %780 = vmatprep.subr.bf16.mxu0 0
        %781 = vmatpush1.bf16.msra.mxu0 0
        %782 = vmatprep.subr.bf16.mxu0 0
        %783 = vmatpush1.bf16.msra.mxu0 0
        %784 = vmatprep.subr.bf16.mxu0 0
        %785 = vmatpush1.bf16.msra.mxu0 0
        %786 = vmatprep.subr.bf16.mxu0 0
        %787 = vmatpush1.bf16.msra.mxu0 0
        %788 = vmatprep.subr.bf16.mxu0 0
        %789 = vmatpush1.bf16.msra.mxu0 0
        %790 = vmatprep.subr.bf16.mxu0 0
        %791 = vmatpush1.bf16.msra.mxu0 0
        %792 = vmatprep.mubr.bf16.mxu0 0
        %793 = vmatmul.mubr.bf16.gmra.mrb[0].mxu0 %v719
        %v794 = vpop.f32.mrb[0].mxu0
        %v795 = vadd.f32 %v691, %v794
        %v796 = vpop.f32.mrb[0].mxu0
        %v797 = vpop.f32.mrb[0].mxu0
        %v798 = vadd.f32 %v691, %v797
        %v799 = vpop.f32.mrb[0].mxu0
        %800 = vmatprep.mubr.bf16.mxu0 0
        %801 = vmatmul.mubr.bf16.gmra.mrb[0].mxu0 %v722
        %v802 = vpop.f32.mrb[0].mxu0
        %v803 = vadd.f32 %v691, %v802
        %v804 = vpop.f32.mrb[0].mxu0
        %v805 = vpop.f32.mrb[0].mxu0
        %v806 = vadd.f32 %v691, %v805
        %v807 = vpop.f32.mrb[0].mxu0
        %808 = vmatprep.mubr.bf16.mxu0 0
        %809 = vmatmul.mubr.bf16.gmra.mrb[0].mxu0 %v725
        %v810 = vpop.f32.mrb[0].mxu0
        %v811 = vadd.f32 %v691, %v810
        %v812 = vpop.f32.mrb[0].mxu0
        %v813 = vpop.f32.mrb[0].mxu0
        %v814 = vadd.f32 %v691, %v813
        %v815 = vpop.f32.mrb[0].mxu0
        %816 = vmatprep.mubr.bf16.mxu0 0
        %817 = vmatmul.mubr.bf16.gmra.mrb[0].mxu0 %v728
        %v818 = vpop.f32.mrb[0].mxu0
        %v819 = vadd.f32 %v691, %v818
        %v820 = vpop.f32.mrb[0].mxu0
        %v821 = vpop.f32.mrb[0].mxu0
        %v822 = vadd.f32 %v691, %v821
        %v823 = vpop.f32.mrb[0].mxu0
        %824 = vmatprep.mubr.bf16.mxu0 0
        %825 = vmatmul.mubr.bf16.gmra.mrb[0].mxu0 %v731
        %v826 = vpop.f32.mrb[0].mxu0
        %v827 = vadd.f32 %v691, %v826
        %v828 = vpop.f32.mrb[0].mxu0
        %v829 = vpop.f32.mrb[0].mxu0
        %v830 = vadd.f32 %v691, %v829
        %v831 = vpop.f32.mrb[0].mxu0
        %832 = vmatprep.mubr.bf16.mxu0 0
        %833 = vmatmul.mubr.bf16.gmra.mrb[0].mxu0 %v734
        %v834 = vpop.f32.mrb[0].mxu0
        %v835 = vadd.f32 %v691, %v834
        %v836 = vpop.f32.mrb[0].mxu0
        %v837 = vpop.f32.mrb[0].mxu0
        %v838 = vadd.f32 %v691, %v837
        %v839 = vpop.f32.mrb[0].mxu0
        %840 = vmatprep.mubr.bf16.mxu0 0
        %841 = vmatmul.mubr.bf16.gmra.mrb[0].mxu0 %v737
        %v842 = vpop.f32.mrb[0].mxu0
        %v843 = vadd.f32 %v691, %v842
        %v844 = vpop.f32.mrb[0].mxu0
        %v845 = vpop.f32.mrb[0].mxu0
        %v846 = vadd.f32 %v691, %v845
        %v847 = vpop.f32.mrb[0].mxu0
        %848 = vmatprep.mubr.bf16.mxu0 0
        %849 = vmatmul.mubr.bf16.gmra.mrb[0].mxu0 %v740
        %v850 = vpop.f32.mrb[0].mxu0
        %v851 = vadd.f32 %v691, %v850
        %v852 = vpop.f32.mrb[0].mxu0
        %v853 = vpop.f32.mrb[0].mxu0
        %v854 = vadd.f32 %v691, %v853
        %v855 = vpop.f32.mrb[0].mxu0
        %856 = vmatprep.mubr.bf16.mxu0 0
        %857 = vmatmul.mubr.bf16.gmra.mrb[0].mxu0 %v743
        %v858 = vpop.f32.mrb[0].mxu0
        %v859 = vadd.f32 %v691, %v858
        %v860 = vpop.f32.mrb[0].mxu0
        %v861 = vpop.f32.mrb[0].mxu0
        %v862 = vadd.f32 %v691, %v861
        %v863 = vpop.f32.mrb[0].mxu0
        %864 = vmatprep.mubr.bf16.mxu0 0
        %865 = vmatmul.mubr.bf16.gmra.mrb[0].mxu0 %v746
        %v866 = vpop.f32.mrb[0].mxu0
        %v867 = vadd.f32 %v691, %v866
        %v868 = vpop.f32.mrb[0].mxu0
        %v869 = vpop.f32.mrb[0].mxu0
        %v870 = vadd.f32 %v691, %v869
        %v871 = vpop.f32.mrb[0].mxu0
        %872 = vmatprep.mubr.bf16.mxu0 0
        %873 = vmatmul.mubr.bf16.gmra.mrb[0].mxu0 %v749
        %v874 = vpop.f32.mrb[0].mxu0
        %v875 = vadd.f32 %v691, %v874
        %v876 = vpop.f32.mrb[0].mxu0
        %v877 = vpop.f32.mrb[0].mxu0
        %v878 = vadd.f32 %v691, %v877
        %v879 = vpop.f32.mrb[0].mxu0
        %880 = vmatprep.mubr.bf16.mxu0 0
        %881 = vmatmul.mubr.bf16.gmra.mrb[0].mxu0 %v752
        %v882 = vpop.f32.mrb[0].mxu0
        %v883 = vadd.f32 %v691, %v882
        %v884 = vpop.f32.mrb[0].mxu0
        %v885 = vpop.f32.mrb[0].mxu0
        %v886 = vadd.f32 %v691, %v885
        %v887 = vpop.f32.mrb[0].mxu0
        %888 = vmatprep.mubr.bf16.mxu0 0
        %889 = vmatmul.mubr.bf16.gmra.mrb[0].mxu0 %v755
        %v890 = vpop.f32.mrb[0].mxu0
        %v891 = vadd.f32 %v691, %v890
        %v892 = vpop.f32.mrb[0].mxu0
        %v893 = vpop.f32.mrb[0].mxu0
        %v894 = vadd.f32 %v691, %v893
        %v895 = vpop.f32.mrb[0].mxu0
        %896 = vmatprep.mubr.bf16.mxu0 0
        %897 = vmatmul.mubr.bf16.gmra.mrb[0].mxu0 %v758
        %v898 = vpop.f32.mrb[0].mxu0
        %v899 = vadd.f32 %v691, %v898
        %v900 = vpop.f32.mrb[0].mxu0
        %v901 = vpop.f32.mrb[0].mxu0
        %v902 = vadd.f32 %v691, %v901
        %v903 = vpop.f32.mrb[0].mxu0
        %904 = vdwg.mxu0
        %v905 = vld [vmem:[#allocation7] sm:$0xf]
        %v906 = vld [vmem:[#allocation7 + $0x4] sm:$0xf]
        %v907 = vld [vmem:[#allocation7 + $0x8] sm:$0xf]
        %v908 = vld [vmem:[#allocation7 + $0xc] sm:$0xf]
        %v909 = vld [vmem:[#allocation7 + $0x10] sm:$0xf]
        %v910 = vld [vmem:[#allocation7 + $0x14] sm:$0xf]
        %v911 = vld [vmem:[#allocation7 + $0x18] sm:$0xf]
        %v912 = vld [vmem:[#allocation7 + $0x1c] sm:$0xf]
        %v913 = vld [vmem:[%s5] sm:$0xff]
        %v914 = vld [vmem:[%s5 + $0x8] sm:$0xff]
        %v915 = vld [vmem:[%s5 + $0x10] sm:$0xff]
        %v916 = vld [vmem:[%s5 + $0x18] sm:$0xff]
        %v917 = vld [vmem:[%s5 + $0x20] sm:$0xff]
        %v918 = vld [vmem:[%s5 + $0x28] sm:$0xff]
        %v919 = vld [vmem:[%s5 + $0x30] sm:$0xff]
        %v920 = vld [vmem:[%s5 + $0x38] sm:$0xff]
        %922 = vset.pattern.permute.xlu0 0
        %923 = vperm.xlu0 %922, %v913
        %v924 = vpop.permute.xlu0 %923
        %927 = vset.pattern.permute.xlu0 0
        %928 = vperm.xlu0 %927, %v914
        %v929 = vpop.permute.xlu0 %928
        %932 = vset.pattern.permute.xlu0 0
        %933 = vperm.xlu0 %932, %v915
        %v934 = vpop.permute.xlu0 %933
        %937 = vset.pattern.permute.xlu0 0
        %938 = vperm.xlu0 %937, %v916
        %v939 = vpop.permute.xlu0 %938
        %942 = vset.pattern.permute.xlu0 0
        %943 = vperm.xlu0 %942, %v917
        %v944 = vpop.permute.xlu0 %943
        %947 = vset.pattern.permute.xlu0 0
        %948 = vperm.xlu0 %947, %v918
        %v949 = vpop.permute.xlu0 %948
        %952 = vset.pattern.permute.xlu0 0
        %953 = vperm.xlu0 %952, %v919
        %v954 = vpop.permute.xlu0 %953
        %957 = vset.pattern.permute.xlu0 0
        %958 = vperm.xlu0 %957, %v920
        %v959 = vpop.permute.xlu0 %958
        %v969 = vunpack.c.l.b16 %v905
        %v970 = vunpack.c.l.b16 %v906
        %v971 = vunpack.c.l.b16 %v907
        %v972 = vunpack.c.l.b16 %v908
        %v973 = vunpack.c.l.b16 %v909
        %v974 = vunpack.c.l.b16 %v910
        %v975 = vunpack.c.l.b16 %v911
        %v976 = vunpack.c.l.b16 %v912
        %v977 = vpack.c.b16 %v970, %v969
        %v978 = vpack.c.b16 %v972, %v971
        %v979 = vpack.c.b16 %v974, %v973
        %v980 = vpack.c.b16 %v976, %v975
        %v982 = vsel %vm717, %v977, 0
        %v985 = vsel %vm717, %v978, 0
        %v988 = vsel %vm717, %v979, 0
        %v991 = vsel %vm717, %v980, 0
        %993 = vmatprep.subr.bf16.mxu0 %v657
        %994 = vmatpush1.bf16.msra.mxu0 %v656
        %995 = vmatprep.subr.bf16.mxu0 %v659
        %996 = vmatpush1.bf16.msra.mxu0 %v658
        %997 = vmatprep.subr.bf16.mxu0 %v661
        %998 = vmatpush1.bf16.msra.mxu0 %v660
        %999 = vmatprep.subr.bf16.mxu0 %v663
        %1000 = vmatpush1.bf16.msra.mxu0 %v662
        %1001 = vmatprep.subr.bf16.mxu0 0
        %1002 = vmatpush1.bf16.msra.mxu0 0
        %1003 = vmatprep.subr.bf16.mxu0 0
        %1004 = vmatpush1.bf16.msra.mxu0 0
        %1005 = vmatprep.subr.bf16.mxu0 0
        %1006 = vmatpush1.bf16.msra.mxu0 0
        %1007 = vmatprep.subr.bf16.mxu0 0
        %1008 = vmatpush1.bf16.msra.mxu0 0
        %1009 = vmatprep.subr.bf16.mxu0 0
        %1010 = vmatpush1.bf16.msra.mxu0 0
        %1011 = vmatprep.subr.bf16.mxu0 0
        %1012 = vmatpush1.bf16.msra.mxu0 0
        %1013 = vmatprep.subr.bf16.mxu0 0
        %1014 = vmatpush1.bf16.msra.mxu0 0
        %1015 = vmatprep.subr.bf16.mxu0 0
        %1016 = vmatpush1.bf16.msra.mxu0 0
        %1017 = vmatprep.subr.bf16.mxu0 0
        %1018 = vmatpush1.bf16.msra.mxu0 0
        %1019 = vmatprep.subr.bf16.mxu0 0
        %1020 = vmatpush1.bf16.msra.mxu0 0
        %1021 = vmatprep.subr.bf16.mxu0 0
        %1022 = vmatpush1.bf16.msra.mxu0 0
        %1023 = vmatprep.subr.bf16.mxu0 0
        %1024 = vmatpush1.bf16.msra.mxu0 0
        %1025 = vmatprep.mubr.bf16.mxu0 0
        %1026 = vmatmul.mubr.bf16.gmra.mrb[0].mxu0 %v982
        %v1027 = vpop.f32.mrb[0].mxu0
        %v1028 = vadd.f32 %v924, %v1027
        %v1029 = vpop.f32.mrb[0].mxu0
        %v1030 = vadd.f32 %v924, %v1029
        %v1031 = vpop.f32.mrb[0].mxu0
        %v1032 = vadd.f32 %v929, %v1031
        %v1033 = vpop.f32.mrb[0].mxu0
        %v1034 = vadd.f32 %v929, %v1033
        %1035 = vmatprep.mubr.bf16.mxu0 0
        %1036 = vmatmul.mubr.bf16.gmra.mrb[0].mxu0 %v985
        %v1037 = vpop.f32.mrb[0].mxu0
        %v1038 = vadd.f32 %v934, %v1037
        %v1039 = vpop.f32.mrb[0].mxu0
        %v1040 = vadd.f32 %v934, %v1039
        %v1041 = vpop.f32.mrb[0].mxu0
        %v1042 = vadd.f32 %v939, %v1041
        %v1043 = vpop.f32.mrb[0].mxu0
        %v1044 = vadd.f32 %v939, %v1043
        %1045 = vmatprep.mubr.bf16.mxu0 0
        %1046 = vmatmul.mubr.bf16.gmra.mrb[0].mxu0 %v988
        %v1047 = vpop.f32.mrb[0].mxu0
        %v1048 = vadd.f32 %v944, %v1047
        %v1049 = vpop.f32.mrb[0].mxu0
        %v1050 = vadd.f32 %v944, %v1049
        %v1051 = vpop.f32.mrb[0].mxu0
        %v1052 = vadd.f32 %v949, %v1051
        %v1053 = vpop.f32.mrb[0].mxu0
        %v1054 = vadd.f32 %v949, %v1053
        %1055 = vmatprep.mubr.bf16.mxu0 0
        %1056 = vmatmul.mubr.bf16.gmra.mrb[0].mxu0 %v991
        %v1057 = vpop.f32.mrb[0].mxu0
        %v1058 = vadd.f32 %v954, %v1057
        %v1059 = vpop.f32.mrb[0].mxu0
        %v1060 = vadd.f32 %v954, %v1059
        %v1061 = vpop.f32.mrb[0].mxu0
        %v1062 = vadd.f32 %v959, %v1061
        %v1063 = vpop.f32.mrb[0].mxu0
        %v1064 = vadd.f32 %v959, %v1063
        %1065 = vdwg.mxu0
        %v1066 = vpack.c.bf16 %v1032, %v1028
        %v1067 = vpack.c.bf16 %v1034, %v1030
        %v1068 = vpack.c.bf16 %v1042, %v1038
        %v1069 = vpack.c.bf16 %v1044, %v1040
        %v1070 = vpack.c.bf16 %v1052, %v1048
        %v1071 = vpack.c.bf16 %v1054, %v1050
        %v1072 = vpack.c.bf16 %v1062, %v1058
        %v1073 = vpack.c.bf16 %v1064, %v1060
        %v1074 = vpack.c.bf16 %v798, %v795
        %v1075 = vpack.c.bf16 %v806, %v803
        %v1076 = vpack.c.bf16 %v814, %v811
        %v1077 = vpack.c.bf16 %v822, %v819
        %v1078 = vpack.c.bf16 %v830, %v827
        %v1079 = vpack.c.bf16 %v838, %v835
        %v1080 = vpack.c.bf16 %v846, %v843
        %v1081 = vpack.c.bf16 %v854, %v851
        %v1082 = vpack.c.bf16 %v862, %v859
        %v1083 = vpack.c.bf16 %v870, %v867
        %v1084 = vpack.c.bf16 %v878, %v875
        %v1085 = vpack.c.bf16 %v886, %v883
        %v1086 = vpack.c.bf16 %v894, %v891
        %v1087 = vpack.c.bf16 %v902, %v899
        %v1088 = vld [vmem:[#allocation8] sm:$0xf]
        %v1089 = vld [vmem:[#allocation8 + $0x4] sm:$0xf]
        %v1090 = vld [vmem:[#allocation8 + $0x8] sm:$0xf]
        %v1091 = vld [vmem:[#allocation8 + $0xc] sm:$0xf]
        %v1092 = vld [vmem:[#allocation8 + $0x10] sm:$0xf]
        %v1093 = vld [vmem:[#allocation8 + $0x14] sm:$0xf]
        %v1094 = vld [vmem:[#allocation8 + $0x18] sm:$0xf]
        %v1095 = vld [vmem:[#allocation8 + $0x1c] sm:$0xf]
        %vm1096 = vcmask 130048
        %v1098 = vsel %vm1096, %v1074, 0
        %v1101 = vsel %vm1096, %v1075, 0
        %v1104 = vsel %vm1096, %v1076, 0
        %v1107 = vsel %vm1096, %v1077, 0
        %v1110 = vsel %vm1096, %v1078, 0
        %v1113 = vsel %vm1096, %v1079, 0
        %v1116 = vsel %vm1096, %v1080, 0
        %v1119 = vsel %vm1096, %v1081, 0
        %1121 = vmatprep.subr.bf16.mxu0 0
        %1122 = vmatpush1.bf16.msra.mxu0 %v1067
        %1123 = vmatprep.subr.bf16.mxu0 0
        %1124 = vmatpush1.bf16.msra.mxu0 0
        %1125 = vmatprep.subr.bf16.mxu0 0
        %1126 = vmatpush1.bf16.msra.mxu0 0
        %1127 = vmatprep.subr.bf16.mxu0 0
        %1128 = vmatpush1.bf16.msra.mxu0 0
        %1129 = vmatprep.subr.bf16.mxu0 0
        %1130 = vmatpush1.bf16.msra.mxu0 0
        %1131 = vmatprep.subr.bf16.mxu0 0
        %1132 = vmatpush1.bf16.msra.mxu0 0
        %1133 = vmatprep.subr.bf16.mxu0 0
        %1134 = vmatpush1.bf16.msra.mxu0 0
        %1135 = vmatprep.subr.bf16.mxu0 0
        %1136 = vmatpush1.bf16.msra.mxu0 0
        %1137 = vmatprep.subr.bf16.mxu0 0
        %1138 = vmatpush1.bf16.msra.mxu0 0
        %1139 = vmatprep.subr.bf16.mxu0 0
        %1140 = vmatpush1.bf16.msra.mxu0 0
        %1141 = vmatprep.subr.bf16.mxu0 0
        %1142 = vmatpush1.bf16.msra.mxu0 0
        %1143 = vmatprep.subr.bf16.mxu0 0
        %1144 = vmatpush1.bf16.msra.mxu0 0
        %1145 = vmatprep.subr.bf16.mxu0 0
        %1146 = vmatpush1.bf16.msra.mxu0 0
        %1147 = vmatprep.subr.bf16.mxu0 0
        %1148 = vmatpush1.bf16.msra.mxu0 0
        %1149 = vmatprep.subr.bf16.mxu0 0
        %1150 = vmatpush1.bf16.msra.mxu0 0
        %1151 = vmatprep.subr.bf16.mxu0 0
        %1152 = vmatpush1.bf16.msra.mxu0 0
        %1153 = vmatprep.mubr.bf16.mxu0 0
        %1154 = vmatmul.mubr.bf16.gmra.mrb[0].mxu0 %v1098
        %v1155 = vpop.f32.mrb[0].mxu0
        %v1156 = vadd.f32 0.0, %v1155
        %v1157 = vpop.f32.mrb[0].mxu0
        %v1158 = vpop.f32.mrb[0].mxu0
        %v1159 = vadd.f32 0.0, %v1158
        %v1160 = vpop.f32.mrb[0].mxu0
        %1161 = vmatprep.mubr.bf16.mxu0 0
        %1162 = vmatmul.mubr.bf16.gmra.mrb[0].mxu0 %v1101
        %v1163 = vpop.f32.mrb[0].mxu0
        %v1164 = vadd.f32 0.0, %v1163
        %v1165 = vpop.f32.mrb[0].mxu0
        %v1166 = vpop.f32.mrb[0].mxu0
        %v1167 = vadd.f32 0.0, %v1166
        %v1168 = vpop.f32.mrb[0].mxu0
        %1169 = vmatprep.mubr.bf16.mxu0 0
        %1170 = vmatmul.mubr.bf16.gmra.mrb[0].mxu0 %v1104
        %v1171 = vpop.f32.mrb[0].mxu0
        %v1172 = vadd.f32 0.0, %v1171
        %v1173 = vpop.f32.mrb[0].mxu0
        %v1174 = vpop.f32.mrb[0].mxu0
        %v1175 = vadd.f32 0.0, %v1174
        %v1176 = vpop.f32.mrb[0].mxu0
        %1177 = vmatprep.mubr.bf16.mxu0 0
        %1178 = vmatmul.mubr.bf16.gmra.mrb[0].mxu0 %v1107
        %v1179 = vpop.f32.mrb[0].mxu0
        %v1180 = vadd.f32 0.0, %v1179
        %v1181 = vpop.f32.mrb[0].mxu0
        %v1182 = vpop.f32.mrb[0].mxu0
        %v1183 = vadd.f32 0.0, %v1182
        %v1184 = vpop.f32.mrb[0].mxu0
        %1185 = vmatprep.mubr.bf16.mxu0 0
        %1186 = vmatmul.mubr.bf16.gmra.mrb[0].mxu0 %v1110
        %v1187 = vpop.f32.mrb[0].mxu0
        %v1188 = vadd.f32 0.0, %v1187
        %v1189 = vpop.f32.mrb[0].mxu0
        %v1190 = vpop.f32.mrb[0].mxu0
        %v1191 = vadd.f32 0.0, %v1190
        %v1192 = vpop.f32.mrb[0].mxu0
        %1193 = vmatprep.mubr.bf16.mxu0 0
        %1194 = vmatmul.mubr.bf16.gmra.mrb[0].mxu0 %v1113
        %v1195 = vpop.f32.mrb[0].mxu0
        %v1196 = vadd.f32 0.0, %v1195
        %v1197 = vpop.f32.mrb[0].mxu0
        %v1198 = vpop.f32.mrb[0].mxu0
        %v1199 = vadd.f32 0.0, %v1198
        %v1200 = vpop.f32.mrb[0].mxu0
        %1201 = vmatprep.mubr.bf16.mxu0 0
        %1202 = vmatmul.mubr.bf16.gmra.mrb[0].mxu0 %v1116
        %v1203 = vpop.f32.mrb[0].mxu0
        %v1204 = vadd.f32 0.0, %v1203
        %v1205 = vpop.f32.mrb[0].mxu0
        %v1206 = vpop.f32.mrb[0].mxu0
        %v1207 = vadd.f32 0.0, %v1206
        %v1208 = vpop.f32.mrb[0].mxu0
        %1209 = vmatprep.mubr.bf16.mxu0 0
        %1210 = vmatmul.mubr.bf16.gmra.mrb[0].mxu0 %v1119
        %v1211 = vpop.f32.mrb[0].mxu0
        %v1212 = vadd.f32 0.0, %v1211
        %v1213 = vpop.f32.mrb[0].mxu0
        %v1214 = vpop.f32.mrb[0].mxu0
        %v1215 = vadd.f32 0.0, %v1214
        %v1216 = vpop.f32.mrb[0].mxu0
        %1217 = vdwg.mxu0
        %vm1218 = vcmask 785408
        %v1219 = vsel %vm1218, %v1156, -inf
        %1220 = vmax.xlane.f32.xlu0 %v1219
        %v1221 = vpop.xlane.xlu0 %1220
        %v1222 = vsel %vm1218, %v1159, -inf
        %1223 = vmax.xlane.f32.xlu0 %v1222
        %v1224 = vpop.xlane.xlu0 %1223
        %v1225 = vsel %vm1218, %v1164, -inf
        %1226 = vmax.xlane.f32.xlu0 %v1225
        %v1227 = vpop.xlane.xlu0 %1226
        %v1228 = vsel %vm1218, %v1167, -inf
        %1229 = vmax.xlane.f32.xlu0 %v1228
        %v1230 = vpop.xlane.xlu0 %1229
        %v1231 = vsel %vm1218, %v1172, -inf
        %1232 = vmax.xlane.f32.xlu0 %v1231
        %v1233 = vpop.xlane.xlu0 %1232
        %v1234 = vsel %vm1218, %v1175, -inf
        %1235 = vmax.xlane.f32.xlu0 %v1234
        %v1236 = vpop.xlane.xlu0 %1235
        %v1237 = vsel %vm1218, %v1180, -inf
        %1238 = vmax.xlane.f32.xlu0 %v1237
        %v1239 = vpop.xlane.xlu0 %1238
        %v1240 = vsel %vm1218, %v1183, -inf
        %1241 = vmax.xlane.f32.xlu0 %v1240
        %v1242 = vpop.xlane.xlu0 %1241
        %v1243 = vsel %vm1218, %v1188, -inf
        %1244 = vmax.xlane.f32.xlu0 %v1243
        %v1245 = vpop.xlane.xlu0 %1244
        %v1246 = vsel %vm1218, %v1191, -inf
        %1247 = vmax.xlane.f32.xlu0 %v1246
        %v1248 = vpop.xlane.xlu0 %1247
        %v1249 = vsel %vm1218, %v1196, -inf
        %1250 = vmax.xlane.f32.xlu0 %v1249
        %v1251 = vpop.xlane.xlu0 %1250
        %v1252 = vsel %vm1218, %v1199, -inf
        %1253 = vmax.xlane.f32.xlu0 %v1252
        %v1254 = vpop.xlane.xlu0 %1253
        %v1255 = vsel %vm1218, %v1204, -inf
        %1256 = vmax.xlane.f32.xlu0 %v1255
        %v1257 = vpop.xlane.xlu0 %1256
        %v1258 = vsel %vm1218, %v1207, -inf
        %1259 = vmax.xlane.f32.xlu0 %v1258
        %v1260 = vpop.xlane.xlu0 %1259
        %v1261 = vsel %vm1218, %v1212, -inf
        %1262 = vmax.xlane.f32.xlu0 %v1261
        %v1263 = vpop.xlane.xlu0 %1262
        %v1264 = vsel %vm1218, %v1215, -inf
        %1265 = vmax.xlane.f32.xlu0 %v1264
        %v1266 = vpop.xlane.xlu0 %1265
        %v1267 = vsub.f32 %v1156, %v1221
        %v1268 = vsub.f32 %v1159, %v1224
        %v1269 = vsub.f32 %v1164, %v1227
        %v1270 = vsub.f32 %v1167, %v1230
        %v1271 = vsub.f32 %v1172, %v1233
        %v1272 = vsub.f32 %v1175, %v1236
        %v1273 = vsub.f32 %v1180, %v1239
        %v1274 = vsub.f32 %v1183, %v1242
        %v1275 = vsub.f32 %v1188, %v1245
        %v1276 = vsub.f32 %v1191, %v1248
        %v1277 = vsub.f32 %v1196, %v1251
        %v1278 = vsub.f32 %v1199, %v1254
        %v1279 = vsub.f32 %v1204, %v1257
        %v1280 = vsub.f32 %v1207, %v1260
        %v1281 = vsub.f32 %v1212, %v1263
        %v1282 = vsub.f32 %v1215, %v1266
        %v1283 = vmul.f32 %v1267, 1.442695
        %v1284 = vpow.pop %v1283
        %v1285 = vmul.f32 %v1268, 1.442695
        %v1286 = vpow.pop %v1285
        %v1287 = vmul.f32 %v1269, 1.442695
        %v1288 = vpow.pop %v1287
        %v1289 = vmul.f32 %v1270, 1.442695
        %v1290 = vpow.pop %v1289
        %v1291 = vmul.f32 %v1271, 1.442695
        %v1292 = vpow.pop %v1291
        %v1293 = vmul.f32 %v1272, 1.442695
        %v1294 = vpow.pop %v1293
        %v1295 = vmul.f32 %v1273, 1.442695
        %v1296 = vpow.pop %v1295
        %v1297 = vmul.f32 %v1274, 1.442695
        %v1298 = vpow.pop %v1297
        %v1299 = vmul.f32 %v1275, 1.442695
        %v1300 = vpow.pop %v1299
        %v1301 = vmul.f32 %v1276, 1.442695
        %v1302 = vpow.pop %v1301
        %v1303 = vmul.f32 %v1277, 1.442695
        %v1304 = vpow.pop %v1303
        %v1305 = vmul.f32 %v1278, 1.442695
        %v1306 = vpow.pop %v1305
        %v1307 = vmul.f32 %v1279, 1.442695
        %v1308 = vpow.pop %v1307
        %v1309 = vmul.f32 %v1280, 1.442695
        %v1310 = vpow.pop %v1309
        %v1311 = vmul.f32 %v1281, 1.442695
        %v1312 = vpow.pop %v1311
        %v1313 = vmul.f32 %v1282, 1.442695
        %v1314 = vpow.pop %v1313
        %v1315 = vsel %vm1218, %v1284, 0.0
        %1316 = vadd.xlane.f32.xlu0 %v1315
        %v1317 = vpop.xlane.xlu0 %1316
        %v1318 = vsel %vm1218, %v1286, 0.0
        %1319 = vadd.xlane.f32.xlu0 %v1318
        %v1320 = vpop.xlane.xlu0 %1319
        %v1321 = vsel %vm1218, %v1288, 0.0
        %1322 = vadd.xlane.f32.xlu0 %v1321
        %v1323 = vpop.xlane.xlu0 %1322
        %v1324 = vsel %vm1218, %v1290, 0.0
        %1325 = vadd.xlane.f32.xlu0 %v1324
        %v1326 = vpop.xlane.xlu0 %1325
        %v1327 = vsel %vm1218, %v1292, 0.0
        %1328 = vadd.xlane.f32.xlu0 %v1327
        %v1329 = vpop.xlane.xlu0 %1328
        %v1330 = vsel %vm1218, %v1294, 0.0
        %1331 = vadd.xlane.f32.xlu0 %v1330
        %v1332 = vpop.xlane.xlu0 %1331
        %v1333 = vsel %vm1218, %v1296, 0.0
        %1334 = vadd.xlane.f32.xlu0 %v1333
        %v1335 = vpop.xlane.xlu0 %1334
        %v1336 = vsel %vm1218, %v1298, 0.0
        %1337 = vadd.xlane.f32.xlu0 %v1336
        %v1338 = vpop.xlane.xlu0 %1337
        %v1339 = vsel %vm1218, %v1300, 0.0
        %1340 = vadd.xlane.f32.xlu0 %v1339
        %v1341 = vpop.xlane.xlu0 %1340
        %v1342 = vsel %vm1218, %v1302, 0.0
        %1343 = vadd.xlane.f32.xlu0 %v1342
        %v1344 = vpop.xlane.xlu0 %1343
        %v1345 = vsel %vm1218, %v1304, 0.0
        %1346 = vadd.xlane.f32.xlu0 %v1345
        %v1347 = vpop.xlane.xlu0 %1346
        %v1348 = vsel %vm1218, %v1306, 0.0
        %1349 = vadd.xlane.f32.xlu0 %v1348
        %v1350 = vpop.xlane.xlu0 %1349
        %v1351 = vsel %vm1218, %v1308, 0.0
        %1352 = vadd.xlane.f32.xlu0 %v1351
        %v1353 = vpop.xlane.xlu0 %1352
        %v1354 = vsel %vm1218, %v1310, 0.0
        %1355 = vadd.xlane.f32.xlu0 %v1354
        %v1356 = vpop.xlane.xlu0 %1355
        %v1357 = vsel %vm1218, %v1312, 0.0
        %1358 = vadd.xlane.f32.xlu0 %v1357
        %v1359 = vpop.xlane.xlu0 %1358
        %v1360 = vsel %vm1218, %v1314, 0.0
        %1361 = vadd.xlane.f32.xlu0 %v1360
        %v1362 = vpop.xlane.xlu0 %1361
        %v1363 = vrcp.pop %v1317
        %v1364 = vrcp.pop %v1320
        %v1365 = vrcp.pop %v1323
        %v1366 = vrcp.pop %v1326
        %v1367 = vrcp.pop %v1329
        %v1368 = vrcp.pop %v1332
        %v1369 = vrcp.pop %v1335
        %v1370 = vrcp.pop %v1338
        %v1371 = vrcp.pop %v1341
        %v1372 = vrcp.pop %v1344
        %v1373 = vrcp.pop %v1347
        %v1374 = vrcp.pop %v1350
        %v1375 = vrcp.pop %v1353
        %v1376 = vrcp.pop %v1356
        %v1377 = vrcp.pop %v1359
        %v1378 = vrcp.pop %v1362
        %v1379 = vmul.f32 %v1284, %v1363
        %v1380 = vmul.f32 %v1286, %v1364
        %v1381 = vmul.f32 %v1288, %v1365
        %v1382 = vmul.f32 %v1290, %v1366
        %v1383 = vmul.f32 %v1292, %v1367
        %v1384 = vmul.f32 %v1294, %v1368
        %v1385 = vmul.f32 %v1296, %v1369
        %v1386 = vmul.f32 %v1298, %v1370
        %v1387 = vmul.f32 %v1300, %v1371
        %v1388 = vmul.f32 %v1302, %v1372
        %v1389 = vmul.f32 %v1304, %v1373
        %v1390 = vmul.f32 %v1306, %v1374
        %v1391 = vmul.f32 %v1308, %v1375
        %v1392 = vmul.f32 %v1310, %v1376
        %v1393 = vmul.f32 %v1312, %v1377
        %v1394 = vmul.f32 %v1314, %v1378
        %v1395 = vpack.c.bf16 %v1380, %v1379
        %v1396 = vpack.c.bf16 %v1382, %v1381
        %v1397 = vpack.c.bf16 %v1384, %v1383
        %v1398 = vpack.c.bf16 %v1386, %v1385
        %v1399 = vpack.c.bf16 %v1388, %v1387
        %v1400 = vpack.c.bf16 %v1390, %v1389
        %v1401 = vpack.c.bf16 %v1392, %v1391
        %v1402 = vpack.c.bf16 %v1394, %v1393
        %1409 = vrot.lane.b32.xlu0 %v1082, 64
        %v1410 = vpop.permute.xlu0 %1409
        %1411 = vrot.lane.b32.xlu0 %v1083, 64
        %v1412 = vpop.permute.xlu0 %1411
        %1413 = vrot.lane.b32.xlu0 %v1084, 64
        %v1414 = vpop.permute.xlu0 %1413
        %1415 = vrot.lane.b32.xlu0 %v1085, 64
        %v1416 = vpop.permute.xlu0 %1415
        %1417 = vrot.lane.b32.xlu0 %v1086, 64
        %v1418 = vpop.permute.xlu0 %1417
        %1419 = vrot.lane.b32.xlu0 %v1087, 64
        %v1420 = vpop.permute.xlu0 %1419
        %v1428 = vsel %vm1218, %v1395, 0
        %v1431 = vsel %vm1218, %v1396, 0
        %v1434 = vsel %vm1218, %v1397, 0
        %v1437 = vsel %vm1218, %v1398, 0
        %v1440 = vsel %vm1218, %v1399, 0
        %v1443 = vsel %vm1218, %v1400, 0
        %v1446 = vsel %vm1218, %v1401, 0
        %v1449 = vsel %vm1218, %v1402, 0
        %1451 = vmatprep.subr.bf16.mxu0 0
        %1452 = vmatpush1.bf16.msra.mxu0 %v1410
        %1453 = vmatprep.subr.bf16.mxu0 0
        %1454 = vmatpush1.bf16.msra.mxu0 %v1412
        %1455 = vmatprep.subr.bf16.mxu0 0
        %1456 = vmatpush1.bf16.msra.mxu0 %v1414
        %1457 = vmatprep.subr.bf16.mxu0 0
        %1458 = vmatpush1.bf16.msra.mxu0 %v1416
        %1459 = vmatprep.subr.bf16.mxu0 0
        %1460 = vmatpush1.bf16.msra.mxu0 %v1418
        %1461 = vmatprep.subr.bf16.mxu0 0
        %1462 = vmatpush1.bf16.msra.mxu0 %v1420
        %1463 = vmatprep.subr.bf16.mxu0 0
        %1464 = vmatpush1.bf16.msra.mxu0 0
        %1465 = vmatprep.subr.bf16.mxu0 0
        %1466 = vmatpush1.bf16.msra.mxu0 0
        %1467 = vmatprep.subr.bf16.mxu0 0
        %1468 = vmatpush1.bf16.msra.mxu0 0
        %1469 = vmatprep.subr.bf16.mxu0 0
        %1470 = vmatpush1.bf16.msra.mxu0 0
        %1471 = vmatprep.subr.bf16.mxu0 0
        %1472 = vmatpush1.bf16.msra.mxu0 0
        %1473 = vmatprep.subr.bf16.mxu0 0
        %1474 = vmatpush1.bf16.msra.mxu0 0
        %1475 = vmatprep.subr.bf16.mxu0 0
        %1476 = vmatpush1.bf16.msra.mxu0 0
        %1477 = vmatprep.subr.bf16.mxu0 0
        %1478 = vmatpush1.bf16.msra.mxu0 0
        %1479 = vmatprep.subr.bf16.mxu0 0
        %1480 = vmatpush1.bf16.msra.mxu0 0
        %1481 = vmatprep.subr.bf16.mxu0 0
        %1482 = vmatpush1.bf16.msra.mxu0 0
        %1483 = vmatprep.mubr.bf16.mxu0 0
        %1484 = vmatmul.mubr.bf16.gmra.mrb[0].mxu0 %v1428
        %v1485 = vpop.f32.mrb[0].mxu0
        %v1486 = vadd.f32 0.0, %v1485
        %v1487 = vpop.f32.mrb[0].mxu0
        %v1488 = vpop.f32.mrb[0].mxu0
        %v1489 = vadd.f32 0.0, %v1488
        %v1490 = vpop.f32.mrb[0].mxu0
        %1491 = vmatprep.mubr.bf16.mxu0 0
        %1492 = vmatmul.mubr.bf16.gmra.mrb[0].mxu0 %v1431
        %v1493 = vpop.f32.mrb[0].mxu0
        %v1494 = vadd.f32 0.0, %v1493
        %v1495 = vpop.f32.mrb[0].mxu0
        %v1496 = vpop.f32.mrb[0].mxu0
        %v1497 = vadd.f32 0.0, %v1496
        %v1498 = vpop.f32.mrb[0].mxu0
        %1499 = vmatprep.mubr.bf16.mxu0 0
        %1500 = vmatmul.mubr.bf16.gmra.mrb[0].mxu0 %v1434
        %v1501 = vpop.f32.mrb[0].mxu0
        %v1502 = vadd.f32 0.0, %v1501
        %v1503 = vpop.f32.mrb[0].mxu0
        %v1504 = vpop.f32.mrb[0].mxu0
        %v1505 = vadd.f32 0.0, %v1504
        %v1506 = vpop.f32.mrb[0].mxu0
        %1507 = vmatprep.mubr.bf16.mxu0 0
        %1508 = vmatmul.mubr.bf16.gmra.mrb[0].mxu0 %v1437
        %v1509 = vpop.f32.mrb[0].mxu0
        %v1510 = vadd.f32 0.0, %v1509
        %v1511 = vpop.f32.mrb[0].mxu0
        %v1512 = vpop.f32.mrb[0].mxu0
        %v1513 = vadd.f32 0.0, %v1512
        %v1514 = vpop.f32.mrb[0].mxu0
        %1515 = vmatprep.mubr.bf16.mxu0 0
        %1516 = vmatmul.mubr.bf16.gmra.mrb[0].mxu0 %v1440
        %v1517 = vpop.f32.mrb[0].mxu0
        %v1518 = vadd.f32 0.0, %v1517
        %v1519 = vpop.f32.mrb[0].mxu0
        %v1520 = vpop.f32.mrb[0].mxu0
        %v1521 = vadd.f32 0.0, %v1520
        %v1522 = vpop.f32.mrb[0].mxu0
        %1523 = vmatprep.mubr.bf16.mxu0 0
        %1524 = vmatmul.mubr.bf16.gmra.mrb[0].mxu0 %v1443
        %v1525 = vpop.f32.mrb[0].mxu0
        %v1526 = vadd.f32 0.0, %v1525
        %v1527 = vpop.f32.mrb[0].mxu0
        %v1528 = vpop.f32.mrb[0].mxu0
        %v1529 = vadd.f32 0.0, %v1528
        %v1530 = vpop.f32.mrb[0].mxu0
        %1531 = vmatprep.mubr.bf16.mxu0 0
        %1532 = vmatmul.mubr.bf16.gmra.mrb[0].mxu0 %v1446
        %v1533 = vpop.f32.mrb[0].mxu0
        %v1534 = vadd.f32 0.0, %v1533
        %v1535 = vpop.f32.mrb[0].mxu0
        %v1536 = vpop.f32.mrb[0].mxu0
        %v1537 = vadd.f32 0.0, %v1536
        %v1538 = vpop.f32.mrb[0].mxu0
        %1539 = vmatprep.mubr.bf16.mxu0 0
        %1540 = vmatmul.mubr.bf16.gmra.mrb[0].mxu0 %v1449
        %v1541 = vpop.f32.mrb[0].mxu0
        %v1542 = vadd.f32 0.0, %v1541
        %v1543 = vpop.f32.mrb[0].mxu0
        %v1544 = vpop.f32.mrb[0].mxu0
        %v1545 = vadd.f32 0.0, %v1544
        %v1546 = vpop.f32.mrb[0].mxu0
        %1547 = vdwg.mxu0
        %v1549 = vsel %vm1096, %v1082, 0
        %v1552 = vsel %vm1096, %v1083, 0
        %v1555 = vsel %vm1096, %v1084, 0
        %v1558 = vsel %vm1096, %v1085, 0
        %v1561 = vsel %vm1096, %v1086, 0
        %v1564 = vsel %vm1096, %v1087, 0
        %1566 = vmatprep.subr.bf16.mxu0 0
        %1567 = vmatpush1.bf16.msra.mxu0 %v1066
        %1568 = vmatprep.subr.bf16.mxu0 0
        %1569 = vmatpush1.bf16.msra.mxu0 0
        %1570 = vmatprep.subr.bf16.mxu0 0
        %1571 = vmatpush1.bf16.msra.mxu0 0
        %1572 = vmatprep.subr.bf16.mxu0 0
        %1573 = vmatpush1.bf16.msra.mxu0 0
        %1574 = vmatprep.subr.bf16.mxu0 0
        %1575 = vmatpush1.bf16.msra.mxu0 0
        %1576 = vmatprep.subr.bf16.mxu0 0
        %1577 = vmatpush1.bf16.msra.mxu0 0
        %1578 = vmatprep.subr.bf16.mxu0 0
        %1579 = vmatpush1.bf16.msra.mxu0 0
        %1580 = vmatprep.subr.bf16.mxu0 0
        %1581 = vmatpush1.bf16.msra.mxu0 0
        %1582 = vmatprep.subr.bf16.mxu0 0
        %1583 = vmatpush1.bf16.msra.mxu0 0
        %1584 = vmatprep.subr.bf16.mxu0 0
        %1585 = vmatpush1.bf16.msra.mxu0 0
        %1586 = vmatprep.subr.bf16.mxu0 0
        %1587 = vmatpush1.bf16.msra.mxu0 0
        %1588 = vmatprep.subr.bf16.mxu0 0
        %1589 = vmatpush1.bf16.msra.mxu0 0
        %1590 = vmatprep.subr.bf16.mxu0 0
        %1591 = vmatpush1.bf16.msra.mxu0 0
        %1592 = vmatprep.subr.bf16.mxu0 0
        %1593 = vmatpush1.bf16.msra.mxu0 0
        %1594 = vmatprep.subr.bf16.mxu0 0
        %1595 = vmatpush1.bf16.msra.mxu0 0
        %1596 = vmatprep.subr.bf16.mxu0 0
        %1597 = vmatpush1.bf16.msra.mxu0 0
        %1598 = vmatprep.mubr.bf16.mxu0 0
        %1599 = vmatmul.mubr.bf16.gmra.mrb[0].mxu0 %v1549
        %v1600 = vpop.f32.mrb[0].mxu0
        %v1601 = vadd.f32 0.0, %v1600
        %v1602 = vpop.f32.mrb[0].mxu0
        %v1603 = vpop.f32.mrb[0].mxu0
        %v1604 = vadd.f32 0.0, %v1603
        %v1605 = vpop.f32.mrb[0].mxu0
        %1606 = vmatprep.mubr.bf16.mxu0 0
        %1607 = vmatmul.mubr.bf16.gmra.mrb[0].mxu0 %v1552
        %v1608 = vpop.f32.mrb[0].mxu0
        %v1609 = vadd.f32 0.0, %v1608
        %v1610 = vpop.f32.mrb[0].mxu0
        %v1611 = vpop.f32.mrb[0].mxu0
        %v1612 = vadd.f32 0.0, %v1611
        %v1613 = vpop.f32.mrb[0].mxu0
        %1614 = vmatprep.mubr.bf16.mxu0 0
        %1615 = vmatmul.mubr.bf16.gmra.mrb[0].mxu0 %v1555
        %v1616 = vpop.f32.mrb[0].mxu0
        %v1617 = vadd.f32 0.0, %v1616
        %v1618 = vpop.f32.mrb[0].mxu0
        %v1619 = vpop.f32.mrb[0].mxu0
        %v1620 = vadd.f32 0.0, %v1619
        %v1621 = vpop.f32.mrb[0].mxu0
        %1622 = vmatprep.mubr.bf16.mxu0 0
        %1623 = vmatmul.mubr.bf16.gmra.mrb[0].mxu0 %v1558
        %v1624 = vpop.f32.mrb[0].mxu0
        %v1625 = vadd.f32 0.0, %v1624
        %v1626 = vpop.f32.mrb[0].mxu0
        %v1627 = vpop.f32.mrb[0].mxu0
        %v1628 = vadd.f32 0.0, %v1627
        %v1629 = vpop.f32.mrb[0].mxu0
        %1630 = vmatprep.mubr.bf16.mxu0 0
        %1631 = vmatmul.mubr.bf16.gmra.mrb[0].mxu0 %v1561
        %v1632 = vpop.f32.mrb[0].mxu0
        %v1633 = vadd.f32 0.0, %v1632
        %v1634 = vpop.f32.mrb[0].mxu0
        %v1635 = vpop.f32.mrb[0].mxu0
        %v1636 = vadd.f32 0.0, %v1635
        %v1637 = vpop.f32.mrb[0].mxu0
        %1638 = vmatprep.mubr.bf16.mxu0 0
        %1639 = vmatmul.mubr.bf16.gmra.mrb[0].mxu0 %v1564
        %v1640 = vpop.f32.mrb[0].mxu0
        %v1641 = vadd.f32 0.0, %v1640
        %v1642 = vpop.f32.mrb[0].mxu0
        %v1643 = vpop.f32.mrb[0].mxu0
        %v1644 = vadd.f32 0.0, %v1643
        %v1645 = vpop.f32.mrb[0].mxu0
        %1646 = vdwg.mxu0
        %1647 = vmax.xlane.f32.xlu0 %v1601
        %v1648 = vpop.xlane.xlu0 %1647
        %1649 = vmax.xlane.f32.xlu0 %v1604
        %v1650 = vpop.xlane.xlu0 %1649
        %1651 = vmax.xlane.f32.xlu0 %v1609
        %v1652 = vpop.xlane.xlu0 %1651
        %1653 = vmax.xlane.f32.xlu0 %v1612
        %v1654 = vpop.xlane.xlu0 %1653
        %1655 = vmax.xlane.f32.xlu0 %v1617
        %v1656 = vpop.xlane.xlu0 %1655
        %1657 = vmax.xlane.f32.xlu0 %v1620
        %v1658 = vpop.xlane.xlu0 %1657
        %1659 = vmax.xlane.f32.xlu0 %v1625
        %v1660 = vpop.xlane.xlu0 %1659
        %1661 = vmax.xlane.f32.xlu0 %v1628
        %v1662 = vpop.xlane.xlu0 %1661
        %1663 = vmax.xlane.f32.xlu0 %v1633
        %v1664 = vpop.xlane.xlu0 %1663
        %1665 = vmax.xlane.f32.xlu0 %v1636
        %v1666 = vpop.xlane.xlu0 %1665
        %1667 = vmax.xlane.f32.xlu0 %v1641
        %v1668 = vpop.xlane.xlu0 %1667
        %1669 = vmax.xlane.f32.xlu0 %v1644
        %v1670 = vpop.xlane.xlu0 %1669
        %v1671 = vsub.f32 %v1601, %v1648
        %v1672 = vsub.f32 %v1604, %v1650
        %v1673 = vsub.f32 %v1609, %v1652
        %v1674 = vsub.f32 %v1612, %v1654
        %v1675 = vsub.f32 %v1617, %v1656
        %v1676 = vsub.f32 %v1620, %v1658
        %v1677 = vsub.f32 %v1625, %v1660
        %v1678 = vsub.f32 %v1628, %v1662
        %v1679 = vsub.f32 %v1633, %v1664
        %v1680 = vsub.f32 %v1636, %v1666
        %v1681 = vsub.f32 %v1641, %v1668
        %v1682 = vsub.f32 %v1644, %v1670
        %v1683 = vmul.f32 %v1671, 1.442695
        %v1684 = vpow.pop %v1683
        %v1685 = vmul.f32 %v1672, 1.442695
        %v1686 = vpow.pop %v1685
        %v1687 = vmul.f32 %v1673, 1.442695
        %v1688 = vpow.pop %v1687
        %v1689 = vmul.f32 %v1674, 1.442695
        %v1690 = vpow.pop %v1689
        %v1691 = vmul.f32 %v1675, 1.442695
        %v1692 = vpow.pop %v1691
        %v1693 = vmul.f32 %v1676, 1.442695
        %v1694 = vpow.pop %v1693
        %v1695 = vmul.f32 %v1677, 1.442695
        %v1696 = vpow.pop %v1695
        %v1697 = vmul.f32 %v1678, 1.442695
        %v1698 = vpow.pop %v1697
        %v1699 = vmul.f32 %v1679, 1.442695
        %v1700 = vpow.pop %v1699
        %v1701 = vmul.f32 %v1680, 1.442695
        %v1702 = vpow.pop %v1701
        %v1703 = vmul.f32 %v1681, 1.442695
        %v1704 = vpow.pop %v1703
        %v1705 = vmul.f32 %v1682, 1.442695
        %v1706 = vpow.pop %v1705
        %1707 = vadd.xlane.f32.xlu0 %v1684
        %v1708 = vpop.xlane.xlu0 %1707
        %1709 = vadd.xlane.f32.xlu0 %v1686
        %v1710 = vpop.xlane.xlu0 %1709
        %1711 = vadd.xlane.f32.xlu0 %v1688
        %v1712 = vpop.xlane.xlu0 %1711
        %1713 = vadd.xlane.f32.xlu0 %v1690
        %v1714 = vpop.xlane.xlu0 %1713
        %1715 = vadd.xlane.f32.xlu0 %v1692
        %v1716 = vpop.xlane.xlu0 %1715
        %1717 = vadd.xlane.f32.xlu0 %v1694
        %v1718 = vpop.xlane.xlu0 %1717
        %1719 = vadd.xlane.f32.xlu0 %v1696
        %v1720 = vpop.xlane.xlu0 %1719
        %1721 = vadd.xlane.f32.xlu0 %v1698
        %v1722 = vpop.xlane.xlu0 %1721
        %1723 = vadd.xlane.f32.xlu0 %v1700
        %v1724 = vpop.xlane.xlu0 %1723
        %1725 = vadd.xlane.f32.xlu0 %v1702
        %v1726 = vpop.xlane.xlu0 %1725
        %1727 = vadd.xlane.f32.xlu0 %v1704
        %v1728 = vpop.xlane.xlu0 %1727
        %1729 = vadd.xlane.f32.xlu0 %v1706
        %v1730 = vpop.xlane.xlu0 %1729
        %v1731 = vrcp.pop %v1708
        %v1732 = vrcp.pop %v1710
        %v1733 = vrcp.pop %v1712
        %v1734 = vrcp.pop %v1714
        %v1735 = vrcp.pop %v1716
        %v1736 = vrcp.pop %v1718
        %v1737 = vrcp.pop %v1720
        %v1738 = vrcp.pop %v1722
        %v1739 = vrcp.pop %v1724
        %v1740 = vrcp.pop %v1726
        %v1741 = vrcp.pop %v1728
        %v1742 = vrcp.pop %v1730
        %v1743 = vmul.f32 %v1684, %v1731
        %v1744 = vmul.f32 %v1686, %v1732
        %v1745 = vmul.f32 %v1688, %v1733
        %v1746 = vmul.f32 %v1690, %v1734
        %v1747 = vmul.f32 %v1692, %v1735
        %v1748 = vmul.f32 %v1694, %v1736
        %v1749 = vmul.f32 %v1696, %v1737
        %v1750 = vmul.f32 %v1698, %v1738
        %v1751 = vmul.f32 %v1700, %v1739
        %v1752 = vmul.f32 %v1702, %v1740
        %v1753 = vmul.f32 %v1704, %v1741
        %v1754 = vmul.f32 %v1706, %v1742
        %v1755 = vpack.c.bf16 %v1744, %v1743
        %v1756 = vpack.c.bf16 %v1746, %v1745
        %v1757 = vpack.c.bf16 %v1748, %v1747
        %v1758 = vpack.c.bf16 %v1750, %v1749
        %v1759 = vpack.c.bf16 %v1752, %v1751
        %v1760 = vpack.c.bf16 %v1754, %v1753
        %1769 = vrot.lane.b32.xlu0 %v1074, 64
        %v1770 = vpop.permute.xlu0 %1769
        %1771 = vrot.lane.b32.xlu0 %v1075, 64
        %v1772 = vpop.permute.xlu0 %1771
        %1773 = vrot.lane.b32.xlu0 %v1076, 64
        %v1774 = vpop.permute.xlu0 %1773
        %1775 = vrot.lane.b32.xlu0 %v1077, 64
        %v1776 = vpop.permute.xlu0 %1775
        %1777 = vrot.lane.b32.xlu0 %v1078, 64
        %v1778 = vpop.permute.xlu0 %1777
        %1779 = vrot.lane.b32.xlu0 %v1079, 64
        %v1780 = vpop.permute.xlu0 %1779
        %1781 = vrot.lane.b32.xlu0 %v1080, 64
        %v1782 = vpop.permute.xlu0 %1781
        %1783 = vrot.lane.b32.xlu0 %v1081, 64
        %v1784 = vpop.permute.xlu0 %1783
        %1793 = vmatprep.subr.bf16.mxu0 0
        %1794 = vmatpush1.bf16.msra.mxu0 %v1770
        %1795 = vmatprep.subr.bf16.mxu0 0
        %1796 = vmatpush1.bf16.msra.mxu0 %v1772
        %1797 = vmatprep.subr.bf16.mxu0 0
        %1798 = vmatpush1.bf16.msra.mxu0 %v1774
        %1799 = vmatprep.subr.bf16.mxu0 0
        %1800 = vmatpush1.bf16.msra.mxu0 %v1776
        %1801 = vmatprep.subr.bf16.mxu0 0
        %1802 = vmatpush1.bf16.msra.mxu0 %v1778
        %1803 = vmatprep.subr.bf16.mxu0 0
        %1804 = vmatpush1.bf16.msra.mxu0 %v1780
        %1805 = vmatprep.subr.bf16.mxu0 0
        %1806 = vmatpush1.bf16.msra.mxu0 %v1782
        %1807 = vmatprep.subr.bf16.mxu0 0
        %1808 = vmatpush1.bf16.msra.mxu0 %v1784
        %1809 = vmatprep.subr.bf16.mxu0 0
        %1810 = vmatpush1.bf16.msra.mxu0 0
        %1811 = vmatprep.subr.bf16.mxu0 0
        %1812 = vmatpush1.bf16.msra.mxu0 0
        %1813 = vmatprep.subr.bf16.mxu0 0
        %1814 = vmatpush1.bf16.msra.mxu0 0
        %1815 = vmatprep.subr.bf16.mxu0 0
        %1816 = vmatpush1.bf16.msra.mxu0 0
        %1817 = vmatprep.subr.bf16.mxu0 0
        %1818 = vmatpush1.bf16.msra.mxu0 0
        %1819 = vmatprep.subr.bf16.mxu0 0
        %1820 = vmatpush1.bf16.msra.mxu0 0
        %1821 = vmatprep.subr.bf16.mxu0 0
        %1822 = vmatpush1.bf16.msra.mxu0 0
        %1823 = vmatprep.subr.bf16.mxu0 0
        %1824 = vmatpush1.bf16.msra.mxu0 0
        %1825 = vmatprep.mubr.bf16.mxu0 0
        %1826 = vmatmul.mubr.bf16.gmra.mrb[0].mxu0 %v1755
        %v1827 = vpop.f32.mrb[0].mxu0
        %v1828 = vadd.f32 0.0, %v1827
        %v1829 = vpop.f32.mrb[0].mxu0
        %v1830 = vpop.f32.mrb[0].mxu0
        %v1831 = vadd.f32 0.0, %v1830
        %v1832 = vpop.f32.mrb[0].mxu0
        %1833 = vmatprep.mubr.bf16.mxu0 0
        %1834 = vmatmul.mubr.bf16.gmra.mrb[0].mxu0 %v1756
        %v1835 = vpop.f32.mrb[0].mxu0
        %v1836 = vadd.f32 0.0, %v1835
        %v1837 = vpop.f32.mrb[0].mxu0
        %v1838 = vpop.f32.mrb[0].mxu0
        %v1839 = vadd.f32 0.0, %v1838
        %v1840 = vpop.f32.mrb[0].mxu0
        %1841 = vmatprep.mubr.bf16.mxu0 0
        %1842 = vmatmul.mubr.bf16.gmra.mrb[0].mxu0 %v1757
        %v1843 = vpop.f32.mrb[0].mxu0
        %v1844 = vadd.f32 0.0, %v1843
        %v1845 = vpop.f32.mrb[0].mxu0
        %v1846 = vpop.f32.mrb[0].mxu0
        %v1847 = vadd.f32 0.0, %v1846
        %v1848 = vpop.f32.mrb[0].mxu0
        %1849 = vmatprep.mubr.bf16.mxu0 0
        %1850 = vmatmul.mubr.bf16.gmra.mrb[0].mxu0 %v1758
        %v1851 = vpop.f32.mrb[0].mxu0
        %v1852 = vadd.f32 0.0, %v1851
        %v1853 = vpop.f32.mrb[0].mxu0
        %v1854 = vpop.f32.mrb[0].mxu0
        %v1855 = vadd.f32 0.0, %v1854
        %v1856 = vpop.f32.mrb[0].mxu0
        %1857 = vmatprep.mubr.bf16.mxu0 0
        %1858 = vmatmul.mubr.bf16.gmra.mrb[0].mxu0 %v1759
        %v1859 = vpop.f32.mrb[0].mxu0
        %v1860 = vadd.f32 0.0, %v1859
        %v1861 = vpop.f32.mrb[0].mxu0
        %v1862 = vpop.f32.mrb[0].mxu0
        %v1863 = vadd.f32 0.0, %v1862
        %v1864 = vpop.f32.mrb[0].mxu0
        %1865 = vmatprep.mubr.bf16.mxu0 0
        %1866 = vmatmul.mubr.bf16.gmra.mrb[0].mxu0 %v1760
        %v1867 = vpop.f32.mrb[0].mxu0
        %v1868 = vadd.f32 0.0, %v1867
        %v1869 = vpop.f32.mrb[0].mxu0
        %v1870 = vpop.f32.mrb[0].mxu0
        %v1871 = vadd.f32 0.0, %v1870
        %v1872 = vpop.f32.mrb[0].mxu0
        %1873 = vdwg.mxu0
        %v1874 = vpack.c.bf16 %v1489, %v1486
        %v1875 = vpack.c.bf16 %v1497, %v1494
        %v1876 = vpack.c.bf16 %v1505, %v1502
        %v1877 = vpack.c.bf16 %v1513, %v1510
        %v1878 = vpack.c.bf16 %v1521, %v1518
        %v1879 = vpack.c.bf16 %v1529, %v1526
        %v1880 = vpack.c.bf16 %v1537, %v1534
        %v1881 = vpack.c.bf16 %v1545, %v1542
        %v1882 = vpack.c.bf16 %v1831, %v1828
        %v1883 = vpack.c.bf16 %v1839, %v1836
        %v1884 = vpack.c.bf16 %v1847, %v1844
        %v1885 = vpack.c.bf16 %v1855, %v1852
        %v1886 = vpack.c.bf16 %v1863, %v1860
        %v1887 = vpack.c.bf16 %v1871, %v1868
        %1888 = vrot.lane.b32.xlu0 %v1074, 112
        %v1889 = vpop.permute.xlu0 %1888
        %1890 = vrot.lane.b32.xlu0 %v1075, 112
        %v1891 = vpop.permute.xlu0 %1890
        %1892 = vrot.lane.b32.xlu0 %v1076, 112
        %v1893 = vpop.permute.xlu0 %1892
        %1894 = vrot.lane.b32.xlu0 %v1077, 112
        %v1895 = vpop.permute.xlu0 %1894
        %1896 = vrot.lane.b32.xlu0 %v1078, 112
        %v1897 = vpop.permute.xlu0 %1896
        %1898 = vrot.lane.b32.xlu0 %v1079, 112
        %v1899 = vpop.permute.xlu0 %1898
        %1900 = vrot.lane.b32.xlu0 %v1080, 112
        %v1901 = vpop.permute.xlu0 %1900
        %1902 = vrot.lane.b32.xlu0 %v1081, 112
        %v1903 = vpop.permute.xlu0 %1902
        %v1905 = vsel %vm1096, %v1889, 0
        %v1908 = vsel %vm1096, %v1891, 0
        %v1911 = vsel %vm1096, %v1893, 0
        %v1914 = vsel %vm1096, %v1895, 0
        %v1917 = vsel %vm1096, %v1897, 0
        %v1920 = vsel %vm1096, %v1899, 0
        %v1923 = vsel %vm1096, %v1901, 0
        %v1926 = vsel %vm1096, %v1903, 0
        %1928 = vmatprep.subr.bf16.mxu0 0
        %1929 = vmatpush1.bf16.msra.mxu0 %v1069
        %1930 = vmatprep.subr.bf16.mxu0 0
        %1931 = vmatpush1.bf16.msra.mxu0 0
        %1932 = vmatprep.subr.bf16.mxu0 0
        %1933 = vmatpush1.bf16.msra.mxu0 0
        %1934 = vmatprep.subr.bf16.mxu0 0
        %1935 = vmatpush1.bf16.msra.mxu0 0
        %1936 = vmatprep.subr.bf16.mxu0 0
        %1937 = vmatpush1.bf16.msra.mxu0 0
        %1938 = vmatprep.subr.bf16.mxu0 0
        %1939 = vmatpush1.bf16.msra.mxu0 0
        %1940 = vmatprep.subr.bf16.mxu0 0
        %1941 = vmatpush1.bf16.msra.mxu0 0
        %1942 = vmatprep.subr.bf16.mxu0 0
        %1943 = vmatpush1.bf16.msra.mxu0 0
        %1944 = vmatprep.subr.bf16.mxu0 0
        %1945 = vmatpush1.bf16.msra.mxu0 0
        %1946 = vmatprep.subr.bf16.mxu0 0
        %1947 = vmatpush1.bf16.msra.mxu0 0
        %1948 = vmatprep.subr.bf16.mxu0 0
        %1949 = vmatpush1.bf16.msra.mxu0 0
        %1950 = vmatprep.subr.bf16.mxu0 0
        %1951 = vmatpush1.bf16.msra.mxu0 0
        %1952 = vmatprep.subr.bf16.mxu0 0
        %1953 = vmatpush1.bf16.msra.mxu0 0
        %1954 = vmatprep.subr.bf16.mxu0 0
        %1955 = vmatpush1.bf16.msra.mxu0 0
        %1956 = vmatprep.subr.bf16.mxu0 0
        %1957 = vmatpush1.bf16.msra.mxu0 0
        %1958 = vmatprep.subr.bf16.mxu0 0
        %1959 = vmatpush1.bf16.msra.mxu0 0
        %1960 = vmatprep.mubr.bf16.mxu0 0
        %1961 = vmatmul.mubr.bf16.gmra.mrb[0].mxu0 %v1905
        %v1962 = vpop.f32.mrb[0].mxu0
        %v1963 = vadd.f32 0.0, %v1962
        %v1964 = vpop.f32.mrb[0].mxu0
        %v1965 = vpop.f32.mrb[0].mxu0
        %v1966 = vadd.f32 0.0, %v1965
        %v1967 = vpop.f32.mrb[0].mxu0
        %1968 = vmatprep.mubr.bf16.mxu0 0
        %1969 = vmatmul.mubr.bf16.gmra.mrb[0].mxu0 %v1908
        %v1970 = vpop.f32.mrb[0].mxu0
        %v1971 = vadd.f32 0.0, %v1970
        %v1972 = vpop.f32.mrb[0].mxu0
        %v1973 = vpop.f32.mrb[0].mxu0
        %v1974 = vadd.f32 0.0, %v1973
        %v1975 = vpop.f32.mrb[0].mxu0
        %1976 = vmatprep.mubr.bf16.mxu0 0
        %1977 = vmatmul.mubr.bf16.gmra.mrb[0].mxu0 %v1911
        %v1978 = vpop.f32.mrb[0].mxu0
        %v1979 = vadd.f32 0.0, %v1978
        %v1980 = vpop.f32.mrb[0].mxu0
        %v1981 = vpop.f32.mrb[0].mxu0
        %v1982 = vadd.f32 0.0, %v1981
        %v1983 = vpop.f32.mrb[0].mxu0
        %1984 = vmatprep.mubr.bf16.mxu0 0
        %1985 = vmatmul.mubr.bf16.gmra.mrb[0].mxu0 %v1914
        %v1986 = vpop.f32.mrb[0].mxu0
        %v1987 = vadd.f32 0.0, %v1986
        %v1988 = vpop.f32.mrb[0].mxu0
        %v1989 = vpop.f32.mrb[0].mxu0
        %v1990 = vadd.f32 0.0, %v1989
        %v1991 = vpop.f32.mrb[0].mxu0
        %1992 = vmatprep.mubr.bf16.mxu0 0
        %1993 = vmatmul.mubr.bf16.gmra.mrb[0].mxu0 %v1917
        %v1994 = vpop.f32.mrb[0].mxu0
        %v1995 = vadd.f32 0.0, %v1994
        %v1996 = vpop.f32.mrb[0].mxu0
        %v1997 = vpop.f32.mrb[0].mxu0
        %v1998 = vadd.f32 0.0, %v1997
        %v1999 = vpop.f32.mrb[0].mxu0
        %2000 = vmatprep.mubr.bf16.mxu0 0
        %2001 = vmatmul.mubr.bf16.gmra.mrb[0].mxu0 %v1920
        %v2002 = vpop.f32.mrb[0].mxu0
        %v2003 = vadd.f32 0.0, %v2002
        %v2004 = vpop.f32.mrb[0].mxu0
        %v2005 = vpop.f32.mrb[0].mxu0
        %v2006 = vadd.f32 0.0, %v2005
        %v2007 = vpop.f32.mrb[0].mxu0
        %2008 = vmatprep.mubr.bf16.mxu0 0
        %2009 = vmatmul.mubr.bf16.gmra.mrb[0].mxu0 %v1923
        %v2010 = vpop.f32.mrb[0].mxu0
        %v2011 = vadd.f32 0.0, %v2010
        %v2012 = vpop.f32.mrb[0].mxu0
        %v2013 = vpop.f32.mrb[0].mxu0
        %v2014 = vadd.f32 0.0, %v2013
        %v2015 = vpop.f32.mrb[0].mxu0
        %2016 = vmatprep.mubr.bf16.mxu0 0
        %2017 = vmatmul.mubr.bf16.gmra.mrb[0].mxu0 %v1926
        %v2018 = vpop.f32.mrb[0].mxu0
        %v2019 = vadd.f32 0.0, %v2018
        %v2020 = vpop.f32.mrb[0].mxu0
        %v2021 = vpop.f32.mrb[0].mxu0
        %v2022 = vadd.f32 0.0, %v2021
        %v2023 = vpop.f32.mrb[0].mxu0
        %2024 = vdwg.mxu0
        %v2025 = vsel %vm1218, %v1963, -inf
        %2026 = vmax.xlane.f32.xlu0 %v2025
        %v2027 = vpop.xlane.xlu0 %2026
        %v2028 = vsel %vm1218, %v1966, -inf
        %2029 = vmax.xlane.f32.xlu0 %v2028
        %v2030 = vpop.xlane.xlu0 %2029
        %v2031 = vsel %vm1218, %v1971, -inf
        %2032 = vmax.xlane.f32.xlu0 %v2031
        %v2033 = vpop.xlane.xlu0 %2032
        %v2034 = vsel %vm1218, %v1974, -inf
        %2035 = vmax.xlane.f32.xlu0 %v2034
        %v2036 = vpop.xlane.xlu0 %2035
        %v2037 = vsel %vm1218, %v1979, -inf
        %2038 = vmax.xlane.f32.xlu0 %v2037
        %v2039 = vpop.xlane.xlu0 %2038
        %v2040 = vsel %vm1218, %v1982, -inf
        %2041 = vmax.xlane.f32.xlu0 %v2040
        %v2042 = vpop.xlane.xlu0 %2041
        %v2043 = vsel %vm1218, %v1987, -inf
        %2044 = vmax.xlane.f32.xlu0 %v2043
        %v2045 = vpop.xlane.xlu0 %2044
        %v2046 = vsel %vm1218, %v1990, -inf
        %2047 = vmax.xlane.f32.xlu0 %v2046
        %v2048 = vpop.xlane.xlu0 %2047
        %v2049 = vsel %vm1218, %v1995, -inf
        %2050 = vmax.xlane.f32.xlu0 %v2049
        %v2051 = vpop.xlane.xlu0 %2050
        %v2052 = vsel %vm1218, %v1998, -inf
        %2053 = vmax.xlane.f32.xlu0 %v2052
        %v2054 = vpop.xlane.xlu0 %2053
        %v2055 = vsel %vm1218, %v2003, -inf
        %2056 = vmax.xlane.f32.xlu0 %v2055
        %v2057 = vpop.xlane.xlu0 %2056
        %v2058 = vsel %vm1218, %v2006, -inf
        %2059 = vmax.xlane.f32.xlu0 %v2058
        %v2060 = vpop.xlane.xlu0 %2059
        %v2061 = vsel %vm1218, %v2011, -inf
        %2062 = vmax.xlane.f32.xlu0 %v2061
        %v2063 = vpop.xlane.xlu0 %2062
        %v2064 = vsel %vm1218, %v2014, -inf
        %2065 = vmax.xlane.f32.xlu0 %v2064
        %v2066 = vpop.xlane.xlu0 %2065
        %v2067 = vsel %vm1218, %v2019, -inf
        %2068 = vmax.xlane.f32.xlu0 %v2067
        %v2069 = vpop.xlane.xlu0 %2068
        %v2070 = vsel %vm1218, %v2022, -inf
        %2071 = vmax.xlane.f32.xlu0 %v2070
        %v2072 = vpop.xlane.xlu0 %2071
        %v2073 = vsub.f32 %v1963, %v2027
        %v2074 = vsub.f32 %v1966, %v2030
        %v2075 = vsub.f32 %v1971, %v2033
        %v2076 = vsub.f32 %v1974, %v2036
        %v2077 = vsub.f32 %v1979, %v2039
        %v2078 = vsub.f32 %v1982, %v2042
        %v2079 = vsub.f32 %v1987, %v2045
        %v2080 = vsub.f32 %v1990, %v2048
        %v2081 = vsub.f32 %v1995, %v2051
        %v2082 = vsub.f32 %v1998, %v2054
        %v2083 = vsub.f32 %v2003, %v2057
        %v2084 = vsub.f32 %v2006, %v2060
        %v2085 = vsub.f32 %v2011, %v2063
        %v2086 = vsub.f32 %v2014, %v2066
        %v2087 = vsub.f32 %v2019, %v2069
        %v2088 = vsub.f32 %v2022, %v2072
        %v2089 = vmul.f32 %v2073, 1.442695
        %v2090 = vpow.pop %v2089
        %v2091 = vmul.f32 %v2074, 1.442695
        %v2092 = vpow.pop %v2091
        %v2093 = vmul.f32 %v2075, 1.442695
        %v2094 = vpow.pop %v2093
        %v2095 = vmul.f32 %v2076, 1.442695
        %v2096 = vpow.pop %v2095
        %v2097 = vmul.f32 %v2077, 1.442695
        %v2098 = vpow.pop %v2097
        %v2099 = vmul.f32 %v2078, 1.442695
        %v2100 = vpow.pop %v2099
        %v2101 = vmul.f32 %v2079, 1.442695
        %v2102 = vpow.pop %v2101
        %v2103 = vmul.f32 %v2080, 1.442695
        %v2104 = vpow.pop %v2103
        %v2105 = vmul.f32 %v2081, 1.442695
        %v2106 = vpow.pop %v2105
        %v2107 = vmul.f32 %v2082, 1.442695
        %v2108 = vpow.pop %v2107
        %v2109 = vmul.f32 %v2083, 1.442695
        %v2110 = vpow.pop %v2109
        %v2111 = vmul.f32 %v2084, 1.442695
        %v2112 = vpow.pop %v2111
        %v2113 = vmul.f32 %v2085, 1.442695
        %v2114 = vpow.pop %v2113
        %v2115 = vmul.f32 %v2086, 1.442695
        %v2116 = vpow.pop %v2115
        %v2117 = vmul.f32 %v2087, 1.442695
        %v2118 = vpow.pop %v2117
        %v2119 = vmul.f32 %v2088, 1.442695
        %v2120 = vpow.pop %v2119
        %v2121 = vsel %vm1218, %v2090, 0.0
        %2122 = vadd.xlane.f32.xlu0 %v2121
        %v2123 = vpop.xlane.xlu0 %2122
        %v2124 = vsel %vm1218, %v2092, 0.0
        %2125 = vadd.xlane.f32.xlu0 %v2124
        %v2126 = vpop.xlane.xlu0 %2125
        %v2127 = vsel %vm1218, %v2094, 0.0
        %2128 = vadd.xlane.f32.xlu0 %v2127
        %v2129 = vpop.xlane.xlu0 %2128
        %v2130 = vsel %vm1218, %v2096, 0.0
        %2131 = vadd.xlane.f32.xlu0 %v2130
        %v2132 = vpop.xlane.xlu0 %2131
        %v2133 = vsel %vm1218, %v2098, 0.0
        %2134 = vadd.xlane.f32.xlu0 %v2133
        %v2135 = vpop.xlane.xlu0 %2134
        %v2136 = vsel %vm1218, %v2100, 0.0
        %2137 = vadd.xlane.f32.xlu0 %v2136
        %v2138 = vpop.xlane.xlu0 %2137
        %v2139 = vsel %vm1218, %v2102, 0.0
        %2140 = vadd.xlane.f32.xlu0 %v2139
        %v2141 = vpop.xlane.xlu0 %2140
        %v2142 = vsel %vm1218, %v2104, 0.0
        %2143 = vadd.xlane.f32.xlu0 %v2142
        %v2144 = vpop.xlane.xlu0 %2143
        %v2145 = vsel %vm1218, %v2106, 0.0
        %2146 = vadd.xlane.f32.xlu0 %v2145
        %v2147 = vpop.xlane.xlu0 %2146
        %v2148 = vsel %vm1218, %v2108, 0.0
        %2149 = vadd.xlane.f32.xlu0 %v2148
        %v2150 = vpop.xlane.xlu0 %2149
        %v2151 = vsel %vm1218, %v2110, 0.0
        %2152 = vadd.xlane.f32.xlu0 %v2151
        %v2153 = vpop.xlane.xlu0 %2152
        %v2154 = vsel %vm1218, %v2112, 0.0
        %2155 = vadd.xlane.f32.xlu0 %v2154
        %v2156 = vpop.xlane.xlu0 %2155
        %v2157 = vsel %vm1218, %v2114, 0.0
        %2158 = vadd.xlane.f32.xlu0 %v2157
        %v2159 = vpop.xlane.xlu0 %2158
        %v2160 = vsel %vm1218, %v2116, 0.0
        %2161 = vadd.xlane.f32.xlu0 %v2160
        %v2162 = vpop.xlane.xlu0 %2161
        %v2163 = vsel %vm1218, %v2118, 0.0
        %2164 = vadd.xlane.f32.xlu0 %v2163
        %v2165 = vpop.xlane.xlu0 %2164
        %v2166 = vsel %vm1218, %v2120, 0.0
        %2167 = vadd.xlane.f32.xlu0 %v2166
        %v2168 = vpop.xlane.xlu0 %2167
        %v2169 = vrcp.pop %v2123
        %v2170 = vrcp.pop %v2126
        %v2171 = vrcp.pop %v2129
        %v2172 = vrcp.pop %v2132
        %v2173 = vrcp.pop %v2135
        %v2174 = vrcp.pop %v2138
        %v2175 = vrcp.pop %v2141
        %v2176 = vrcp.pop %v2144
        %v2177 = vrcp.pop %v2147
        %v2178 = vrcp.pop %v2150
        %v2179 = vrcp.pop %v2153
        %v2180 = vrcp.pop %v2156
        %v2181 = vrcp.pop %v2159
        %v2182 = vrcp.pop %v2162
        %v2183 = vrcp.pop %v2165
        %v2184 = vrcp.pop %v2168
        %v2185 = vmul.f32 %v2090, %v2169
        %v2186 = vmul.f32 %v2092, %v2170
        %v2187 = vmul.f32 %v2094, %v2171
        %v2188 = vmul.f32 %v2096, %v2172
        %v2189 = vmul.f32 %v2098, %v2173
        %v2190 = vmul.f32 %v2100, %v2174
        %v2191 = vmul.f32 %v2102, %v2175
        %v2192 = vmul.f32 %v2104, %v2176
        %v2193 = vmul.f32 %v2106, %v2177
        %v2194 = vmul.f32 %v2108, %v2178
        %v2195 = vmul.f32 %v2110, %v2179
        %v2196 = vmul.f32 %v2112, %v2180
        %v2197 = vmul.f32 %v2114, %v2181
        %v2198 = vmul.f32 %v2116, %v2182
        %v2199 = vmul.f32 %v2118, %v2183
        %v2200 = vmul.f32 %v2120, %v2184
        %v2201 = vpack.c.bf16 %v2186, %v2185
        %v2202 = vpack.c.bf16 %v2188, %v2187
        %v2203 = vpack.c.bf16 %v2190, %v2189
        %v2204 = vpack.c.bf16 %v2192, %v2191
        %v2205 = vpack.c.bf16 %v2194, %v2193
        %v2206 = vpack.c.bf16 %v2196, %v2195
        %v2207 = vpack.c.bf16 %v2198, %v2197
        %v2208 = vpack.c.bf16 %v2200, %v2199
        %2209 = vrot.lane.b32.xlu0 %v1082, 48
        %v2210 = vpop.permute.xlu0 %2209
        %2211 = vrot.lane.b32.xlu0 %v1083, 48
        %v2212 = vpop.permute.xlu0 %2211
        %2213 = vrot.lane.b32.xlu0 %v1084, 48
        %v2214 = vpop.permute.xlu0 %2213
        %2215 = vrot.lane.b32.xlu0 %v1085, 48
        %v2216 = vpop.permute.xlu0 %2215
        %2217 = vrot.lane.b32.xlu0 %v1086, 48
        %v2218 = vpop.permute.xlu0 %2217
        %2219 = vrot.lane.b32.xlu0 %v1087, 48
        %v2220 = vpop.permute.xlu0 %2219
        %v2228 = vsel %vm1218, %v2201, 0
        %v2231 = vsel %vm1218, %v2202, 0
        %v2234 = vsel %vm1218, %v2203, 0
        %v2237 = vsel %vm1218, %v2204, 0
        %v2240 = vsel %vm1218, %v2205, 0
        %v2243 = vsel %vm1218, %v2206, 0
        %v2246 = vsel %vm1218, %v2207, 0
        %v2249 = vsel %vm1218, %v2208, 0
        %2251 = vmatprep.subr.bf16.mxu0 0
        %2252 = vmatpush1.bf16.msra.mxu0 %v2210
        %2253 = vmatprep.subr.bf16.mxu0 0
        %2254 = vmatpush1.bf16.msra.mxu0 %v2212
        %2255 = vmatprep.subr.bf16.mxu0 0
        %2256 = vmatpush1.bf16.msra.mxu0 %v2214
        %2257 = vmatprep.subr.bf16.mxu0 0
        %2258 = vmatpush1.bf16.msra.mxu0 %v2216
        %2259 = vmatprep.subr.bf16.mxu0 0
        %2260 = vmatpush1.bf16.msra.mxu0 %v2218
        %2261 = vmatprep.subr.bf16.mxu0 0
        %2262 = vmatpush1.bf16.msra.mxu0 %v2220
        %2263 = vmatprep.subr.bf16.mxu0 0
        %2264 = vmatpush1.bf16.msra.mxu0 0
        %2265 = vmatprep.subr.bf16.mxu0 0
        %2266 = vmatpush1.bf16.msra.mxu0 0
        %2267 = vmatprep.subr.bf16.mxu0 0
        %2268 = vmatpush1.bf16.msra.mxu0 0
        %2269 = vmatprep.subr.bf16.mxu0 0
        %2270 = vmatpush1.bf16.msra.mxu0 0
        %2271 = vmatprep.subr.bf16.mxu0 0
        %2272 = vmatpush1.bf16.msra.mxu0 0
        %2273 = vmatprep.subr.bf16.mxu0 0
        %2274 = vmatpush1.bf16.msra.mxu0 0
        %2275 = vmatprep.subr.bf16.mxu0 0
        %2276 = vmatpush1.bf16.msra.mxu0 0
        %2277 = vmatprep.subr.bf16.mxu0 0
        %2278 = vmatpush1.bf16.msra.mxu0 0
        %2279 = vmatprep.subr.bf16.mxu0 0
        %2280 = vmatpush1.bf16.msra.mxu0 0
        %2281 = vmatprep.subr.bf16.mxu0 0
        %2282 = vmatpush1.bf16.msra.mxu0 0
        %2283 = vmatprep.mubr.bf16.mxu0 0
        %2284 = vmatmul.mubr.bf16.gmra.mrb[0].mxu0 %v2228
        %v2285 = vpop.f32.mrb[0].mxu0
        %v2286 = vadd.f32 0.0, %v2285
        %v2287 = vpop.f32.mrb[0].mxu0
        %v2288 = vpop.f32.mrb[0].mxu0
        %v2289 = vadd.f32 0.0, %v2288
        %v2290 = vpop.f32.mrb[0].mxu0
        %2291 = vmatprep.mubr.bf16.mxu0 0
        %2292 = vmatmul.mubr.bf16.gmra.mrb[0].mxu0 %v2231
        %v2293 = vpop.f32.mrb[0].mxu0
        %v2294 = vadd.f32 0.0, %v2293
        %v2295 = vpop.f32.mrb[0].mxu0
        %v2296 = vpop.f32.mrb[0].mxu0
        %v2297 = vadd.f32 0.0, %v2296
        %v2298 = vpop.f32.mrb[0].mxu0
        %2299 = vmatprep.mubr.bf16.mxu0 0
        %2300 = vmatmul.mubr.bf16.gmra.mrb[0].mxu0 %v2234
        %v2301 = vpop.f32.mrb[0].mxu0
        %v2302 = vadd.f32 0.0, %v2301
        %v2303 = vpop.f32.mrb[0].mxu0
        %v2304 = vpop.f32.mrb[0].mxu0
        %v2305 = vadd.f32 0.0, %v2304
        %v2306 = vpop.f32.mrb[0].mxu0
        %2307 = vmatprep.mubr.bf16.mxu0 0
        %2308 = vmatmul.mubr.bf16.gmra.mrb[0].mxu0 %v2237
        %v2309 = vpop.f32.mrb[0].mxu0
        %v2310 = vadd.f32 0.0, %v2309
        %v2311 = vpop.f32.mrb[0].mxu0
        %v2312 = vpop.f32.mrb[0].mxu0
        %v2313 = vadd.f32 0.0, %v2312
        %v2314 = vpop.f32.mrb[0].mxu0
        %2315 = vmatprep.mubr.bf16.mxu0 0
        %2316 = vmatmul.mubr.bf16.gmra.mrb[0].mxu0 %v2240
        %v2317 = vpop.f32.mrb[0].mxu0
        %v2318 = vadd.f32 0.0, %v2317
        %v2319 = vpop.f32.mrb[0].mxu0
        %v2320 = vpop.f32.mrb[0].mxu0
        %v2321 = vadd.f32 0.0, %v2320
        %v2322 = vpop.f32.mrb[0].mxu0
        %2323 = vmatprep.mubr.bf16.mxu0 0
        %2324 = vmatmul.mubr.bf16.gmra.mrb[0].mxu0 %v2243
        %v2325 = vpop.f32.mrb[0].mxu0
        %v2326 = vadd.f32 0.0, %v2325
        %v2327 = vpop.f32.mrb[0].mxu0
        %v2328 = vpop.f32.mrb[0].mxu0
        %v2329 = vadd.f32 0.0, %v2328
        %v2330 = vpop.f32.mrb[0].mxu0
        %2331 = vmatprep.mubr.bf16.mxu0 0
        %2332 = vmatmul.mubr.bf16.gmra.mrb[0].mxu0 %v2246
        %v2333 = vpop.f32.mrb[0].mxu0
        %v2334 = vadd.f32 0.0, %v2333
        %v2335 = vpop.f32.mrb[0].mxu0
        %v2336 = vpop.f32.mrb[0].mxu0
        %v2337 = vadd.f32 0.0, %v2336
        %v2338 = vpop.f32.mrb[0].mxu0
        %2339 = vmatprep.mubr.bf16.mxu0 0
        %2340 = vmatmul.mubr.bf16.gmra.mrb[0].mxu0 %v2249
        %v2341 = vpop.f32.mrb[0].mxu0
        %v2342 = vadd.f32 0.0, %v2341
        %v2343 = vpop.f32.mrb[0].mxu0
        %v2344 = vpop.f32.mrb[0].mxu0
        %v2345 = vadd.f32 0.0, %v2344
        %v2346 = vpop.f32.mrb[0].mxu0
        %2347 = vdwg.mxu0
        %2348 = vrot.lane.b32.xlu0 %v1082, 112
        %v2349 = vpop.permute.xlu0 %2348
        %2350 = vrot.lane.b32.xlu0 %v1083, 112
        %v2351 = vpop.permute.xlu0 %2350
        %2352 = vrot.lane.b32.xlu0 %v1084, 112
        %v2353 = vpop.permute.xlu0 %2352
        %2354 = vrot.lane.b32.xlu0 %v1085, 112
        %v2355 = vpop.permute.xlu0 %2354
        %2356 = vrot.lane.b32.xlu0 %v1086, 112
        %v2357 = vpop.permute.xlu0 %2356
        %2358 = vrot.lane.b32.xlu0 %v1087, 112
        %v2359 = vpop.permute.xlu0 %2358
        %v2361 = vsel %vm1096, %v2349, 0
        %v2364 = vsel %vm1096, %v2351, 0
        %v2367 = vsel %vm1096, %v2353, 0
        %v2370 = vsel %vm1096, %v2355, 0
        %v2373 = vsel %vm1096, %v2357, 0
        %v2376 = vsel %vm1096, %v2359, 0
        %2378 = vmatprep.subr.bf16.mxu0 0
        %2379 = vmatpush1.bf16.msra.mxu0 %v1068
        %2380 = vmatprep.subr.bf16.mxu0 0
        %2381 = vmatpush1.bf16.msra.mxu0 0
        %2382 = vmatprep.subr.bf16.mxu0 0
        %2383 = vmatpush1.bf16.msra.mxu0 0
        %2384 = vmatprep.subr.bf16.mxu0 0
        %2385 = vmatpush1.bf16.msra.mxu0 0
        %2386 = vmatprep.subr.bf16.mxu0 0
        %2387 = vmatpush1.bf16.msra.mxu0 0
        %2388 = vmatprep.subr.bf16.mxu0 0
        %2389 = vmatpush1.bf16.msra.mxu0 0
        %2390 = vmatprep.subr.bf16.mxu0 0
        %2391 = vmatpush1.bf16.msra.mxu0 0
        %2392 = vmatprep.subr.bf16.mxu0 0
        %2393 = vmatpush1.bf16.msra.mxu0 0
        %2394 = vmatprep.subr.bf16.mxu0 0
        %2395 = vmatpush1.bf16.msra.mxu0 0
        %2396 = vmatprep.subr.bf16.mxu0 0
        %2397 = vmatpush1.bf16.msra.mxu0 0
        %2398 = vmatprep.subr.bf16.mxu0 0
        %2399 = vmatpush1.bf16.msra.mxu0 0
        %2400 = vmatprep.subr.bf16.mxu0 0
        %2401 = vmatpush1.bf16.msra.mxu0 0
        %2402 = vmatprep.subr.bf16.mxu0 0
        %2403 = vmatpush1.bf16.msra.mxu0 0
        %2404 = vmatprep.subr.bf16.mxu0 0
        %2405 = vmatpush1.bf16.msra.mxu0 0
        %2406 = vmatprep.subr.bf16.mxu0 0
        %2407 = vmatpush1.bf16.msra.mxu0 0
        %2408 = vmatprep.subr.bf16.mxu0 0
        %2409 = vmatpush1.bf16.msra.mxu0 0
        %2410 = vmatprep.mubr.bf16.mxu0 0
        %2411 = vmatmul.mubr.bf16.gmra.mrb[0].mxu0 %v2361
        %v2412 = vpop.f32.mrb[0].mxu0
        %v2413 = vadd.f32 0.0, %v2412
        %v2414 = vpop.f32.mrb[0].mxu0
        %v2415 = vpop.f32.mrb[0].mxu0
        %v2416 = vadd.f32 0.0, %v2415
        %v2417 = vpop.f32.mrb[0].mxu0
        %2418 = vmatprep.mubr.bf16.mxu0 0
        %2419 = vmatmul.mubr.bf16.gmra.mrb[0].mxu0 %v2364
        %v2420 = vpop.f32.mrb[0].mxu0
        %v2421 = vadd.f32 0.0, %v2420
        %v2422 = vpop.f32.mrb[0].mxu0
        %v2423 = vpop.f32.mrb[0].mxu0
        %v2424 = vadd.f32 0.0, %v2423
        %v2425 = vpop.f32.mrb[0].mxu0
        %2426 = vmatprep.mubr.bf16.mxu0 0
        %2427 = vmatmul.mubr.bf16.gmra.mrb[0].mxu0 %v2367
        %v2428 = vpop.f32.mrb[0].mxu0
        %v2429 = vadd.f32 0.0, %v2428
        %v2430 = vpop.f32.mrb[0].mxu0
        %v2431 = vpop.f32.mrb[0].mxu0
        %v2432 = vadd.f32 0.0, %v2431
        %v2433 = vpop.f32.mrb[0].mxu0
        %2434 = vmatprep.mubr.bf16.mxu0 0
        %2435 = vmatmul.mubr.bf16.gmra.mrb[0].mxu0 %v2370
        %v2436 = vpop.f32.mrb[0].mxu0
        %v2437 = vadd.f32 0.0, %v2436
        %v2438 = vpop.f32.mrb[0].mxu0
        %v2439 = vpop.f32.mrb[0].mxu0
        %v2440 = vadd.f32 0.0, %v2439
        %v2441 = vpop.f32.mrb[0].mxu0
        %2442 = vmatprep.mubr.bf16.mxu0 0
        %2443 = vmatmul.mubr.bf16.gmra.mrb[0].mxu0 %v2373
        %v2444 = vpop.f32.mrb[0].mxu0
        %v2445 = vadd.f32 0.0, %v2444
        %v2446 = vpop.f32.mrb[0].mxu0
        %v2447 = vpop.f32.mrb[0].mxu0
        %v2448 = vadd.f32 0.0, %v2447
        %v2449 = vpop.f32.mrb[0].mxu0
        %2450 = vmatprep.mubr.bf16.mxu0 0
        %2451 = vmatmul.mubr.bf16.gmra.mrb[0].mxu0 %v2376
        %v2452 = vpop.f32.mrb[0].mxu0
        %v2453 = vadd.f32 0.0, %v2452
        %v2454 = vpop.f32.mrb[0].mxu0
        %v2455 = vpop.f32.mrb[0].mxu0
        %v2456 = vadd.f32 0.0, %v2455
        %v2457 = vpop.f32.mrb[0].mxu0
        %2458 = vdwg.mxu0
        %2459 = vmax.xlane.f32.xlu0 %v2413
        %v2460 = vpop.xlane.xlu0 %2459
        %2461 = vmax.xlane.f32.xlu0 %v2416
        %v2462 = vpop.xlane.xlu0 %2461
        %2463 = vmax.xlane.f32.xlu0 %v2421
        %v2464 = vpop.xlane.xlu0 %2463
        %2465 = vmax.xlane.f32.xlu0 %v2424
        %v2466 = vpop.xlane.xlu0 %2465
        %2467 = vmax.xlane.f32.xlu0 %v2429
        %v2468 = vpop.xlane.xlu0 %2467
        %2469 = vmax.xlane.f32.xlu0 %v2432
        %v2470 = vpop.xlane.xlu0 %2469
        %2471 = vmax.xlane.f32.xlu0 %v2437
        %v2472 = vpop.xlane.xlu0 %2471
        %2473 = vmax.xlane.f32.xlu0 %v2440
        %v2474 = vpop.xlane.xlu0 %2473
        %2475 = vmax.xlane.f32.xlu0 %v2445
        %v2476 = vpop.xlane.xlu0 %2475
        %2477 = vmax.xlane.f32.xlu0 %v2448
        %v2478 = vpop.xlane.xlu0 %2477
        %2479 = vmax.xlane.f32.xlu0 %v2453
        %v2480 = vpop.xlane.xlu0 %2479
        %2481 = vmax.xlane.f32.xlu0 %v2456
        %v2482 = vpop.xlane.xlu0 %2481
        %v2483 = vsub.f32 %v2413, %v2460
        %v2484 = vsub.f32 %v2416, %v2462
        %v2485 = vsub.f32 %v2421, %v2464
        %v2486 = vsub.f32 %v2424, %v2466
        %v2487 = vsub.f32 %v2429, %v2468
        %v2488 = vsub.f32 %v2432, %v2470
        %v2489 = vsub.f32 %v2437, %v2472
        %v2490 = vsub.f32 %v2440, %v2474
        %v2491 = vsub.f32 %v2445, %v2476
        %v2492 = vsub.f32 %v2448, %v2478
        %v2493 = vsub.f32 %v2453, %v2480
        %v2494 = vsub.f32 %v2456, %v2482
        %v2495 = vmul.f32 %v2483, 1.442695
        %v2496 = vpow.pop %v2495
        %v2497 = vmul.f32 %v2484, 1.442695
        %v2498 = vpow.pop %v2497
        %v2499 = vmul.f32 %v2485, 1.442695
        %v2500 = vpow.pop %v2499
        %v2501 = vmul.f32 %v2486, 1.442695
        %v2502 = vpow.pop %v2501
        %v2503 = vmul.f32 %v2487, 1.442695
        %v2504 = vpow.pop %v2503
        %v2505 = vmul.f32 %v2488, 1.442695
        %v2506 = vpow.pop %v2505
        %v2507 = vmul.f32 %v2489, 1.442695
        %v2508 = vpow.pop %v2507
        %v2509 = vmul.f32 %v2490, 1.442695
        %v2510 = vpow.pop %v2509
        %v2511 = vmul.f32 %v2491, 1.442695
        %v2512 = vpow.pop %v2511
        %v2513 = vmul.f32 %v2492, 1.442695
        %v2514 = vpow.pop %v2513
        %v2515 = vmul.f32 %v2493, 1.442695
        %v2516 = vpow.pop %v2515
        %v2517 = vmul.f32 %v2494, 1.442695
        %v2518 = vpow.pop %v2517
        %2519 = vadd.xlane.f32.xlu0 %v2496
        %v2520 = vpop.xlane.xlu0 %2519
        %2521 = vadd.xlane.f32.xlu0 %v2498
        %v2522 = vpop.xlane.xlu0 %2521
        %2523 = vadd.xlane.f32.xlu0 %v2500
        %v2524 = vpop.xlane.xlu0 %2523
        %2525 = vadd.xlane.f32.xlu0 %v2502
        %v2526 = vpop.xlane.xlu0 %2525
        %2527 = vadd.xlane.f32.xlu0 %v2504
        %v2528 = vpop.xlane.xlu0 %2527
        %2529 = vadd.xlane.f32.xlu0 %v2506
        %v2530 = vpop.xlane.xlu0 %2529
        %2531 = vadd.xlane.f32.xlu0 %v2508
        %v2532 = vpop.xlane.xlu0 %2531
        %2533 = vadd.xlane.f32.xlu0 %v2510
        %v2534 = vpop.xlane.xlu0 %2533
        %2535 = vadd.xlane.f32.xlu0 %v2512
        %v2536 = vpop.xlane.xlu0 %2535
        %2537 = vadd.xlane.f32.xlu0 %v2514
        %v2538 = vpop.xlane.xlu0 %2537
        %2539 = vadd.xlane.f32.xlu0 %v2516
        %v2540 = vpop.xlane.xlu0 %2539
        %2541 = vadd.xlane.f32.xlu0 %v2518
        %v2542 = vpop.xlane.xlu0 %2541
        %v2543 = vrcp.pop %v2520
        %v2544 = vrcp.pop %v2522
        %v2545 = vrcp.pop %v2524
        %v2546 = vrcp.pop %v2526
        %v2547 = vrcp.pop %v2528
        %v2548 = vrcp.pop %v2530
        %v2549 = vrcp.pop %v2532
        %v2550 = vrcp.pop %v2534
        %v2551 = vrcp.pop %v2536
        %v2552 = vrcp.pop %v2538
        %v2553 = vrcp.pop %v2540
        %v2554 = vrcp.pop %v2542
        %v2555 = vmul.f32 %v2496, %v2543
        %v2556 = vmul.f32 %v2498, %v2544
        %v2557 = vmul.f32 %v2500, %v2545
        %v2558 = vmul.f32 %v2502, %v2546
        %v2559 = vmul.f32 %v2504, %v2547
        %v2560 = vmul.f32 %v2506, %v2548
        %v2561 = vmul.f32 %v2508, %v2549
        %v2562 = vmul.f32 %v2510, %v2550
        %v2563 = vmul.f32 %v2512, %v2551
        %v2564 = vmul.f32 %v2514, %v2552
        %v2565 = vmul.f32 %v2516, %v2553
        %v2566 = vmul.f32 %v2518, %v2554
        %v2567 = vpack.c.bf16 %v2556, %v2555
        %v2568 = vpack.c.bf16 %v2558, %v2557
        %v2569 = vpack.c.bf16 %v2560, %v2559
        %v2570 = vpack.c.bf16 %v2562, %v2561
        %v2571 = vpack.c.bf16 %v2564, %v2563
        %v2572 = vpack.c.bf16 %v2566, %v2565
        %2573 = vrot.lane.b32.xlu0 %v1074, 48
        %v2574 = vpop.permute.xlu0 %2573
        %2575 = vrot.lane.b32.xlu0 %v1075, 48
        %v2576 = vpop.permute.xlu0 %2575
        %2577 = vrot.lane.b32.xlu0 %v1076, 48
        %v2578 = vpop.permute.xlu0 %2577
        %2579 = vrot.lane.b32.xlu0 %v1077, 48
        %v2580 = vpop.permute.xlu0 %2579
        %2581 = vrot.lane.b32.xlu0 %v1078, 48
        %v2582 = vpop.permute.xlu0 %2581
        %2583 = vrot.lane.b32.xlu0 %v1079, 48
        %v2584 = vpop.permute.xlu0 %2583
        %2585 = vrot.lane.b32.xlu0 %v1080, 48
        %v2586 = vpop.permute.xlu0 %2585
        %2587 = vrot.lane.b32.xlu0 %v1081, 48
        %v2588 = vpop.permute.xlu0 %2587
        %2597 = vmatprep.subr.bf16.mxu0 0
        %2598 = vmatpush1.bf16.msra.mxu0 %v2574
        %2599 = vmatprep.subr.bf16.mxu0 0
        %2600 = vmatpush1.bf16.msra.mxu0 %v2576
        %2601 = vmatprep.subr.bf16.mxu0 0
        %2602 = vmatpush1.bf16.msra.mxu0 %v2578
        %2603 = vmatprep.subr.bf16.mxu0 0
        %2604 = vmatpush1.bf16.msra.mxu0 %v2580
        %2605 = vmatprep.subr.bf16.mxu0 0
        %2606 = vmatpush1.bf16.msra.mxu0 %v2582
        %2607 = vmatprep.subr.bf16.mxu0 0
        %2608 = vmatpush1.bf16.msra.mxu0 %v2584
        %2609 = vmatprep.subr.bf16.mxu0 0
        %2610 = vmatpush1.bf16.msra.mxu0 %v2586
        %2611 = vmatprep.subr.bf16.mxu0 0
        %2612 = vmatpush1.bf16.msra.mxu0 %v2588
        %2613 = vmatprep.subr.bf16.mxu0 0
        %2614 = vmatpush1.bf16.msra.mxu0 0
        %2615 = vmatprep.subr.bf16.mxu0 0
        %2616 = vmatpush1.bf16.msra.mxu0 0
        %2617 = vmatprep.subr.bf16.mxu0 0
        %2618 = vmatpush1.bf16.msra.mxu0 0
        %2619 = vmatprep.subr.bf16.mxu0 0
        %2620 = vmatpush1.bf16.msra.mxu0 0
        %2621 = vmatprep.subr.bf16.mxu0 0
        %2622 = vmatpush1.bf16.msra.mxu0 0
        %2623 = vmatprep.subr.bf16.mxu0 0
        %2624 = vmatpush1.bf16.msra.mxu0 0
        %2625 = vmatprep.subr.bf16.mxu0 0
        %2626 = vmatpush1.bf16.msra.mxu0 0
        %2627 = vmatprep.subr.bf16.mxu0 0
        %2628 = vmatpush1.bf16.msra.mxu0 0
        %2629 = vmatprep.mubr.bf16.mxu0 0
        %2630 = vmatmul.mubr.bf16.gmra.mrb[0].mxu0 %v2567
        %v2631 = vpop.f32.mrb[0].mxu0
        %v2632 = vadd.f32 0.0, %v2631
        %v2633 = vpop.f32.mrb[0].mxu0
        %v2634 = vpop.f32.mrb[0].mxu0
        %v2635 = vadd.f32 0.0, %v2634
        %v2636 = vpop.f32.mrb[0].mxu0
        %2637 = vmatprep.mubr.bf16.mxu0 0
        %2638 = vmatmul.mubr.bf16.gmra.mrb[0].mxu0 %v2568
        %v2639 = vpop.f32.mrb[0].mxu0
        %v2640 = vadd.f32 0.0, %v2639
        %v2641 = vpop.f32.mrb[0].mxu0
        %v2642 = vpop.f32.mrb[0].mxu0
        %v2643 = vadd.f32 0.0, %v2642
        %v2644 = vpop.f32.mrb[0].mxu0
        %2645 = vmatprep.mubr.bf16.mxu0 0
        %2646 = vmatmul.mubr.bf16.gmra.mrb[0].mxu0 %v2569
        %v2647 = vpop.f32.mrb[0].mxu0
        %v2648 = vadd.f32 0.0, %v2647
        %v2649 = vpop.f32.mrb[0].mxu0
        %v2650 = vpop.f32.mrb[0].mxu0
        %v2651 = vadd.f32 0.0, %v2650
        %v2652 = vpop.f32.mrb[0].mxu0
        %2653 = vmatprep.mubr.bf16.mxu0 0
        %2654 = vmatmul.mubr.bf16.gmra.mrb[0].mxu0 %v2570
        %v2655 = vpop.f32.mrb[0].mxu0
        %v2656 = vadd.f32 0.0, %v2655
        %v2657 = vpop.f32.mrb[0].mxu0
        %v2658 = vpop.f32.mrb[0].mxu0
        %v2659 = vadd.f32 0.0, %v2658
        %v2660 = vpop.f32.mrb[0].mxu0
        %2661 = vmatprep.mubr.bf16.mxu0 0
        %2662 = vmatmul.mubr.bf16.gmra.mrb[0].mxu0 %v2571
        %v2663 = vpop.f32.mrb[0].mxu0
        %v2664 = vadd.f32 0.0, %v2663
        %v2665 = vpop.f32.mrb[0].mxu0
        %v2666 = vpop.f32.mrb[0].mxu0
        %v2667 = vadd.f32 0.0, %v2666
        %v2668 = vpop.f32.mrb[0].mxu0
        %2669 = vmatprep.mubr.bf16.mxu0 0
        %2670 = vmatmul.mubr.bf16.gmra.mrb[0].mxu0 %v2572
        %v2671 = vpop.f32.mrb[0].mxu0
        %v2672 = vadd.f32 0.0, %v2671
        %v2673 = vpop.f32.mrb[0].mxu0
        %v2674 = vpop.f32.mrb[0].mxu0
        %v2675 = vadd.f32 0.0, %v2674
        %v2676 = vpop.f32.mrb[0].mxu0
        %2677 = vdwg.mxu0
        %v2678 = vpack.c.bf16 %v2289, %v2286
        %v2679 = vpack.c.bf16 %v2297, %v2294
        %v2680 = vpack.c.bf16 %v2305, %v2302
        %v2681 = vpack.c.bf16 %v2313, %v2310
        %v2682 = vpack.c.bf16 %v2321, %v2318
        %v2683 = vpack.c.bf16 %v2329, %v2326
        %v2684 = vpack.c.bf16 %v2337, %v2334
        %v2685 = vpack.c.bf16 %v2345, %v2342
        %v2686 = vpack.c.bf16 %v2635, %v2632
        %v2687 = vpack.c.bf16 %v2643, %v2640
        %v2688 = vpack.c.bf16 %v2651, %v2648
        %v2689 = vpack.c.bf16 %v2659, %v2656
        %v2690 = vpack.c.bf16 %v2667, %v2664
        %v2691 = vpack.c.bf16 %v2675, %v2672
        %v2694 = vunpack.c.l.b16 %v1090
        %v2695 = vunpack.c.l.b16 %v1091
        %v2696 = vpack.c.b16 %v2695, %v2694
        %v2699 = vsel %vm1096, %v2678, 0
        %v2702 = vsel %vm1096, %v2679, 0
        %v2705 = vsel %vm1096, %v2680, 0
        %v2708 = vsel %vm1096, %v2681, 0
        %v2711 = vsel %vm1096, %v2682, 0
        %v2714 = vsel %vm1096, %v2683, 0
        %v2717 = vsel %vm1096, %v2684, 0
        %v2720 = vsel %vm1096, %v2685, 0
        %v2723 = vsel %vm1096, %v2686, 0
        %v2726 = vsel %vm1096, %v2687, 0
        %v2729 = vsel %vm1096, %v2688, 0
        %v2732 = vsel %vm1096, %v2689, 0
        %v2735 = vsel %vm1096, %v2690, 0
        %v2738 = vsel %vm1096, %v2691, 0
        %2740 = vmatprep.subr.bf16.mxu0 0
        %2741 = vmatpush1.bf16.msra.mxu0 %v2696
        %2742 = vmatprep.subr.bf16.mxu0 0
        %2743 = vmatpush1.bf16.msra.mxu0 0
        %2744 = vmatprep.subr.bf16.mxu0 0
        %2745 = vmatpush1.bf16.msra.mxu0 0
        %2746 = vmatprep.subr.bf16.mxu0 0
        %2747 = vmatpush1.bf16.msra.mxu0 0
        %2748 = vmatprep.subr.bf16.mxu0 0
        %2749 = vmatpush1.bf16.msra.mxu0 0
        %2750 = vmatprep.subr.bf16.mxu0 0
        %2751 = vmatpush1.bf16.msra.mxu0 0
        %2752 = vmatprep.subr.bf16.mxu0 0
        %2753 = vmatpush1.bf16.msra.mxu0 0
        %2754 = vmatprep.subr.bf16.mxu0 0
        %2755 = vmatpush1.bf16.msra.mxu0 0
        %2756 = vmatprep.subr.bf16.mxu0 0
        %2757 = vmatpush1.bf16.msra.mxu0 0
        %2758 = vmatprep.subr.bf16.mxu0 0
        %2759 = vmatpush1.bf16.msra.mxu0 0
        %2760 = vmatprep.subr.bf16.mxu0 0
        %2761 = vmatpush1.bf16.msra.mxu0 0
        %2762 = vmatprep.subr.bf16.mxu0 0
        %2763 = vmatpush1.bf16.msra.mxu0 0
        %2764 = vmatprep.subr.bf16.mxu0 0
        %2765 = vmatpush1.bf16.msra.mxu0 0
        %2766 = vmatprep.subr.bf16.mxu0 0
        %2767 = vmatpush1.bf16.msra.mxu0 0
        %2768 = vmatprep.subr.bf16.mxu0 0
        %2769 = vmatpush1.bf16.msra.mxu0 0
        %2770 = vmatprep.subr.bf16.mxu0 0
        %2771 = vmatpush1.bf16.msra.mxu0 0
        %2772 = vmatprep.mubr.bf16.mxu0 0
        %2773 = vmatmul.mubr.bf16.gmra.mrb[0].mxu0 %v2699
        %v2774 = vpop.f32.mrb[0].mxu0
        %v2775 = vadd.f32 0.0, %v2774
        %v2776 = vpop.f32.mrb[0].mxu0
        %v2777 = vpop.f32.mrb[0].mxu0
        %v2778 = vadd.f32 0.0, %v2777
        %v2779 = vpop.f32.mrb[0].mxu0
        %2780 = vmatprep.mubr.bf16.mxu0 0
        %2781 = vmatmul.mubr.bf16.gmra.mrb[0].mxu0 %v2702
        %v2782 = vpop.f32.mrb[0].mxu0
        %v2783 = vadd.f32 0.0, %v2782
        %v2784 = vpop.f32.mrb[0].mxu0
        %v2785 = vpop.f32.mrb[0].mxu0
        %v2786 = vadd.f32 0.0, %v2785
        %v2787 = vpop.f32.mrb[0].mxu0
        %2788 = vmatprep.mubr.bf16.mxu0 0
        %2789 = vmatmul.mubr.bf16.gmra.mrb[0].mxu0 %v2705
        %v2790 = vpop.f32.mrb[0].mxu0
        %v2791 = vadd.f32 0.0, %v2790
        %v2792 = vpop.f32.mrb[0].mxu0
        %v2793 = vpop.f32.mrb[0].mxu0
        %v2794 = vadd.f32 0.0, %v2793
        %v2795 = vpop.f32.mrb[0].mxu0
        %2796 = vmatprep.mubr.bf16.mxu0 0
        %2797 = vmatmul.mubr.bf16.gmra.mrb[0].mxu0 %v2708
        %v2798 = vpop.f32.mrb[0].mxu0
        %v2799 = vadd.f32 0.0, %v2798
        %v2800 = vpop.f32.mrb[0].mxu0
        %v2801 = vpop.f32.mrb[0].mxu0
        %v2802 = vadd.f32 0.0, %v2801
        %v2803 = vpop.f32.mrb[0].mxu0
        %2804 = vmatprep.mubr.bf16.mxu0 0
        %2805 = vmatmul.mubr.bf16.gmra.mrb[0].mxu0 %v2711
        %v2806 = vpop.f32.mrb[0].mxu0
        %v2807 = vadd.f32 0.0, %v2806
        %v2808 = vpop.f32.mrb[0].mxu0
        %v2809 = vpop.f32.mrb[0].mxu0
        %v2810 = vadd.f32 0.0, %v2809
        %v2811 = vpop.f32.mrb[0].mxu0
        %2812 = vmatprep.mubr.bf16.mxu0 0
        %2813 = vmatmul.mubr.bf16.gmra.mrb[0].mxu0 %v2714
        %v2814 = vpop.f32.mrb[0].mxu0
        %v2815 = vadd.f32 0.0, %v2814
        %v2816 = vpop.f32.mrb[0].mxu0
        %v2817 = vpop.f32.mrb[0].mxu0
        %v2818 = vadd.f32 0.0, %v2817
        %v2819 = vpop.f32.mrb[0].mxu0
        %2820 = vmatprep.mubr.bf16.mxu0 0
        %2821 = vmatmul.mubr.bf16.gmra.mrb[0].mxu0 %v2717
        %v2822 = vpop.f32.mrb[0].mxu0
        %v2823 = vadd.f32 0.0, %v2822
        %v2824 = vpop.f32.mrb[0].mxu0
        %v2825 = vpop.f32.mrb[0].mxu0
        %v2826 = vadd.f32 0.0, %v2825
        %v2827 = vpop.f32.mrb[0].mxu0
        %2828 = vmatprep.mubr.bf16.mxu0 0
        %2829 = vmatmul.mubr.bf16.gmra.mrb[0].mxu0 %v2720
        %v2830 = vpop.f32.mrb[0].mxu0
        %v2831 = vadd.f32 0.0, %v2830
        %v2832 = vpop.f32.mrb[0].mxu0
        %v2833 = vpop.f32.mrb[0].mxu0
        %v2834 = vadd.f32 0.0, %v2833
        %v2835 = vpop.f32.mrb[0].mxu0
        %2836 = vmatprep.mubr.bf16.mxu0 0
        %2837 = vmatmul.mubr.bf16.gmra.mrb[0].mxu0 %v2723
        %v2838 = vpop.f32.mrb[0].mxu0
        %v2839 = vadd.f32 0.0, %v2838
        %v2840 = vpop.f32.mrb[0].mxu0
        %v2841 = vpop.f32.mrb[0].mxu0
        %v2842 = vadd.f32 0.0, %v2841
        %v2843 = vpop.f32.mrb[0].mxu0
        %2844 = vmatprep.mubr.bf16.mxu0 0
        %2845 = vmatmul.mubr.bf16.gmra.mrb[0].mxu0 %v2726
        %v2846 = vpop.f32.mrb[0].mxu0
        %v2847 = vadd.f32 0.0, %v2846
        %v2848 = vpop.f32.mrb[0].mxu0
        %v2849 = vpop.f32.mrb[0].mxu0
        %v2850 = vadd.f32 0.0, %v2849
        %v2851 = vpop.f32.mrb[0].mxu0
        %2852 = vmatprep.mubr.bf16.mxu0 0
        %2853 = vmatmul.mubr.bf16.gmra.mrb[0].mxu0 %v2729
        %v2854 = vpop.f32.mrb[0].mxu0
        %v2855 = vadd.f32 0.0, %v2854
        %v2856 = vpop.f32.mrb[0].mxu0
        %v2857 = vpop.f32.mrb[0].mxu0
        %v2858 = vadd.f32 0.0, %v2857
        %v2859 = vpop.f32.mrb[0].mxu0
        %2860 = vmatprep.mubr.bf16.mxu0 0
        %2861 = vmatmul.mubr.bf16.gmra.mrb[0].mxu0 %v2732
        %v2862 = vpop.f32.mrb[0].mxu0
        %v2863 = vadd.f32 0.0, %v2862
        %v2864 = vpop.f32.mrb[0].mxu0
        %v2865 = vpop.f32.mrb[0].mxu0
        %v2866 = vadd.f32 0.0, %v2865
        %v2867 = vpop.f32.mrb[0].mxu0
        %2868 = vmatprep.mubr.bf16.mxu0 0
        %2869 = vmatmul.mubr.bf16.gmra.mrb[0].mxu0 %v2735
        %v2870 = vpop.f32.mrb[0].mxu0
        %v2871 = vadd.f32 0.0, %v2870
        %v2872 = vpop.f32.mrb[0].mxu0
        %v2873 = vpop.f32.mrb[0].mxu0
        %v2874 = vadd.f32 0.0, %v2873
        %v2875 = vpop.f32.mrb[0].mxu0
        %2876 = vmatprep.mubr.bf16.mxu0 0
        %2877 = vmatmul.mubr.bf16.gmra.mrb[0].mxu0 %v2738
        %v2878 = vpop.f32.mrb[0].mxu0
        %v2879 = vadd.f32 0.0, %v2878
        %v2880 = vpop.f32.mrb[0].mxu0
        %v2881 = vpop.f32.mrb[0].mxu0
        %v2882 = vadd.f32 0.0, %v2881
        %v2883 = vpop.f32.mrb[0].mxu0
        %2884 = vdwg.mxu0
        %v2887 = vunpack.c.l.b16 %v1088
        %v2888 = vunpack.c.l.b16 %v1089
        %v2889 = vpack.c.b16 %v2888, %v2887
        %v2892 = vsel %vm1096, %v1874, 0
        %v2895 = vsel %vm1096, %v1875, 0
        %v2898 = vsel %vm1096, %v1876, 0
        %v2901 = vsel %vm1096, %v1877, 0
        %v2904 = vsel %vm1096, %v1878, 0
        %v2907 = vsel %vm1096, %v1879, 0
        %v2910 = vsel %vm1096, %v1880, 0
        %v2913 = vsel %vm1096, %v1881, 0
        %v2916 = vsel %vm1096, %v1882, 0
        %v2919 = vsel %vm1096, %v1883, 0
        %v2922 = vsel %vm1096, %v1884, 0
        %v2925 = vsel %vm1096, %v1885, 0
        %v2928 = vsel %vm1096, %v1886, 0
        %v2931 = vsel %vm1096, %v1887, 0
        %2933 = vmatprep.subr.bf16.mxu0 0
        %2934 = vmatpush1.bf16.msra.mxu0 %v2889
        %2935 = vmatprep.subr.bf16.mxu0 0
        %2936 = vmatpush1.bf16.msra.mxu0 0
        %2937 = vmatprep.subr.bf16.mxu0 0
        %2938 = vmatpush1.bf16.msra.mxu0 0
        %2939 = vmatprep.subr.bf16.mxu0 0
        %2940 = vmatpush1.bf16.msra.mxu0 0
        %2941 = vmatprep.subr.bf16.mxu0 0
        %2942 = vmatpush1.bf16.msra.mxu0 0
        %2943 = vmatprep.subr.bf16.mxu0 0
        %2944 = vmatpush1.bf16.msra.mxu0 0
        %2945 = vmatprep.subr.bf16.mxu0 0
        %2946 = vmatpush1.bf16.msra.mxu0 0
        %2947 = vmatprep.subr.bf16.mxu0 0
        %2948 = vmatpush1.bf16.msra.mxu0 0
        %2949 = vmatprep.subr.bf16.mxu0 0
        %2950 = vmatpush1.bf16.msra.mxu0 0
        %2951 = vmatprep.subr.bf16.mxu0 0
        %2952 = vmatpush1.bf16.msra.mxu0 0
        %2953 = vmatprep.subr.bf16.mxu0 0
        %2954 = vmatpush1.bf16.msra.mxu0 0
        %2955 = vmatprep.subr.bf16.mxu0 0
        %2956 = vmatpush1.bf16.msra.mxu0 0
        %2957 = vmatprep.subr.bf16.mxu0 0
        %2958 = vmatpush1.bf16.msra.mxu0 0
        %2959 = vmatprep.subr.bf16.mxu0 0
        %2960 = vmatpush1.bf16.msra.mxu0 0
        %2961 = vmatprep.subr.bf16.mxu0 0
        %2962 = vmatpush1.bf16.msra.mxu0 0
        %2963 = vmatprep.subr.bf16.mxu0 0
        %2964 = vmatpush1.bf16.msra.mxu0 0
        %2965 = vmatprep.mubr.bf16.mxu0 0
        %2966 = vmatmul.mubr.bf16.gmra.mrb[0].mxu0 %v2892
        %v2967 = vpop.f32.mrb[0].mxu0
        %v2968 = vadd.f32 %v2775, %v2967
        %v2969 = vpop.f32.mrb[0].mxu0
        %v2970 = vpop.f32.mrb[0].mxu0
        %v2971 = vadd.f32 %v2778, %v2970
        %v2972 = vpop.f32.mrb[0].mxu0
        %2973 = vmatprep.mubr.bf16.mxu0 0
        %2974 = vmatmul.mubr.bf16.gmra.mrb[0].mxu0 %v2895
        %v2975 = vpop.f32.mrb[0].mxu0
        %v2976 = vadd.f32 %v2783, %v2975
        %v2977 = vpop.f32.mrb[0].mxu0
        %v2978 = vpop.f32.mrb[0].mxu0
        %v2979 = vadd.f32 %v2786, %v2978
        %v2980 = vpop.f32.mrb[0].mxu0
        %2981 = vmatprep.mubr.bf16.mxu0 0
        %2982 = vmatmul.mubr.bf16.gmra.mrb[0].mxu0 %v2898
        %v2983 = vpop.f32.mrb[0].mxu0
        %v2984 = vadd.f32 %v2791, %v2983
        %v2985 = vpop.f32.mrb[0].mxu0
        %v2986 = vpop.f32.mrb[0].mxu0
        %v2987 = vadd.f32 %v2794, %v2986
        %v2988 = vpop.f32.mrb[0].mxu0
        %2989 = vmatprep.mubr.bf16.mxu0 0
        %2990 = vmatmul.mubr.bf16.gmra.mrb[0].mxu0 %v2901
        %v2991 = vpop.f32.mrb[0].mxu0
        %v2992 = vadd.f32 %v2799, %v2991
        %v2993 = vpop.f32.mrb[0].mxu0
        %v2994 = vpop.f32.mrb[0].mxu0
        %v2995 = vadd.f32 %v2802, %v2994
        %v2996 = vpop.f32.mrb[0].mxu0
        %2997 = vmatprep.mubr.bf16.mxu0 0
        %2998 = vmatmul.mubr.bf16.gmra.mrb[0].mxu0 %v2904
        %v2999 = vpop.f32.mrb[0].mxu0
        %v3000 = vadd.f32 %v2807, %v2999
        %v3001 = vpop.f32.mrb[0].mxu0
        %v3002 = vpop.f32.mrb[0].mxu0
        %v3003 = vadd.f32 %v2810, %v3002
        %v3004 = vpop.f32.mrb[0].mxu0
        %3005 = vmatprep.mubr.bf16.mxu0 0
        %3006 = vmatmul.mubr.bf16.gmra.mrb[0].mxu0 %v2907
        %v3007 = vpop.f32.mrb[0].mxu0
        %v3008 = vadd.f32 %v2815, %v3007
        %v3009 = vpop.f32.mrb[0].mxu0
        %v3010 = vpop.f32.mrb[0].mxu0
        %v3011 = vadd.f32 %v2818, %v3010
        %v3012 = vpop.f32.mrb[0].mxu0
        %3013 = vmatprep.mubr.bf16.mxu0 0
        %3014 = vmatmul.mubr.bf16.gmra.mrb[0].mxu0 %v2910
        %v3015 = vpop.f32.mrb[0].mxu0
        %v3016 = vadd.f32 %v2823, %v3015
        %v3017 = vpop.f32.mrb[0].mxu0
        %v3018 = vpop.f32.mrb[0].mxu0
        %v3019 = vadd.f32 %v2826, %v3018
        %v3020 = vpop.f32.mrb[0].mxu0
        %3021 = vmatprep.mubr.bf16.mxu0 0
        %3022 = vmatmul.mubr.bf16.gmra.mrb[0].mxu0 %v2913
        %v3023 = vpop.f32.mrb[0].mxu0
        %v3024 = vadd.f32 %v2831, %v3023
        %v3025 = vpop.f32.mrb[0].mxu0
        %v3026 = vpop.f32.mrb[0].mxu0
        %v3027 = vadd.f32 %v2834, %v3026
        %v3028 = vpop.f32.mrb[0].mxu0
        %3029 = vmatprep.mubr.bf16.mxu0 0
        %3030 = vmatmul.mubr.bf16.gmra.mrb[0].mxu0 %v2916
        %v3031 = vpop.f32.mrb[0].mxu0
        %v3032 = vadd.f32 %v2839, %v3031
        %v3033 = vpop.f32.mrb[0].mxu0
        %v3034 = vpop.f32.mrb[0].mxu0
        %v3035 = vadd.f32 %v2842, %v3034
        %v3036 = vpop.f32.mrb[0].mxu0
        %3037 = vmatprep.mubr.bf16.mxu0 0
        %3038 = vmatmul.mubr.bf16.gmra.mrb[0].mxu0 %v2919
        %v3039 = vpop.f32.mrb[0].mxu0
        %v3040 = vadd.f32 %v2847, %v3039
        %v3041 = vpop.f32.mrb[0].mxu0
        %v3042 = vpop.f32.mrb[0].mxu0
        %v3043 = vadd.f32 %v2850, %v3042
        %v3044 = vpop.f32.mrb[0].mxu0
        %3045 = vmatprep.mubr.bf16.mxu0 0
        %3046 = vmatmul.mubr.bf16.gmra.mrb[0].mxu0 %v2922
        %v3047 = vpop.f32.mrb[0].mxu0
        %v3048 = vadd.f32 %v2855, %v3047
        %v3049 = vpop.f32.mrb[0].mxu0
        %v3050 = vpop.f32.mrb[0].mxu0
        %v3051 = vadd.f32 %v2858, %v3050
        %v3052 = vpop.f32.mrb[0].mxu0
        %3053 = vmatprep.mubr.bf16.mxu0 0
        %3054 = vmatmul.mubr.bf16.gmra.mrb[0].mxu0 %v2925
        %v3055 = vpop.f32.mrb[0].mxu0
        %v3056 = vadd.f32 %v2863, %v3055
        %v3057 = vpop.f32.mrb[0].mxu0
        %v3058 = vpop.f32.mrb[0].mxu0
        %v3059 = vadd.f32 %v2866, %v3058
        %v3060 = vpop.f32.mrb[0].mxu0
        %3061 = vmatprep.mubr.bf16.mxu0 0
        %3062 = vmatmul.mubr.bf16.gmra.mrb[0].mxu0 %v2928
        %v3063 = vpop.f32.mrb[0].mxu0
        %v3064 = vadd.f32 %v2871, %v3063
        %v3065 = vpop.f32.mrb[0].mxu0
        %v3066 = vpop.f32.mrb[0].mxu0
        %v3067 = vadd.f32 %v2874, %v3066
        %v3068 = vpop.f32.mrb[0].mxu0
        %3069 = vmatprep.mubr.bf16.mxu0 0
        %3070 = vmatmul.mubr.bf16.gmra.mrb[0].mxu0 %v2931
        %v3071 = vpop.f32.mrb[0].mxu0
        %v3072 = vadd.f32 %v2879, %v3071
        %v3073 = vpop.f32.mrb[0].mxu0
        %v3074 = vpop.f32.mrb[0].mxu0
        %v3075 = vadd.f32 %v2882, %v3074
        %v3076 = vpop.f32.mrb[0].mxu0
        %3077 = vdwg.mxu0
        %3078 = vrot.lane.b32.xlu0 %v1074, 96
        %v3079 = vpop.permute.xlu0 %3078
        %3080 = vrot.lane.b32.xlu0 %v1075, 96
        %v3081 = vpop.permute.xlu0 %3080
        %3082 = vrot.lane.b32.xlu0 %v1076, 96
        %v3083 = vpop.permute.xlu0 %3082
        %3084 = vrot.lane.b32.xlu0 %v1077, 96
        %v3085 = vpop.permute.xlu0 %3084
        %3086 = vrot.lane.b32.xlu0 %v1078, 96
        %v3087 = vpop.permute.xlu0 %3086
        %3088 = vrot.lane.b32.xlu0 %v1079, 96
        %v3089 = vpop.permute.xlu0 %3088
        %3090 = vrot.lane.b32.xlu0 %v1080, 96
        %v3091 = vpop.permute.xlu0 %3090
        %3092 = vrot.lane.b32.xlu0 %v1081, 96
        %v3093 = vpop.permute.xlu0 %3092
        %v3095 = vsel %vm1096, %v3079, 0
        %v3098 = vsel %vm1096, %v3081, 0
        %v3101 = vsel %vm1096, %v3083, 0
        %v3104 = vsel %vm1096, %v3085, 0
        %v3107 = vsel %vm1096, %v3087, 0
        %v3110 = vsel %vm1096, %v3089, 0
        %v3113 = vsel %vm1096, %v3091, 0
        %v3116 = vsel %vm1096, %v3093, 0
        %3118 = vmatprep.subr.bf16.mxu0 0
        %3119 = vmatpush1.bf16.msra.mxu0 %v1071
        %3120 = vmatprep.subr.bf16.mxu0 0
        %3121 = vmatpush1.bf16.msra.mxu0 0
        %3122 = vmatprep.subr.bf16.mxu0 0
        %3123 = vmatpush1.bf16.msra.mxu0 0
        %3124 = vmatprep.subr.bf16.mxu0 0
        %3125 = vmatpush1.bf16.msra.mxu0 0
        %3126 = vmatprep.subr.bf16.mxu0 0
        %3127 = vmatpush1.bf16.msra.mxu0 0
        %3128 = vmatprep.subr.bf16.mxu0 0
        %3129 = vmatpush1.bf16.msra.mxu0 0
        %3130 = vmatprep.subr.bf16.mxu0 0
        %3131 = vmatpush1.bf16.msra.mxu0 0
        %3132 = vmatprep.subr.bf16.mxu0 0
        %3133 = vmatpush1.bf16.msra.mxu0 0
        %3134 = vmatprep.subr.bf16.mxu0 0
        %3135 = vmatpush1.bf16.msra.mxu0 0
        %3136 = vmatprep.subr.bf16.mxu0 0
        %3137 = vmatpush1.bf16.msra.mxu0 0
        %3138 = vmatprep.subr.bf16.mxu0 0
        %3139 = vmatpush1.bf16.msra.mxu0 0
        %3140 = vmatprep.subr.bf16.mxu0 0
        %3141 = vmatpush1.bf16.msra.mxu0 0
        %3142 = vmatprep.subr.bf16.mxu0 0
        %3143 = vmatpush1.bf16.msra.mxu0 0
        %3144 = vmatprep.subr.bf16.mxu0 0
        %3145 = vmatpush1.bf16.msra.mxu0 0
        %3146 = vmatprep.subr.bf16.mxu0 0
        %3147 = vmatpush1.bf16.msra.mxu0 0
        %3148 = vmatprep.subr.bf16.mxu0 0
        %3149 = vmatpush1.bf16.msra.mxu0 0
        %3150 = vmatprep.mubr.bf16.mxu0 0
        %3151 = vmatmul.mubr.bf16.gmra.mrb[0].mxu0 %v3095
        %v3152 = vpop.f32.mrb[0].mxu0
        %v3153 = vadd.f32 0.0, %v3152
        %v3154 = vpop.f32.mrb[0].mxu0
        %v3155 = vpop.f32.mrb[0].mxu0
        %v3156 = vadd.f32 0.0, %v3155
        %v3157 = vpop.f32.mrb[0].mxu0
        %3158 = vmatprep.mubr.bf16.mxu0 0
        %3159 = vmatmul.mubr.bf16.gmra.mrb[0].mxu0 %v3098
        %v3160 = vpop.f32.mrb[0].mxu0
        %v3161 = vadd.f32 0.0, %v3160
        %v3162 = vpop.f32.mrb[0].mxu0
        %v3163 = vpop.f32.mrb[0].mxu0
        %v3164 = vadd.f32 0.0, %v3163
        %v3165 = vpop.f32.mrb[0].mxu0
        %3166 = vmatprep.mubr.bf16.mxu0 0
        %3167 = vmatmul.mubr.bf16.gmra.mrb[0].mxu0 %v3101
        %v3168 = vpop.f32.mrb[0].mxu0
        %v3169 = vadd.f32 0.0, %v3168
        %v3170 = vpop.f32.mrb[0].mxu0
        %v3171 = vpop.f32.mrb[0].mxu0
        %v3172 = vadd.f32 0.0, %v3171
        %v3173 = vpop.f32.mrb[0].mxu0
        %3174 = vmatprep.mubr.bf16.mxu0 0
        %3175 = vmatmul.mubr.bf16.gmra.mrb[0].mxu0 %v3104
        %v3176 = vpop.f32.mrb[0].mxu0
        %v3177 = vadd.f32 0.0, %v3176
        %v3178 = vpop.f32.mrb[0].mxu0
        %v3179 = vpop.f32.mrb[0].mxu0
        %v3180 = vadd.f32 0.0, %v3179
        %v3181 = vpop.f32.mrb[0].mxu0
        %3182 = vmatprep.mubr.bf16.mxu0 0
        %3183 = vmatmul.mubr.bf16.gmra.mrb[0].mxu0 %v3107
        %v3184 = vpop.f32.mrb[0].mxu0
        %v3185 = vadd.f32 0.0, %v3184
        %v3186 = vpop.f32.mrb[0].mxu0
        %v3187 = vpop.f32.mrb[0].mxu0
        %v3188 = vadd.f32 0.0, %v3187
        %v3189 = vpop.f32.mrb[0].mxu0
        %3190 = vmatprep.mubr.bf16.mxu0 0
        %3191 = vmatmul.mubr.bf16.gmra.mrb[0].mxu0 %v3110
        %v3192 = vpop.f32.mrb[0].mxu0
        %v3193 = vadd.f32 0.0, %v3192
        %v3194 = vpop.f32.mrb[0].mxu0
        %v3195 = vpop.f32.mrb[0].mxu0
        %v3196 = vadd.f32 0.0, %v3195
        %v3197 = vpop.f32.mrb[0].mxu0
        %3198 = vmatprep.mubr.bf16.mxu0 0
        %3199 = vmatmul.mubr.bf16.gmra.mrb[0].mxu0 %v3113
        %v3200 = vpop.f32.mrb[0].mxu0
        %v3201 = vadd.f32 0.0, %v3200
        %v3202 = vpop.f32.mrb[0].mxu0
        %v3203 = vpop.f32.mrb[0].mxu0
        %v3204 = vadd.f32 0.0, %v3203
        %v3205 = vpop.f32.mrb[0].mxu0
        %3206 = vmatprep.mubr.bf16.mxu0 0
        %3207 = vmatmul.mubr.bf16.gmra.mrb[0].mxu0 %v3116
        %v3208 = vpop.f32.mrb[0].mxu0
        %v3209 = vadd.f32 0.0, %v3208
        %v3210 = vpop.f32.mrb[0].mxu0
        %v3211 = vpop.f32.mrb[0].mxu0
        %v3212 = vadd.f32 0.0, %v3211
        %v3213 = vpop.f32.mrb[0].mxu0
        %3214 = vdwg.mxu0
        %v3215 = vsel %vm1218, %v3153, -inf
        %3216 = vmax.xlane.f32.xlu0 %v3215
        %v3217 = vpop.xlane.xlu0 %3216
        %v3218 = vsel %vm1218, %v3156, -inf
        %3219 = vmax.xlane.f32.xlu0 %v3218
        %v3220 = vpop.xlane.xlu0 %3219
        %v3221 = vsel %vm1218, %v3161, -inf
        %3222 = vmax.xlane.f32.xlu0 %v3221
        %v3223 = vpop.xlane.xlu0 %3222
        %v3224 = vsel %vm1218, %v3164, -inf
        %3225 = vmax.xlane.f32.xlu0 %v3224
        %v3226 = vpop.xlane.xlu0 %3225
        %v3227 = vsel %vm1218, %v3169, -inf
        %3228 = vmax.xlane.f32.xlu0 %v3227
        %v3229 = vpop.xlane.xlu0 %3228
        %v3230 = vsel %vm1218, %v3172, -inf
        %3231 = vmax.xlane.f32.xlu0 %v3230
        %v3232 = vpop.xlane.xlu0 %3231
        %v3233 = vsel %vm1218, %v3177, -inf
        %3234 = vmax.xlane.f32.xlu0 %v3233
        %v3235 = vpop.xlane.xlu0 %3234
        %v3236 = vsel %vm1218, %v3180, -inf
        %3237 = vmax.xlane.f32.xlu0 %v3236
        %v3238 = vpop.xlane.xlu0 %3237
        %v3239 = vsel %vm1218, %v3185, -inf
        %3240 = vmax.xlane.f32.xlu0 %v3239
        %v3241 = vpop.xlane.xlu0 %3240
        %v3242 = vsel %vm1218, %v3188, -inf
        %3243 = vmax.xlane.f32.xlu0 %v3242
        %v3244 = vpop.xlane.xlu0 %3243
        %v3245 = vsel %vm1218, %v3193, -inf
        %3246 = vmax.xlane.f32.xlu0 %v3245
        %v3247 = vpop.xlane.xlu0 %3246
        %v3248 = vsel %vm1218, %v3196, -inf
        %3249 = vmax.xlane.f32.xlu0 %v3248
        %v3250 = vpop.xlane.xlu0 %3249
        %v3251 = vsel %vm1218, %v3201, -inf
        %3252 = vmax.xlane.f32.xlu0 %v3251
        %v3253 = vpop.xlane.xlu0 %3252
        %v3254 = vsel %vm1218, %v3204, -inf
        %3255 = vmax.xlane.f32.xlu0 %v3254
        %v3256 = vpop.xlane.xlu0 %3255
        %v3257 = vsel %vm1218, %v3209, -inf
        %3258 = vmax.xlane.f32.xlu0 %v3257
        %v3259 = vpop.xlane.xlu0 %3258
        %v3260 = vsel %vm1218, %v3212, -inf
        %3261 = vmax.xlane.f32.xlu0 %v3260
        %v3262 = vpop.xlane.xlu0 %3261
        %v3263 = vsub.f32 %v3153, %v3217
        %v3264 = vsub.f32 %v3156, %v3220
        %v3265 = vsub.f32 %v3161, %v3223
        %v3266 = vsub.f32 %v3164, %v3226
        %v3267 = vsub.f32 %v3169, %v3229
        %v3268 = vsub.f32 %v3172, %v3232
        %v3269 = vsub.f32 %v3177, %v3235
        %v3270 = vsub.f32 %v3180, %v3238
        %v3271 = vsub.f32 %v3185, %v3241
        %v3272 = vsub.f32 %v3188, %v3244
        %v3273 = vsub.f32 %v3193, %v3247
        %v3274 = vsub.f32 %v3196, %v3250
        %v3275 = vsub.f32 %v3201, %v3253
        %v3276 = vsub.f32 %v3204, %v3256
        %v3277 = vsub.f32 %v3209, %v3259
        %v3278 = vsub.f32 %v3212, %v3262
        %v3279 = vmul.f32 %v3263, 1.442695
        %v3280 = vpow.pop %v3279
        %v3281 = vmul.f32 %v3264, 1.442695
        %v3282 = vpow.pop %v3281
        %v3283 = vmul.f32 %v3265, 1.442695
        %v3284 = vpow.pop %v3283
        %v3285 = vmul.f32 %v3266, 1.442695
        %v3286 = vpow.pop %v3285
        %v3287 = vmul.f32 %v3267, 1.442695
        %v3288 = vpow.pop %v3287
        %v3289 = vmul.f32 %v3268, 1.442695
        %v3290 = vpow.pop %v3289
        %v3291 = vmul.f32 %v3269, 1.442695
        %v3292 = vpow.pop %v3291
        %v3293 = vmul.f32 %v3270, 1.442695
        %v3294 = vpow.pop %v3293
        %v3295 = vmul.f32 %v3271, 1.442695
        %v3296 = vpow.pop %v3295
        %v3297 = vmul.f32 %v3272, 1.442695
        %v3298 = vpow.pop %v3297
        %v3299 = vmul.f32 %v3273, 1.442695
        %v3300 = vpow.pop %v3299
        %v3301 = vmul.f32 %v3274, 1.442695
        %v3302 = vpow.pop %v3301
        %v3303 = vmul.f32 %v3275, 1.442695
        %v3304 = vpow.pop %v3303
        %v3305 = vmul.f32 %v3276, 1.442695
        %v3306 = vpow.pop %v3305
        %v3307 = vmul.f32 %v3277, 1.442695
        %v3308 = vpow.pop %v3307
        %v3309 = vmul.f32 %v3278, 1.442695
        %v3310 = vpow.pop %v3309
        %v3311 = vsel %vm1218, %v3280, 0.0
        %3312 = vadd.xlane.f32.xlu0 %v3311
        %v3313 = vpop.xlane.xlu0 %3312
        %v3314 = vsel %vm1218, %v3282, 0.0
        %3315 = vadd.xlane.f32.xlu0 %v3314
        %v3316 = vpop.xlane.xlu0 %3315
        %v3317 = vsel %vm1218, %v3284, 0.0
        %3318 = vadd.xlane.f32.xlu0 %v3317
        %v3319 = vpop.xlane.xlu0 %3318
        %v3320 = vsel %vm1218, %v3286, 0.0
        %3321 = vadd.xlane.f32.xlu0 %v3320
        %v3322 = vpop.xlane.xlu0 %3321
        %v3323 = vsel %vm1218, %v3288, 0.0
        %3324 = vadd.xlane.f32.xlu0 %v3323
        %v3325 = vpop.xlane.xlu0 %3324
        %v3326 = vsel %vm1218, %v3290, 0.0
        %3327 = vadd.xlane.f32.xlu0 %v3326
        %v3328 = vpop.xlane.xlu0 %3327
        %v3329 = vsel %vm1218, %v3292, 0.0
        %3330 = vadd.xlane.f32.xlu0 %v3329
        %v3331 = vpop.xlane.xlu0 %3330
        %v3332 = vsel %vm1218, %v3294, 0.0
        %3333 = vadd.xlane.f32.xlu0 %v3332
        %v3334 = vpop.xlane.xlu0 %3333
        %v3335 = vsel %vm1218, %v3296, 0.0
        %3336 = vadd.xlane.f32.xlu0 %v3335
        %v3337 = vpop.xlane.xlu0 %3336
        %v3338 = vsel %vm1218, %v3298, 0.0
        %3339 = vadd.xlane.f32.xlu0 %v3338
        %v3340 = vpop.xlane.xlu0 %3339
        %v3341 = vsel %vm1218, %v3300, 0.0
        %3342 = vadd.xlane.f32.xlu0 %v3341
        %v3343 = vpop.xlane.xlu0 %3342
        %v3344 = vsel %vm1218, %v3302, 0.0
        %3345 = vadd.xlane.f32.xlu0 %v3344
        %v3346 = vpop.xlane.xlu0 %3345
        %v3347 = vsel %vm1218, %v3304, 0.0
        %3348 = vadd.xlane.f32.xlu0 %v3347
        %v3349 = vpop.xlane.xlu0 %3348
        %v3350 = vsel %vm1218, %v3306, 0.0
        %3351 = vadd.xlane.f32.xlu0 %v3350
        %v3352 = vpop.xlane.xlu0 %3351
        %v3353 = vsel %vm1218, %v3308, 0.0
        %3354 = vadd.xlane.f32.xlu0 %v3353
        %v3355 = vpop.xlane.xlu0 %3354
        %v3356 = vsel %vm1218, %v3310, 0.0
        %3357 = vadd.xlane.f32.xlu0 %v3356
        %v3358 = vpop.xlane.xlu0 %3357
        %v3359 = vrcp.pop %v3313
        %v3360 = vrcp.pop %v3316
        %v3361 = vrcp.pop %v3319
        %v3362 = vrcp.pop %v3322
        %v3363 = vrcp.pop %v3325
        %v3364 = vrcp.pop %v3328
        %v3365 = vrcp.pop %v3331
        %v3366 = vrcp.pop %v3334
        %v3367 = vrcp.pop %v3337
        %v3368 = vrcp.pop %v3340
        %v3369 = vrcp.pop %v3343
        %v3370 = vrcp.pop %v3346
        %v3371 = vrcp.pop %v3349
        %v3372 = vrcp.pop %v3352
        %v3373 = vrcp.pop %v3355
        %v3374 = vrcp.pop %v3358
        %v3375 = vmul.f32 %v3280, %v3359
        %v3376 = vmul.f32 %v3282, %v3360
        %v3377 = vmul.f32 %v3284, %v3361
        %v3378 = vmul.f32 %v3286, %v3362
        %v3379 = vmul.f32 %v3288, %v3363
        %v3380 = vmul.f32 %v3290, %v3364
        %v3381 = vmul.f32 %v3292, %v3365
        %v3382 = vmul.f32 %v3294, %v3366
        %v3383 = vmul.f32 %v3296, %v3367
        %v3384 = vmul.f32 %v3298, %v3368
        %v3385 = vmul.f32 %v3300, %v3369
        %v3386 = vmul.f32 %v3302, %v3370
        %v3387 = vmul.f32 %v3304, %v3371
        %v3388 = vmul.f32 %v3306, %v3372
        %v3389 = vmul.f32 %v3308, %v3373
        %v3390 = vmul.f32 %v3310, %v3374
        %v3391 = vpack.c.bf16 %v3376, %v3375
        %v3392 = vpack.c.bf16 %v3378, %v3377
        %v3393 = vpack.c.bf16 %v3380, %v3379
        %v3394 = vpack.c.bf16 %v3382, %v3381
        %v3395 = vpack.c.bf16 %v3384, %v3383
        %v3396 = vpack.c.bf16 %v3386, %v3385
        %v3397 = vpack.c.bf16 %v3388, %v3387
        %v3398 = vpack.c.bf16 %v3390, %v3389
        %3399 = vrot.lane.b32.xlu0 %v1082, 32
        %v3400 = vpop.permute.xlu0 %3399
        %3401 = vrot.lane.b32.xlu0 %v1083, 32
        %v3402 = vpop.permute.xlu0 %3401
        %3403 = vrot.lane.b32.xlu0 %v1084, 32
        %v3404 = vpop.permute.xlu0 %3403
        %3405 = vrot.lane.b32.xlu0 %v1085, 32
        %v3406 = vpop.permute.xlu0 %3405
        %3407 = vrot.lane.b32.xlu0 %v1086, 32
        %v3408 = vpop.permute.xlu0 %3407
        %3409 = vrot.lane.b32.xlu0 %v1087, 32
        %v3410 = vpop.permute.xlu0 %3409
        %v3418 = vsel %vm1218, %v3391, 0
        %v3421 = vsel %vm1218, %v3392, 0
        %v3424 = vsel %vm1218, %v3393, 0
        %v3427 = vsel %vm1218, %v3394, 0
        %v3430 = vsel %vm1218, %v3395, 0
        %v3433 = vsel %vm1218, %v3396, 0
        %v3436 = vsel %vm1218, %v3397, 0
        %v3439 = vsel %vm1218, %v3398, 0
        %3441 = vmatprep.subr.bf16.mxu0 0
        %3442 = vmatpush1.bf16.msra.mxu0 %v3400
        %3443 = vmatprep.subr.bf16.mxu0 0
        %3444 = vmatpush1.bf16.msra.mxu0 %v3402
        %3445 = vmatprep.subr.bf16.mxu0 0
        %3446 = vmatpush1.bf16.msra.mxu0 %v3404
        %3447 = vmatprep.subr.bf16.mxu0 0
        %3448 = vmatpush1.bf16.msra.mxu0 %v3406
        %3449 = vmatprep.subr.bf16.mxu0 0
        %3450 = vmatpush1.bf16.msra.mxu0 %v3408
        %3451 = vmatprep.subr.bf16.mxu0 0
        %3452 = vmatpush1.bf16.msra.mxu0 %v3410
        %3453 = vmatprep.subr.bf16.mxu0 0
        %3454 = vmatpush1.bf16.msra.mxu0 0
        %3455 = vmatprep.subr.bf16.mxu0 0
        %3456 = vmatpush1.bf16.msra.mxu0 0
        %3457 = vmatprep.subr.bf16.mxu0 0
        %3458 = vmatpush1.bf16.msra.mxu0 0
        %3459 = vmatprep.subr.bf16.mxu0 0
        %3460 = vmatpush1.bf16.msra.mxu0 0
        %3461 = vmatprep.subr.bf16.mxu0 0
        %3462 = vmatpush1.bf16.msra.mxu0 0
        %3463 = vmatprep.subr.bf16.mxu0 0
        %3464 = vmatpush1.bf16.msra.mxu0 0
        %3465 = vmatprep.subr.bf16.mxu0 0
        %3466 = vmatpush1.bf16.msra.mxu0 0
        %3467 = vmatprep.subr.bf16.mxu0 0
        %3468 = vmatpush1.bf16.msra.mxu0 0
        %3469 = vmatprep.subr.bf16.mxu0 0
        %3470 = vmatpush1.bf16.msra.mxu0 0
        %3471 = vmatprep.subr.bf16.mxu0 0
        %3472 = vmatpush1.bf16.msra.mxu0 0
        %3473 = vmatprep.mubr.bf16.mxu0 0
        %3474 = vmatmul.mubr.bf16.gmra.mrb[0].mxu0 %v3418
        %v3475 = vpop.f32.mrb[0].mxu0
        %v3476 = vadd.f32 0.0, %v3475
        %v3477 = vpop.f32.mrb[0].mxu0
        %v3478 = vpop.f32.mrb[0].mxu0
        %v3479 = vadd.f32 0.0, %v3478
        %v3480 = vpop.f32.mrb[0].mxu0
        %3481 = vmatprep.mubr.bf16.mxu0 0
        %3482 = vmatmul.mubr.bf16.gmra.mrb[0].mxu0 %v3421
        %v3483 = vpop.f32.mrb[0].mxu0
        %v3484 = vadd.f32 0.0, %v3483
        %v3485 = vpop.f32.mrb[0].mxu0
        %v3486 = vpop.f32.mrb[0].mxu0
        %v3487 = vadd.f32 0.0, %v3486
        %v3488 = vpop.f32.mrb[0].mxu0
        %3489 = vmatprep.mubr.bf16.mxu0 0
        %3490 = vmatmul.mubr.bf16.gmra.mrb[0].mxu0 %v3424
        %v3491 = vpop.f32.mrb[0].mxu0
        %v3492 = vadd.f32 0.0, %v3491
        %v3493 = vpop.f32.mrb[0].mxu0
        %v3494 = vpop.f32.mrb[0].mxu0
        %v3495 = vadd.f32 0.0, %v3494
        %v3496 = vpop.f32.mrb[0].mxu0
        %3497 = vmatprep.mubr.bf16.mxu0 0
        %3498 = vmatmul.mubr.bf16.gmra.mrb[0].mxu0 %v3427
        %v3499 = vpop.f32.mrb[0].mxu0
        %v3500 = vadd.f32 0.0, %v3499
        %v3501 = vpop.f32.mrb[0].mxu0
        %v3502 = vpop.f32.mrb[0].mxu0
        %v3503 = vadd.f32 0.0, %v3502
        %v3504 = vpop.f32.mrb[0].mxu0
        %3505 = vmatprep.mubr.bf16.mxu0 0
        %3506 = vmatmul.mubr.bf16.gmra.mrb[0].mxu0 %v3430
        %v3507 = vpop.f32.mrb[0].mxu0
        %v3508 = vadd.f32 0.0, %v3507
        %v3509 = vpop.f32.mrb[0].mxu0
        %v3510 = vpop.f32.mrb[0].mxu0
        %v3511 = vadd.f32 0.0, %v3510
        %v3512 = vpop.f32.mrb[0].mxu0
        %3513 = vmatprep.mubr.bf16.mxu0 0
        %3514 = vmatmul.mubr.bf16.gmra.mrb[0].mxu0 %v3433
        %v3515 = vpop.f32.mrb[0].mxu0
        %v3516 = vadd.f32 0.0, %v3515
        %v3517 = vpop.f32.mrb[0].mxu0
        %v3518 = vpop.f32.mrb[0].mxu0
        %v3519 = vadd.f32 0.0, %v3518
        %v3520 = vpop.f32.mrb[0].mxu0
        %3521 = vmatprep.mubr.bf16.mxu0 0
        %3522 = vmatmul.mubr.bf16.gmra.mrb[0].mxu0 %v3436
        %v3523 = vpop.f32.mrb[0].mxu0
        %v3524 = vadd.f32 0.0, %v3523
        %v3525 = vpop.f32.mrb[0].mxu0
        %v3526 = vpop.f32.mrb[0].mxu0
        %v3527 = vadd.f32 0.0, %v3526
        %v3528 = vpop.f32.mrb[0].mxu0
        %3529 = vmatprep.mubr.bf16.mxu0 0
        %3530 = vmatmul.mubr.bf16.gmra.mrb[0].mxu0 %v3439
        %v3531 = vpop.f32.mrb[0].mxu0
        %v3532 = vadd.f32 0.0, %v3531
        %v3533 = vpop.f32.mrb[0].mxu0
        %v3534 = vpop.f32.mrb[0].mxu0
        %v3535 = vadd.f32 0.0, %v3534
        %v3536 = vpop.f32.mrb[0].mxu0
        %3537 = vdwg.mxu0
        %3538 = vrot.lane.b32.xlu0 %v1082, 96
        %v3539 = vpop.permute.xlu0 %3538
        %3540 = vrot.lane.b32.xlu0 %v1083, 96
        %v3541 = vpop.permute.xlu0 %3540
        %3542 = vrot.lane.b32.xlu0 %v1084, 96
        %v3543 = vpop.permute.xlu0 %3542
        %3544 = vrot.lane.b32.xlu0 %v1085, 96
        %v3545 = vpop.permute.xlu0 %3544
        %3546 = vrot.lane.b32.xlu0 %v1086, 96
        %v3547 = vpop.permute.xlu0 %3546
        %3548 = vrot.lane.b32.xlu0 %v1087, 96
        %v3549 = vpop.permute.xlu0 %3548
        %v3551 = vsel %vm1096, %v3539, 0
        %v3554 = vsel %vm1096, %v3541, 0
        %v3557 = vsel %vm1096, %v3543, 0
        %v3560 = vsel %vm1096, %v3545, 0
        %v3563 = vsel %vm1096, %v3547, 0
        %v3566 = vsel %vm1096, %v3549, 0
        %3568 = vmatprep.subr.bf16.mxu0 0
        %3569 = vmatpush1.bf16.msra.mxu0 %v1070
        %3570 = vmatprep.subr.bf16.mxu0 0
        %3571 = vmatpush1.bf16.msra.mxu0 0
        %3572 = vmatprep.subr.bf16.mxu0 0
        %3573 = vmatpush1.bf16.msra.mxu0 0
        %3574 = vmatprep.subr.bf16.mxu0 0
        %3575 = vmatpush1.bf16.msra.mxu0 0
        %3576 = vmatprep.subr.bf16.mxu0 0
        %3577 = vmatpush1.bf16.msra.mxu0 0
        %3578 = vmatprep.subr.bf16.mxu0 0
        %3579 = vmatpush1.bf16.msra.mxu0 0
        %3580 = vmatprep.subr.bf16.mxu0 0
        %3581 = vmatpush1.bf16.msra.mxu0 0
        %3582 = vmatprep.subr.bf16.mxu0 0
        %3583 = vmatpush1.bf16.msra.mxu0 0
        %3584 = vmatprep.subr.bf16.mxu0 0
        %3585 = vmatpush1.bf16.msra.mxu0 0
        %3586 = vmatprep.subr.bf16.mxu0 0
        %3587 = vmatpush1.bf16.msra.mxu0 0
        %3588 = vmatprep.subr.bf16.mxu0 0
        %3589 = vmatpush1.bf16.msra.mxu0 0
        %3590 = vmatprep.subr.bf16.mxu0 0
        %3591 = vmatpush1.bf16.msra.mxu0 0
        %3592 = vmatprep.subr.bf16.mxu0 0
        %3593 = vmatpush1.bf16.msra.mxu0 0
        %3594 = vmatprep.subr.bf16.mxu0 0
        %3595 = vmatpush1.bf16.msra.mxu0 0
        %3596 = vmatprep.subr.bf16.mxu0 0
        %3597 = vmatpush1.bf16.msra.mxu0 0
        %3598 = vmatprep.subr.bf16.mxu0 0
        %3599 = vmatpush1.bf16.msra.mxu0 0
        %3600 = vmatprep.mubr.bf16.mxu0 0
        %3601 = vmatmul.mubr.bf16.gmra.mrb[0].mxu0 %v3551
        %v3602 = vpop.f32.mrb[0].mxu0
        %v3603 = vadd.f32 0.0, %v3602
        %v3604 = vpop.f32.mrb[0].mxu0
        %v3605 = vpop.f32.mrb[0].mxu0
        %v3606 = vadd.f32 0.0, %v3605
        %v3607 = vpop.f32.mrb[0].mxu0
        %3608 = vmatprep.mubr.bf16.mxu0 0
        %3609 = vmatmul.mubr.bf16.gmra.mrb[0].mxu0 %v3554
        %v3610 = vpop.f32.mrb[0].mxu0
        %v3611 = vadd.f32 0.0, %v3610
        %v3612 = vpop.f32.mrb[0].mxu0
        %v3613 = vpop.f32.mrb[0].mxu0
        %v3614 = vadd.f32 0.0, %v3613
        %v3615 = vpop.f32.mrb[0].mxu0
        %3616 = vmatprep.mubr.bf16.mxu0 0
        %3617 = vmatmul.mubr.bf16.gmra.mrb[0].mxu0 %v3557
        %v3618 = vpop.f32.mrb[0].mxu0
        %v3619 = vadd.f32 0.0, %v3618
        %v3620 = vpop.f32.mrb[0].mxu0
        %v3621 = vpop.f32.mrb[0].mxu0
        %v3622 = vadd.f32 0.0, %v3621
        %v3623 = vpop.f32.mrb[0].mxu0
        %3624 = vmatprep.mubr.bf16.mxu0 0
        %3625 = vmatmul.mubr.bf16.gmra.mrb[0].mxu0 %v3560
        %v3626 = vpop.f32.mrb[0].mxu0
        %v3627 = vadd.f32 0.0, %v3626
        %v3628 = vpop.f32.mrb[0].mxu0
        %v3629 = vpop.f32.mrb[0].mxu0
        %v3630 = vadd.f32 0.0, %v3629
        %v3631 = vpop.f32.mrb[0].mxu0
        %3632 = vmatprep.mubr.bf16.mxu0 0
        %3633 = vmatmul.mubr.bf16.gmra.mrb[0].mxu0 %v3563
        %v3634 = vpop.f32.mrb[0].mxu0
        %v3635 = vadd.f32 0.0, %v3634
        %v3636 = vpop.f32.mrb[0].mxu0
        %v3637 = vpop.f32.mrb[0].mxu0
        %v3638 = vadd.f32 0.0, %v3637
        %v3639 = vpop.f32.mrb[0].mxu0
        %3640 = vmatprep.mubr.bf16.mxu0 0
        %3641 = vmatmul.mubr.bf16.gmra.mrb[0].mxu0 %v3566
        %v3642 = vpop.f32.mrb[0].mxu0
        %v3643 = vadd.f32 0.0, %v3642
        %v3644 = vpop.f32.mrb[0].mxu0
        %v3645 = vpop.f32.mrb[0].mxu0
        %v3646 = vadd.f32 0.0, %v3645
        %v3647 = vpop.f32.mrb[0].mxu0
        %3648 = vdwg.mxu0
        %3649 = vmax.xlane.f32.xlu0 %v3603
        %v3650 = vpop.xlane.xlu0 %3649
        %3651 = vmax.xlane.f32.xlu0 %v3606
        %v3652 = vpop.xlane.xlu0 %3651
        %3653 = vmax.xlane.f32.xlu0 %v3611
        %v3654 = vpop.xlane.xlu0 %3653
        %3655 = vmax.xlane.f32.xlu0 %v3614
        %v3656 = vpop.xlane.xlu0 %3655
        %3657 = vmax.xlane.f32.xlu0 %v3619
        %v3658 = vpop.xlane.xlu0 %3657
        %3659 = vmax.xlane.f32.xlu0 %v3622
        %v3660 = vpop.xlane.xlu0 %3659
        %3661 = vmax.xlane.f32.xlu0 %v3627
        %v3662 = vpop.xlane.xlu0 %3661
        %3663 = vmax.xlane.f32.xlu0 %v3630
        %v3664 = vpop.xlane.xlu0 %3663
        %3665 = vmax.xlane.f32.xlu0 %v3635
        %v3666 = vpop.xlane.xlu0 %3665
        %3667 = vmax.xlane.f32.xlu0 %v3638
        %v3668 = vpop.xlane.xlu0 %3667
        %3669 = vmax.xlane.f32.xlu0 %v3643
        %v3670 = vpop.xlane.xlu0 %3669
        %3671 = vmax.xlane.f32.xlu0 %v3646
        %v3672 = vpop.xlane.xlu0 %3671
        %v3673 = vsub.f32 %v3603, %v3650
        %v3674 = vsub.f32 %v3606, %v3652
        %v3675 = vsub.f32 %v3611, %v3654
        %v3676 = vsub.f32 %v3614, %v3656
        %v3677 = vsub.f32 %v3619, %v3658
        %v3678 = vsub.f32 %v3622, %v3660
        %v3679 = vsub.f32 %v3627, %v3662
        %v3680 = vsub.f32 %v3630, %v3664
        %v3681 = vsub.f32 %v3635, %v3666
        %v3682 = vsub.f32 %v3638, %v3668
        %v3683 = vsub.f32 %v3643, %v3670
        %v3684 = vsub.f32 %v3646, %v3672
        %v3685 = vmul.f32 %v3673, 1.442695
        %v3686 = vpow.pop %v3685
        %v3687 = vmul.f32 %v3674, 1.442695
        %v3688 = vpow.pop %v3687
        %v3689 = vmul.f32 %v3675, 1.442695
        %v3690 = vpow.pop %v3689
        %v3691 = vmul.f32 %v3676, 1.442695
        %v3692 = vpow.pop %v3691
        %v3693 = vmul.f32 %v3677, 1.442695
        %v3694 = vpow.pop %v3693
        %v3695 = vmul.f32 %v3678, 1.442695
        %v3696 = vpow.pop %v3695
        %v3697 = vmul.f32 %v3679, 1.442695
        %v3698 = vpow.pop %v3697
        %v3699 = vmul.f32 %v3680, 1.442695
        %v3700 = vpow.pop %v3699
        %v3701 = vmul.f32 %v3681, 1.442695
        %v3702 = vpow.pop %v3701
        %v3703 = vmul.f32 %v3682, 1.442695
        %v3704 = vpow.pop %v3703
        %v3705 = vmul.f32 %v3683, 1.442695
        %v3706 = vpow.pop %v3705
        %v3707 = vmul.f32 %v3684, 1.442695
        %v3708 = vpow.pop %v3707
        %3709 = vadd.xlane.f32.xlu0 %v3686
        %v3710 = vpop.xlane.xlu0 %3709
        %3711 = vadd.xlane.f32.xlu0 %v3688
        %v3712 = vpop.xlane.xlu0 %3711
        %3713 = vadd.xlane.f32.xlu0 %v3690
        %v3714 = vpop.xlane.xlu0 %3713
        %3715 = vadd.xlane.f32.xlu0 %v3692
        %v3716 = vpop.xlane.xlu0 %3715
        %3717 = vadd.xlane.f32.xlu0 %v3694
        %v3718 = vpop.xlane.xlu0 %3717
        %3719 = vadd.xlane.f32.xlu0 %v3696
        %v3720 = vpop.xlane.xlu0 %3719
        %3721 = vadd.xlane.f32.xlu0 %v3698
        %v3722 = vpop.xlane.xlu0 %3721
        %3723 = vadd.xlane.f32.xlu0 %v3700
        %v3724 = vpop.xlane.xlu0 %3723
        %3725 = vadd.xlane.f32.xlu0 %v3702
        %v3726 = vpop.xlane.xlu0 %3725
        %3727 = vadd.xlane.f32.xlu0 %v3704
        %v3728 = vpop.xlane.xlu0 %3727
        %3729 = vadd.xlane.f32.xlu0 %v3706
        %v3730 = vpop.xlane.xlu0 %3729
        %3731 = vadd.xlane.f32.xlu0 %v3708
        %v3732 = vpop.xlane.xlu0 %3731
        %v3733 = vrcp.pop %v3710
        %v3734 = vrcp.pop %v3712
        %v3735 = vrcp.pop %v3714
        %v3736 = vrcp.pop %v3716
        %v3737 = vrcp.pop %v3718
        %v3738 = vrcp.pop %v3720
        %v3739 = vrcp.pop %v3722
        %v3740 = vrcp.pop %v3724
        %v3741 = vrcp.pop %v3726
        %v3742 = vrcp.pop %v3728
        %v3743 = vrcp.pop %v3730
        %v3744 = vrcp.pop %v3732
        %v3745 = vmul.f32 %v3686, %v3733
        %v3746 = vmul.f32 %v3688, %v3734
        %v3747 = vmul.f32 %v3690, %v3735
        %v3748 = vmul.f32 %v3692, %v3736
        %v3749 = vmul.f32 %v3694, %v3737
        %v3750 = vmul.f32 %v3696, %v3738
        %v3751 = vmul.f32 %v3698, %v3739
        %v3752 = vmul.f32 %v3700, %v3740
        %v3753 = vmul.f32 %v3702, %v3741
        %v3754 = vmul.f32 %v3704, %v3742
        %v3755 = vmul.f32 %v3706, %v3743
        %v3756 = vmul.f32 %v3708, %v3744
        %v3757 = vpack.c.bf16 %v3746, %v3745
        %v3758 = vpack.c.bf16 %v3748, %v3747
        %v3759 = vpack.c.bf16 %v3750, %v3749
        %v3760 = vpack.c.bf16 %v3752, %v3751
        %v3761 = vpack.c.bf16 %v3754, %v3753
        %v3762 = vpack.c.bf16 %v3756, %v3755
        %3763 = vrot.lane.b32.xlu0 %v1074, 32
        %v3764 = vpop.permute.xlu0 %3763
        %3765 = vrot.lane.b32.xlu0 %v1075, 32
        %v3766 = vpop.permute.xlu0 %3765
        %3767 = vrot.lane.b32.xlu0 %v1076, 32
        %v3768 = vpop.permute.xlu0 %3767
        %3769 = vrot.lane.b32.xlu0 %v1077, 32
        %v3770 = vpop.permute.xlu0 %3769
        %3771 = vrot.lane.b32.xlu0 %v1078, 32
        %v3772 = vpop.permute.xlu0 %3771
        %3773 = vrot.lane.b32.xlu0 %v1079, 32
        %v3774 = vpop.permute.xlu0 %3773
        %3775 = vrot.lane.b32.xlu0 %v1080, 32
        %v3776 = vpop.permute.xlu0 %3775
        %3777 = vrot.lane.b32.xlu0 %v1081, 32
        %v3778 = vpop.permute.xlu0 %3777
        %3787 = vmatprep.subr.bf16.mxu0 0
        %3788 = vmatpush1.bf16.msra.mxu0 %v3764
        %3789 = vmatprep.subr.bf16.mxu0 0
        %3790 = vmatpush1.bf16.msra.mxu0 %v3766
        %3791 = vmatprep.subr.bf16.mxu0 0
        %3792 = vmatpush1.bf16.msra.mxu0 %v3768
        %3793 = vmatprep.subr.bf16.mxu0 0
        %3794 = vmatpush1.bf16.msra.mxu0 %v3770
        %3795 = vmatprep.subr.bf16.mxu0 0
        %3796 = vmatpush1.bf16.msra.mxu0 %v3772
        %3797 = vmatprep.subr.bf16.mxu0 0
        %3798 = vmatpush1.bf16.msra.mxu0 %v3774
        %3799 = vmatprep.subr.bf16.mxu0 0
        %3800 = vmatpush1.bf16.msra.mxu0 %v3776
        %3801 = vmatprep.subr.bf16.mxu0 0
        %3802 = vmatpush1.bf16.msra.mxu0 %v3778
        %3803 = vmatprep.subr.bf16.mxu0 0
        %3804 = vmatpush1.bf16.msra.mxu0 0
        %3805 = vmatprep.subr.bf16.mxu0 0
        %3806 = vmatpush1.bf16.msra.mxu0 0
        %3807 = vmatprep.subr.bf16.mxu0 0
        %3808 = vmatpush1.bf16.msra.mxu0 0
        %3809 = vmatprep.subr.bf16.mxu0 0
        %3810 = vmatpush1.bf16.msra.mxu0 0
        %3811 = vmatprep.subr.bf16.mxu0 0
        %3812 = vmatpush1.bf16.msra.mxu0 0
        %3813 = vmatprep.subr.bf16.mxu0 0
        %3814 = vmatpush1.bf16.msra.mxu0 0
        %3815 = vmatprep.subr.bf16.mxu0 0
        %3816 = vmatpush1.bf16.msra.mxu0 0
        %3817 = vmatprep.subr.bf16.mxu0 0
        %3818 = vmatpush1.bf16.msra.mxu0 0
        %3819 = vmatprep.mubr.bf16.mxu0 0
        %3820 = vmatmul.mubr.bf16.gmra.mrb[0].mxu0 %v3757
        %v3821 = vpop.f32.mrb[0].mxu0
        %v3822 = vadd.f32 0.0, %v3821
        %v3823 = vpop.f32.mrb[0].mxu0
        %v3824 = vpop.f32.mrb[0].mxu0
        %v3825 = vadd.f32 0.0, %v3824
        %v3826 = vpop.f32.mrb[0].mxu0
        %3827 = vmatprep.mubr.bf16.mxu0 0
        %3828 = vmatmul.mubr.bf16.gmra.mrb[0].mxu0 %v3758
        %v3829 = vpop.f32.mrb[0].mxu0
        %v3830 = vadd.f32 0.0, %v3829
        %v3831 = vpop.f32.mrb[0].mxu0
        %v3832 = vpop.f32.mrb[0].mxu0
        %v3833 = vadd.f32 0.0, %v3832
        %v3834 = vpop.f32.mrb[0].mxu0
        %3835 = vmatprep.mubr.bf16.mxu0 0
        %3836 = vmatmul.mubr.bf16.gmra.mrb[0].mxu0 %v3759
        %v3837 = vpop.f32.mrb[0].mxu0
        %v3838 = vadd.f32 0.0, %v3837
        %v3839 = vpop.f32.mrb[0].mxu0
        %v3840 = vpop.f32.mrb[0].mxu0
        %v3841 = vadd.f32 0.0, %v3840
        %v3842 = vpop.f32.mrb[0].mxu0
        %3843 = vmatprep.mubr.bf16.mxu0 0
        %3844 = vmatmul.mubr.bf16.gmra.mrb[0].mxu0 %v3760
        %v3845 = vpop.f32.mrb[0].mxu0
        %v3846 = vadd.f32 0.0, %v3845
        %v3847 = vpop.f32.mrb[0].mxu0
        %v3848 = vpop.f32.mrb[0].mxu0
        %v3849 = vadd.f32 0.0, %v3848
        %v3850 = vpop.f32.mrb[0].mxu0
        %3851 = vmatprep.mubr.bf16.mxu0 0
        %3852 = vmatmul.mubr.bf16.gmra.mrb[0].mxu0 %v3761
        %v3853 = vpop.f32.mrb[0].mxu0
        %v3854 = vadd.f32 0.0, %v3853
        %v3855 = vpop.f32.mrb[0].mxu0
        %v3856 = vpop.f32.mrb[0].mxu0
        %v3857 = vadd.f32 0.0, %v3856
        %v3858 = vpop.f32.mrb[0].mxu0
        %3859 = vmatprep.mubr.bf16.mxu0 0
        %3860 = vmatmul.mubr.bf16.gmra.mrb[0].mxu0 %v3762
        %v3861 = vpop.f32.mrb[0].mxu0
        %v3862 = vadd.f32 0.0, %v3861
        %v3863 = vpop.f32.mrb[0].mxu0
        %v3864 = vpop.f32.mrb[0].mxu0
        %v3865 = vadd.f32 0.0, %v3864
        %v3866 = vpop.f32.mrb[0].mxu0
        %3867 = vdwg.mxu0
        %v3868 = vpack.c.bf16 %v3479, %v3476
        %v3869 = vpack.c.bf16 %v3487, %v3484
        %v3870 = vpack.c.bf16 %v3495, %v3492
        %v3871 = vpack.c.bf16 %v3503, %v3500
        %v3872 = vpack.c.bf16 %v3511, %v3508
        %v3873 = vpack.c.bf16 %v3519, %v3516
        %v3874 = vpack.c.bf16 %v3527, %v3524
        %v3875 = vpack.c.bf16 %v3535, %v3532
        %v3876 = vpack.c.bf16 %v3825, %v3822
        %v3877 = vpack.c.bf16 %v3833, %v3830
        %v3878 = vpack.c.bf16 %v3841, %v3838
        %v3879 = vpack.c.bf16 %v3849, %v3846
        %v3880 = vpack.c.bf16 %v3857, %v3854
        %v3881 = vpack.c.bf16 %v3865, %v3862
        %v3884 = vunpack.c.l.b16 %v1092
        %v3885 = vunpack.c.l.b16 %v1093
        %v3886 = vpack.c.b16 %v3885, %v3884
        %v3889 = vsel %vm1096, %v3868, 0
        %v3892 = vsel %vm1096, %v3869, 0
        %v3895 = vsel %vm1096, %v3870, 0
        %v3898 = vsel %vm1096, %v3871, 0
        %v3901 = vsel %vm1096, %v3872, 0
        %v3904 = vsel %vm1096, %v3873, 0
        %v3907 = vsel %vm1096, %v3874, 0
        %v3910 = vsel %vm1096, %v3875, 0
        %v3913 = vsel %vm1096, %v3876, 0
        %v3916 = vsel %vm1096, %v3877, 0
        %v3919 = vsel %vm1096, %v3878, 0
        %v3922 = vsel %vm1096, %v3879, 0
        %v3925 = vsel %vm1096, %v3880, 0
        %v3928 = vsel %vm1096, %v3881, 0
        %3930 = vmatprep.subr.bf16.mxu0 0
        %3931 = vmatpush1.bf16.msra.mxu0 %v3886
        %3932 = vmatprep.subr.bf16.mxu0 0
        %3933 = vmatpush1.bf16.msra.mxu0 0
        %3934 = vmatprep.subr.bf16.mxu0 0
        %3935 = vmatpush1.bf16.msra.mxu0 0
        %3936 = vmatprep.subr.bf16.mxu0 0
        %3937 = vmatpush1.bf16.msra.mxu0 0
        %3938 = vmatprep.subr.bf16.mxu0 0
        %3939 = vmatpush1.bf16.msra.mxu0 0
        %3940 = vmatprep.subr.bf16.mxu0 0
        %3941 = vmatpush1.bf16.msra.mxu0 0
        %3942 = vmatprep.subr.bf16.mxu0 0
        %3943 = vmatpush1.bf16.msra.mxu0 0
        %3944 = vmatprep.subr.bf16.mxu0 0
        %3945 = vmatpush1.bf16.msra.mxu0 0
        %3946 = vmatprep.subr.bf16.mxu0 0
        %3947 = vmatpush1.bf16.msra.mxu0 0
        %3948 = vmatprep.subr.bf16.mxu0 0
        %3949 = vmatpush1.bf16.msra.mxu0 0
        %3950 = vmatprep.subr.bf16.mxu0 0
        %3951 = vmatpush1.bf16.msra.mxu0 0
        %3952 = vmatprep.subr.bf16.mxu0 0
        %3953 = vmatpush1.bf16.msra.mxu0 0
        %3954 = vmatprep.subr.bf16.mxu0 0
        %3955 = vmatpush1.bf16.msra.mxu0 0
        %3956 = vmatprep.subr.bf16.mxu0 0
        %3957 = vmatpush1.bf16.msra.mxu0 0
        %3958 = vmatprep.subr.bf16.mxu0 0
        %3959 = vmatpush1.bf16.msra.mxu0 0
        %3960 = vmatprep.subr.bf16.mxu0 0
        %3961 = vmatpush1.bf16.msra.mxu0 0
        %3962 = vmatprep.mubr.bf16.mxu0 0
        %3963 = vmatmul.mubr.bf16.gmra.mrb[0].mxu0 %v3889
        %v3964 = vpop.f32.mrb[0].mxu0
        %v3965 = vadd.f32 0.0, %v3964
        %v3966 = vpop.f32.mrb[0].mxu0
        %v3967 = vpop.f32.mrb[0].mxu0
        %v3968 = vadd.f32 0.0, %v3967
        %v3969 = vpop.f32.mrb[0].mxu0
        %3970 = vmatprep.mubr.bf16.mxu0 0
        %3971 = vmatmul.mubr.bf16.gmra.mrb[0].mxu0 %v3892
        %v3972 = vpop.f32.mrb[0].mxu0
        %v3973 = vadd.f32 0.0, %v3972
        %v3974 = vpop.f32.mrb[0].mxu0
        %v3975 = vpop.f32.mrb[0].mxu0
        %v3976 = vadd.f32 0.0, %v3975
        %v3977 = vpop.f32.mrb[0].mxu0
        %3978 = vmatprep.mubr.bf16.mxu0 0
        %3979 = vmatmul.mubr.bf16.gmra.mrb[0].mxu0 %v3895
        %v3980 = vpop.f32.mrb[0].mxu0
        %v3981 = vadd.f32 0.0, %v3980
        %v3982 = vpop.f32.mrb[0].mxu0
        %v3983 = vpop.f32.mrb[0].mxu0
        %v3984 = vadd.f32 0.0, %v3983
        %v3985 = vpop.f32.mrb[0].mxu0
        %3986 = vmatprep.mubr.bf16.mxu0 0
        %3987 = vmatmul.mubr.bf16.gmra.mrb[0].mxu0 %v3898
        %v3988 = vpop.f32.mrb[0].mxu0
        %v3989 = vadd.f32 0.0, %v3988
        %v3990 = vpop.f32.mrb[0].mxu0
        %v3991 = vpop.f32.mrb[0].mxu0
        %v3992 = vadd.f32 0.0, %v3991
        %v3993 = vpop.f32.mrb[0].mxu0
        %3994 = vmatprep.mubr.bf16.mxu0 0
        %3995 = vmatmul.mubr.bf16.gmra.mrb[0].mxu0 %v3901
        %v3996 = vpop.f32.mrb[0].mxu0
        %v3997 = vadd.f32 0.0, %v3996
        %v3998 = vpop.f32.mrb[0].mxu0
        %v3999 = vpop.f32.mrb[0].mxu0
        %v4000 = vadd.f32 0.0, %v3999
        %v4001 = vpop.f32.mrb[0].mxu0
        %4002 = vmatprep.mubr.bf16.mxu0 0
        %4003 = vmatmul.mubr.bf16.gmra.mrb[0].mxu0 %v3904
        %v4004 = vpop.f32.mrb[0].mxu0
        %v4005 = vadd.f32 0.0, %v4004
        %v4006 = vpop.f32.mrb[0].mxu0
        %v4007 = vpop.f32.mrb[0].mxu0
        %v4008 = vadd.f32 0.0, %v4007
        %v4009 = vpop.f32.mrb[0].mxu0
        %4010 = vmatprep.mubr.bf16.mxu0 0
        %4011 = vmatmul.mubr.bf16.gmra.mrb[0].mxu0 %v3907
        %v4012 = vpop.f32.mrb[0].mxu0
        %v4013 = vadd.f32 0.0, %v4012
        %v4014 = vpop.f32.mrb[0].mxu0
        %v4015 = vpop.f32.mrb[0].mxu0
        %v4016 = vadd.f32 0.0, %v4015
        %v4017 = vpop.f32.mrb[0].mxu0
        %4018 = vmatprep.mubr.bf16.mxu0 0
        %4019 = vmatmul.mubr.bf16.gmra.mrb[0].mxu0 %v3910
        %v4020 = vpop.f32.mrb[0].mxu0
        %v4021 = vadd.f32 0.0, %v4020
        %v4022 = vpop.f32.mrb[0].mxu0
        %v4023 = vpop.f32.mrb[0].mxu0
        %v4024 = vadd.f32 0.0, %v4023
        %v4025 = vpop.f32.mrb[0].mxu0
        %4026 = vmatprep.mubr.bf16.mxu0 0
        %4027 = vmatmul.mubr.bf16.gmra.mrb[0].mxu0 %v3913
        %v4028 = vpop.f32.mrb[0].mxu0
        %v4029 = vadd.f32 0.0, %v4028
        %v4030 = vpop.f32.mrb[0].mxu0
        %v4031 = vpop.f32.mrb[0].mxu0
        %v4032 = vadd.f32 0.0, %v4031
        %v4033 = vpop.f32.mrb[0].mxu0
        %4034 = vmatprep.mubr.bf16.mxu0 0
        %4035 = vmatmul.mubr.bf16.gmra.mrb[0].mxu0 %v3916
        %v4036 = vpop.f32.mrb[0].mxu0
        %v4037 = vadd.f32 0.0, %v4036
        %v4038 = vpop.f32.mrb[0].mxu0
        %v4039 = vpop.f32.mrb[0].mxu0
        %v4040 = vadd.f32 0.0, %v4039
        %v4041 = vpop.f32.mrb[0].mxu0
        %4042 = vmatprep.mubr.bf16.mxu0 0
        %4043 = vmatmul.mubr.bf16.gmra.mrb[0].mxu0 %v3919
        %v4044 = vpop.f32.mrb[0].mxu0
        %v4045 = vadd.f32 0.0, %v4044
        %v4046 = vpop.f32.mrb[0].mxu0
        %v4047 = vpop.f32.mrb[0].mxu0
        %v4048 = vadd.f32 0.0, %v4047
        %v4049 = vpop.f32.mrb[0].mxu0
        %4050 = vmatprep.mubr.bf16.mxu0 0
        %4051 = vmatmul.mubr.bf16.gmra.mrb[0].mxu0 %v3922
        %v4052 = vpop.f32.mrb[0].mxu0
        %v4053 = vadd.f32 0.0, %v4052
        %v4054 = vpop.f32.mrb[0].mxu0
        %v4055 = vpop.f32.mrb[0].mxu0
        %v4056 = vadd.f32 0.0, %v4055
        %v4057 = vpop.f32.mrb[0].mxu0
        %4058 = vmatprep.mubr.bf16.mxu0 0
        %4059 = vmatmul.mubr.bf16.gmra.mrb[0].mxu0 %v3925
        %v4060 = vpop.f32.mrb[0].mxu0
        %v4061 = vadd.f32 0.0, %v4060
        %v4062 = vpop.f32.mrb[0].mxu0
        %v4063 = vpop.f32.mrb[0].mxu0
        %v4064 = vadd.f32 0.0, %v4063
        %v4065 = vpop.f32.mrb[0].mxu0
        %4066 = vmatprep.mubr.bf16.mxu0 0
        %4067 = vmatmul.mubr.bf16.gmra.mrb[0].mxu0 %v3928
        %v4068 = vpop.f32.mrb[0].mxu0
        %v4069 = vadd.f32 0.0, %v4068
        %v4070 = vpop.f32.mrb[0].mxu0
        %v4071 = vpop.f32.mrb[0].mxu0
        %v4072 = vadd.f32 0.0, %v4071
        %v4073 = vpop.f32.mrb[0].mxu0
        %4074 = vdwg.mxu0
        %v4075 = vadd.f32 %v2968, %v3965
        %v4076 = vadd.f32 %v2971, %v3968
        %v4077 = vadd.f32 %v2976, %v3973
        %v4078 = vadd.f32 %v2979, %v3976
        %v4079 = vadd.f32 %v2984, %v3981
        %v4080 = vadd.f32 %v2987, %v3984
        %v4081 = vadd.f32 %v2992, %v3989
        %v4082 = vadd.f32 %v2995, %v3992
        %v4083 = vadd.f32 %v3000, %v3997
        %v4084 = vadd.f32 %v3003, %v4000
        %v4085 = vadd.f32 %v3008, %v4005
        %v4086 = vadd.f32 %v3011, %v4008
        %v4087 = vadd.f32 %v3016, %v4013
        %v4088 = vadd.f32 %v3019, %v4016
        %v4089 = vadd.f32 %v3024, %v4021
        %v4090 = vadd.f32 %v3027, %v4024
        %v4091 = vadd.f32 %v3032, %v4029
        %v4092 = vadd.f32 %v3035, %v4032
        %v4093 = vadd.f32 %v3040, %v4037
        %v4094 = vadd.f32 %v3043, %v4040
        %v4095 = vadd.f32 %v3048, %v4045
        %v4096 = vadd.f32 %v3051, %v4048
        %v4097 = vadd.f32 %v3056, %v4053
        %v4098 = vadd.f32 %v3059, %v4056
        %v4099 = vadd.f32 %v3064, %v4061
        %v4100 = vadd.f32 %v3067, %v4064
        %v4101 = vadd.f32 %v3072, %v4069
        %v4102 = vadd.f32 %v3075, %v4072
        %4103 = vrot.lane.b32.xlu0 %v1074, 80
        %v4104 = vpop.permute.xlu0 %4103
        %4105 = vrot.lane.b32.xlu0 %v1075, 80
        %v4106 = vpop.permute.xlu0 %4105
        %4107 = vrot.lane.b32.xlu0 %v1076, 80
        %v4108 = vpop.permute.xlu0 %4107
        %4109 = vrot.lane.b32.xlu0 %v1077, 80
        %v4110 = vpop.permute.xlu0 %4109
        %4111 = vrot.lane.b32.xlu0 %v1078, 80
        %v4112 = vpop.permute.xlu0 %4111
        %4113 = vrot.lane.b32.xlu0 %v1079, 80
        %v4114 = vpop.permute.xlu0 %4113
        %4115 = vrot.lane.b32.xlu0 %v1080, 80
        %v4116 = vpop.permute.xlu0 %4115
        %4117 = vrot.lane.b32.xlu0 %v1081, 80
        %v4118 = vpop.permute.xlu0 %4117
        %v4120 = vsel %vm1096, %v4104, 0
        %v4123 = vsel %vm1096, %v4106, 0
        %v4126 = vsel %vm1096, %v4108, 0
        %v4129 = vsel %vm1096, %v4110, 0
        %v4132 = vsel %vm1096, %v4112, 0
        %v4135 = vsel %vm1096, %v4114, 0
        %v4138 = vsel %vm1096, %v4116, 0
        %v4141 = vsel %vm1096, %v4118, 0
        %4143 = vmatprep.subr.bf16.mxu0 0
        %4144 = vmatpush1.bf16.msra.mxu0 %v1073
        %4145 = vmatprep.subr.bf16.mxu0 0
        %4146 = vmatpush1.bf16.msra.mxu0 0
        %4147 = vmatprep.subr.bf16.mxu0 0
        %4148 = vmatpush1.bf16.msra.mxu0 0
        %4149 = vmatprep.subr.bf16.mxu0 0
        %4150 = vmatpush1.bf16.msra.mxu0 0
        %4151 = vmatprep.subr.bf16.mxu0 0
        %4152 = vmatpush1.bf16.msra.mxu0 0
        %4153 = vmatprep.subr.bf16.mxu0 0
        %4154 = vmatpush1.bf16.msra.mxu0 0
        %4155 = vmatprep.subr.bf16.mxu0 0
        %4156 = vmatpush1.bf16.msra.mxu0 0
        %4157 = vmatprep.subr.bf16.mxu0 0
        %4158 = vmatpush1.bf16.msra.mxu0 0
        %4159 = vmatprep.subr.bf16.mxu0 0
        %4160 = vmatpush1.bf16.msra.mxu0 0
        %4161 = vmatprep.subr.bf16.mxu0 0
        %4162 = vmatpush1.bf16.msra.mxu0 0
        %4163 = vmatprep.subr.bf16.mxu0 0
        %4164 = vmatpush1.bf16.msra.mxu0 0
        %4165 = vmatprep.subr.bf16.mxu0 0
        %4166 = vmatpush1.bf16.msra.mxu0 0
        %4167 = vmatprep.subr.bf16.mxu0 0
        %4168 = vmatpush1.bf16.msra.mxu0 0
        %4169 = vmatprep.subr.bf16.mxu0 0
        %4170 = vmatpush1.bf16.msra.mxu0 0
        %4171 = vmatprep.subr.bf16.mxu0 0
        %4172 = vmatpush1.bf16.msra.mxu0 0
        %4173 = vmatprep.subr.bf16.mxu0 0
        %4174 = vmatpush1.bf16.msra.mxu0 0
        %4175 = vmatprep.mubr.bf16.mxu0 0
        %4176 = vmatmul.mubr.bf16.gmra.mrb[0].mxu0 %v4120
        %v4177 = vpop.f32.mrb[0].mxu0
        %v4178 = vadd.f32 0.0, %v4177
        %v4179 = vpop.f32.mrb[0].mxu0
        %v4180 = vpop.f32.mrb[0].mxu0
        %v4181 = vadd.f32 0.0, %v4180
        %v4182 = vpop.f32.mrb[0].mxu0
        %4183 = vmatprep.mubr.bf16.mxu0 0
        %4184 = vmatmul.mubr.bf16.gmra.mrb[0].mxu0 %v4123
        %v4185 = vpop.f32.mrb[0].mxu0
        %v4186 = vadd.f32 0.0, %v4185
        %v4187 = vpop.f32.mrb[0].mxu0
        %v4188 = vpop.f32.mrb[0].mxu0
        %v4189 = vadd.f32 0.0, %v4188
        %v4190 = vpop.f32.mrb[0].mxu0
        %4191 = vmatprep.mubr.bf16.mxu0 0
        %4192 = vmatmul.mubr.bf16.gmra.mrb[0].mxu0 %v4126
        %v4193 = vpop.f32.mrb[0].mxu0
        %v4194 = vadd.f32 0.0, %v4193
        %v4195 = vpop.f32.mrb[0].mxu0
        %v4196 = vpop.f32.mrb[0].mxu0
        %v4197 = vadd.f32 0.0, %v4196
        %v4198 = vpop.f32.mrb[0].mxu0
        %4199 = vmatprep.mubr.bf16.mxu0 0
        %4200 = vmatmul.mubr.bf16.gmra.mrb[0].mxu0 %v4129
        %v4201 = vpop.f32.mrb[0].mxu0
        %v4202 = vadd.f32 0.0, %v4201
        %v4203 = vpop.f32.mrb[0].mxu0
        %v4204 = vpop.f32.mrb[0].mxu0
        %v4205 = vadd.f32 0.0, %v4204
        %v4206 = vpop.f32.mrb[0].mxu0
        %4207 = vmatprep.mubr.bf16.mxu0 0
        %4208 = vmatmul.mubr.bf16.gmra.mrb[0].mxu0 %v4132
        %v4209 = vpop.f32.mrb[0].mxu0
        %v4210 = vadd.f32 0.0, %v4209
        %v4211 = vpop.f32.mrb[0].mxu0
        %v4212 = vpop.f32.mrb[0].mxu0
        %v4213 = vadd.f32 0.0, %v4212
        %v4214 = vpop.f32.mrb[0].mxu0
        %4215 = vmatprep.mubr.bf16.mxu0 0
        %4216 = vmatmul.mubr.bf16.gmra.mrb[0].mxu0 %v4135
        %v4217 = vpop.f32.mrb[0].mxu0
        %v4218 = vadd.f32 0.0, %v4217
        %v4219 = vpop.f32.mrb[0].mxu0
        %v4220 = vpop.f32.mrb[0].mxu0
        %v4221 = vadd.f32 0.0, %v4220
        %v4222 = vpop.f32.mrb[0].mxu0
        %4223 = vmatprep.mubr.bf16.mxu0 0
        %4224 = vmatmul.mubr.bf16.gmra.mrb[0].mxu0 %v4138
        %v4225 = vpop.f32.mrb[0].mxu0
        %v4226 = vadd.f32 0.0, %v4225
        %v4227 = vpop.f32.mrb[0].mxu0
        %v4228 = vpop.f32.mrb[0].mxu0
        %v4229 = vadd.f32 0.0, %v4228
        %v4230 = vpop.f32.mrb[0].mxu0
        %4231 = vmatprep.mubr.bf16.mxu0 0
        %4232 = vmatmul.mubr.bf16.gmra.mrb[0].mxu0 %v4141
        %v4233 = vpop.f32.mrb[0].mxu0
        %v4234 = vadd.f32 0.0, %v4233
        %v4235 = vpop.f32.mrb[0].mxu0
        %v4236 = vpop.f32.mrb[0].mxu0
        %v4237 = vadd.f32 0.0, %v4236
        %v4238 = vpop.f32.mrb[0].mxu0
        %4239 = vdwg.mxu0
        %v4240 = vsel %vm1218, %v4178, -inf
        %4241 = vmax.xlane.f32.xlu0 %v4240
        %v4242 = vpop.xlane.xlu0 %4241
        %v4243 = vsel %vm1218, %v4181, -inf
        %4244 = vmax.xlane.f32.xlu0 %v4243
        %v4245 = vpop.xlane.xlu0 %4244
        %v4246 = vsel %vm1218, %v4186, -inf
        %4247 = vmax.xlane.f32.xlu0 %v4246
        %v4248 = vpop.xlane.xlu0 %4247
        %v4249 = vsel %vm1218, %v4189, -inf
        %4250 = vmax.xlane.f32.xlu0 %v4249
        %v4251 = vpop.xlane.xlu0 %4250
        %v4252 = vsel %vm1218, %v4194, -inf
        %4253 = vmax.xlane.f32.xlu0 %v4252
        %v4254 = vpop.xlane.xlu0 %4253
        %v4255 = vsel %vm1218, %v4197, -inf
        %4256 = vmax.xlane.f32.xlu0 %v4255
        %v4257 = vpop.xlane.xlu0 %4256
        %v4258 = vsel %vm1218, %v4202, -inf
        %4259 = vmax.xlane.f32.xlu0 %v4258
        %v4260 = vpop.xlane.xlu0 %4259
        %v4261 = vsel %vm1218, %v4205, -inf
        %4262 = vmax.xlane.f32.xlu0 %v4261
        %v4263 = vpop.xlane.xlu0 %4262
        %v4264 = vsel %vm1218, %v4210, -inf
        %4265 = vmax.xlane.f32.xlu0 %v4264
        %v4266 = vpop.xlane.xlu0 %4265
        %v4267 = vsel %vm1218, %v4213, -inf
        %4268 = vmax.xlane.f32.xlu0 %v4267
        %v4269 = vpop.xlane.xlu0 %4268
        %v4270 = vsel %vm1218, %v4218, -inf
        %4271 = vmax.xlane.f32.xlu0 %v4270
        %v4272 = vpop.xlane.xlu0 %4271
        %v4273 = vsel %vm1218, %v4221, -inf
        %4274 = vmax.xlane.f32.xlu0 %v4273
        %v4275 = vpop.xlane.xlu0 %4274
        %v4276 = vsel %vm1218, %v4226, -inf
        %4277 = vmax.xlane.f32.xlu0 %v4276
        %v4278 = vpop.xlane.xlu0 %4277
        %v4279 = vsel %vm1218, %v4229, -inf
        %4280 = vmax.xlane.f32.xlu0 %v4279
        %v4281 = vpop.xlane.xlu0 %4280
        %v4282 = vsel %vm1218, %v4234, -inf
        %4283 = vmax.xlane.f32.xlu0 %v4282
        %v4284 = vpop.xlane.xlu0 %4283
        %v4285 = vsel %vm1218, %v4237, -inf
        %4286 = vmax.xlane.f32.xlu0 %v4285
        %v4287 = vpop.xlane.xlu0 %4286
        %v4288 = vsub.f32 %v4178, %v4242
        %v4289 = vsub.f32 %v4181, %v4245
        %v4290 = vsub.f32 %v4186, %v4248
        %v4291 = vsub.f32 %v4189, %v4251
        %v4292 = vsub.f32 %v4194, %v4254
        %v4293 = vsub.f32 %v4197, %v4257
        %v4294 = vsub.f32 %v4202, %v4260
        %v4295 = vsub.f32 %v4205, %v4263
        %v4296 = vsub.f32 %v4210, %v4266
        %v4297 = vsub.f32 %v4213, %v4269
        %v4298 = vsub.f32 %v4218, %v4272
        %v4299 = vsub.f32 %v4221, %v4275
        %v4300 = vsub.f32 %v4226, %v4278
        %v4301 = vsub.f32 %v4229, %v4281
        %v4302 = vsub.f32 %v4234, %v4284
        %v4303 = vsub.f32 %v4237, %v4287
        %v4304 = vmul.f32 %v4288, 1.442695
        %v4305 = vpow.pop %v4304
        %v4306 = vmul.f32 %v4289, 1.442695
        %v4307 = vpow.pop %v4306
        %v4308 = vmul.f32 %v4290, 1.442695
        %v4309 = vpow.pop %v4308
        %v4310 = vmul.f32 %v4291, 1.442695
        %v4311 = vpow.pop %v4310
        %v4312 = vmul.f32 %v4292, 1.442695
        %v4313 = vpow.pop %v4312
        %v4314 = vmul.f32 %v4293, 1.442695
        %v4315 = vpow.pop %v4314
        %v4316 = vmul.f32 %v4294, 1.442695
        %v4317 = vpow.pop %v4316
        %v4318 = vmul.f32 %v4295, 1.442695
        %v4319 = vpow.pop %v4318
        %v4320 = vmul.f32 %v4296, 1.442695
        %v4321 = vpow.pop %v4320
        %v4322 = vmul.f32 %v4297, 1.442695
        %v4323 = vpow.pop %v4322
        %v4324 = vmul.f32 %v4298, 1.442695
        %v4325 = vpow.pop %v4324
        %v4326 = vmul.f32 %v4299, 1.442695
        %v4327 = vpow.pop %v4326
        %v4328 = vmul.f32 %v4300, 1.442695
        %v4329 = vpow.pop %v4328
        %v4330 = vmul.f32 %v4301, 1.442695
        %v4331 = vpow.pop %v4330
        %v4332 = vmul.f32 %v4302, 1.442695
        %v4333 = vpow.pop %v4332
        %v4334 = vmul.f32 %v4303, 1.442695
        %v4335 = vpow.pop %v4334
        %v4336 = vsel %vm1218, %v4305, 0.0
        %4337 = vadd.xlane.f32.xlu0 %v4336
        %v4338 = vpop.xlane.xlu0 %4337
        %v4339 = vsel %vm1218, %v4307, 0.0
        %4340 = vadd.xlane.f32.xlu0 %v4339
        %v4341 = vpop.xlane.xlu0 %4340
        %v4342 = vsel %vm1218, %v4309, 0.0
        %4343 = vadd.xlane.f32.xlu0 %v4342
        %v4344 = vpop.xlane.xlu0 %4343
        %v4345 = vsel %vm1218, %v4311, 0.0
        %4346 = vadd.xlane.f32.xlu0 %v4345
        %v4347 = vpop.xlane.xlu0 %4346
        %v4348 = vsel %vm1218, %v4313, 0.0
        %4349 = vadd.xlane.f32.xlu0 %v4348
        %v4350 = vpop.xlane.xlu0 %4349
        %v4351 = vsel %vm1218, %v4315, 0.0
        %4352 = vadd.xlane.f32.xlu0 %v4351
        %v4353 = vpop.xlane.xlu0 %4352
        %v4354 = vsel %vm1218, %v4317, 0.0
        %4355 = vadd.xlane.f32.xlu0 %v4354
        %v4356 = vpop.xlane.xlu0 %4355
        %v4357 = vsel %vm1218, %v4319, 0.0
        %4358 = vadd.xlane.f32.xlu0 %v4357
        %v4359 = vpop.xlane.xlu0 %4358
        %v4360 = vsel %vm1218, %v4321, 0.0
        %4361 = vadd.xlane.f32.xlu0 %v4360
        %v4362 = vpop.xlane.xlu0 %4361
        %v4363 = vsel %vm1218, %v4323, 0.0
        %4364 = vadd.xlane.f32.xlu0 %v4363
        %v4365 = vpop.xlane.xlu0 %4364
        %v4366 = vsel %vm1218, %v4325, 0.0
        %4367 = vadd.xlane.f32.xlu0 %v4366
        %v4368 = vpop.xlane.xlu0 %4367
        %v4369 = vsel %vm1218, %v4327, 0.0
        %4370 = vadd.xlane.f32.xlu0 %v4369
        %v4371 = vpop.xlane.xlu0 %4370
        %v4372 = vsel %vm1218, %v4329, 0.0
        %4373 = vadd.xlane.f32.xlu0 %v4372
        %v4374 = vpop.xlane.xlu0 %4373
        %v4375 = vsel %vm1218, %v4331, 0.0
        %4376 = vadd.xlane.f32.xlu0 %v4375
        %v4377 = vpop.xlane.xlu0 %4376
        %v4378 = vsel %vm1218, %v4333, 0.0
        %4379 = vadd.xlane.f32.xlu0 %v4378
        %v4380 = vpop.xlane.xlu0 %4379
        %v4381 = vsel %vm1218, %v4335, 0.0
        %4382 = vadd.xlane.f32.xlu0 %v4381
        %v4383 = vpop.xlane.xlu0 %4382
        %v4384 = vrcp.pop %v4338
        %v4385 = vrcp.pop %v4341
        %v4386 = vrcp.pop %v4344
        %v4387 = vrcp.pop %v4347
        %v4388 = vrcp.pop %v4350
        %v4389 = vrcp.pop %v4353
        %v4390 = vrcp.pop %v4356
        %v4391 = vrcp.pop %v4359
        %v4392 = vrcp.pop %v4362
        %v4393 = vrcp.pop %v4365
        %v4394 = vrcp.pop %v4368
        %v4395 = vrcp.pop %v4371
        %v4396 = vrcp.pop %v4374
        %v4397 = vrcp.pop %v4377
        %v4398 = vrcp.pop %v4380
        %v4399 = vrcp.pop %v4383
        %v4400 = vmul.f32 %v4305, %v4384
        %v4401 = vmul.f32 %v4307, %v4385
        %v4402 = vmul.f32 %v4309, %v4386
        %v4403 = vmul.f32 %v4311, %v4387
        %v4404 = vmul.f32 %v4313, %v4388
        %v4405 = vmul.f32 %v4315, %v4389
        %v4406 = vmul.f32 %v4317, %v4390
        %v4407 = vmul.f32 %v4319, %v4391
        %v4408 = vmul.f32 %v4321, %v4392
        %v4409 = vmul.f32 %v4323, %v4393
        %v4410 = vmul.f32 %v4325, %v4394
        %v4411 = vmul.f32 %v4327, %v4395
        %v4412 = vmul.f32 %v4329, %v4396
        %v4413 = vmul.f32 %v4331, %v4397
        %v4414 = vmul.f32 %v4333, %v4398
        %v4415 = vmul.f32 %v4335, %v4399
        %v4416 = vpack.c.bf16 %v4401, %v4400
        %v4417 = vpack.c.bf16 %v4403, %v4402
        %v4418 = vpack.c.bf16 %v4405, %v4404
        %v4419 = vpack.c.bf16 %v4407, %v4406
        %v4420 = vpack.c.bf16 %v4409, %v4408
        %v4421 = vpack.c.bf16 %v4411, %v4410
        %v4422 = vpack.c.bf16 %v4413, %v4412
        %v4423 = vpack.c.bf16 %v4415, %v4414
        %4424 = vrot.lane.b32.xlu0 %v1082, 16
        %v4425 = vpop.permute.xlu0 %4424
        %4426 = vrot.lane.b32.xlu0 %v1083, 16
        %v4427 = vpop.permute.xlu0 %4426
        %4428 = vrot.lane.b32.xlu0 %v1084, 16
        %v4429 = vpop.permute.xlu0 %4428
        %4430 = vrot.lane.b32.xlu0 %v1085, 16
        %v4431 = vpop.permute.xlu0 %4430
        %4432 = vrot.lane.b32.xlu0 %v1086, 16
        %v4433 = vpop.permute.xlu0 %4432
        %4434 = vrot.lane.b32.xlu0 %v1087, 16
        %v4435 = vpop.permute.xlu0 %4434
        %v4443 = vsel %vm1218, %v4416, 0
        %v4446 = vsel %vm1218, %v4417, 0
        %v4449 = vsel %vm1218, %v4418, 0
        %v4452 = vsel %vm1218, %v4419, 0
        %v4455 = vsel %vm1218, %v4420, 0
        %v4458 = vsel %vm1218, %v4421, 0
        %v4461 = vsel %vm1218, %v4422, 0
        %v4464 = vsel %vm1218, %v4423, 0
        %4466 = vmatprep.subr.bf16.mxu0 0
        %4467 = vmatpush1.bf16.msra.mxu0 %v4425
        %4468 = vmatprep.subr.bf16.mxu0 0
        %4469 = vmatpush1.bf16.msra.mxu0 %v4427
        %4470 = vmatprep.subr.bf16.mxu0 0
        %4471 = vmatpush1.bf16.msra.mxu0 %v4429
        %4472 = vmatprep.subr.bf16.mxu0 0
        %4473 = vmatpush1.bf16.msra.mxu0 %v4431
        %4474 = vmatprep.subr.bf16.mxu0 0
        %4475 = vmatpush1.bf16.msra.mxu0 %v4433
        %4476 = vmatprep.subr.bf16.mxu0 0
        %4477 = vmatpush1.bf16.msra.mxu0 %v4435
        %4478 = vmatprep.subr.bf16.mxu0 0
        %4479 = vmatpush1.bf16.msra.mxu0 0
        %4480 = vmatprep.subr.bf16.mxu0 0
        %4481 = vmatpush1.bf16.msra.mxu0 0
        %4482 = vmatprep.subr.bf16.mxu0 0
        %4483 = vmatpush1.bf16.msra.mxu0 0
        %4484 = vmatprep.subr.bf16.mxu0 0
        %4485 = vmatpush1.bf16.msra.mxu0 0
        %4486 = vmatprep.subr.bf16.mxu0 0
        %4487 = vmatpush1.bf16.msra.mxu0 0
        %4488 = vmatprep.subr.bf16.mxu0 0
        %4489 = vmatpush1.bf16.msra.mxu0 0
        %4490 = vmatprep.subr.bf16.mxu0 0
        %4491 = vmatpush1.bf16.msra.mxu0 0
        %4492 = vmatprep.subr.bf16.mxu0 0
        %4493 = vmatpush1.bf16.msra.mxu0 0
        %4494 = vmatprep.subr.bf16.mxu0 0
        %4495 = vmatpush1.bf16.msra.mxu0 0
        %4496 = vmatprep.subr.bf16.mxu0 0
        %4497 = vmatpush1.bf16.msra.mxu0 0
        %4498 = vmatprep.mubr.bf16.mxu0 0
        %4499 = vmatmul.mubr.bf16.gmra.mrb[0].mxu0 %v4443
        %v4500 = vpop.f32.mrb[0].mxu0
        %v4501 = vadd.f32 0.0, %v4500
        %v4502 = vpop.f32.mrb[0].mxu0
        %v4503 = vpop.f32.mrb[0].mxu0
        %v4504 = vadd.f32 0.0, %v4503
        %v4505 = vpop.f32.mrb[0].mxu0
        %4506 = vmatprep.mubr.bf16.mxu0 0
        %4507 = vmatmul.mubr.bf16.gmra.mrb[0].mxu0 %v4446
        %v4508 = vpop.f32.mrb[0].mxu0
        %v4509 = vadd.f32 0.0, %v4508
        %v4510 = vpop.f32.mrb[0].mxu0
        %v4511 = vpop.f32.mrb[0].mxu0
        %v4512 = vadd.f32 0.0, %v4511
        %v4513 = vpop.f32.mrb[0].mxu0
        %4514 = vmatprep.mubr.bf16.mxu0 0
        %4515 = vmatmul.mubr.bf16.gmra.mrb[0].mxu0 %v4449
        %v4516 = vpop.f32.mrb[0].mxu0
        %v4517 = vadd.f32 0.0, %v4516
        %v4518 = vpop.f32.mrb[0].mxu0
        %v4519 = vpop.f32.mrb[0].mxu0
        %v4520 = vadd.f32 0.0, %v4519
        %v4521 = vpop.f32.mrb[0].mxu0
        %4522 = vmatprep.mubr.bf16.mxu0 0
        %4523 = vmatmul.mubr.bf16.gmra.mrb[0].mxu0 %v4452
        %v4524 = vpop.f32.mrb[0].mxu0
        %v4525 = vadd.f32 0.0, %v4524
        %v4526 = vpop.f32.mrb[0].mxu0
        %v4527 = vpop.f32.mrb[0].mxu0
        %v4528 = vadd.f32 0.0, %v4527
        %v4529 = vpop.f32.mrb[0].mxu0
        %4530 = vmatprep.mubr.bf16.mxu0 0
        %4531 = vmatmul.mubr.bf16.gmra.mrb[0].mxu0 %v4455
        %v4532 = vpop.f32.mrb[0].mxu0
        %v4533 = vadd.f32 0.0, %v4532
        %v4534 = vpop.f32.mrb[0].mxu0
        %v4535 = vpop.f32.mrb[0].mxu0
        %v4536 = vadd.f32 0.0, %v4535
        %v4537 = vpop.f32.mrb[0].mxu0
        %4538 = vmatprep.mubr.bf16.mxu0 0
        %4539 = vmatmul.mubr.bf16.gmra.mrb[0].mxu0 %v4458
        %v4540 = vpop.f32.mrb[0].mxu0
        %v4541 = vadd.f32 0.0, %v4540
        %v4542 = vpop.f32.mrb[0].mxu0
        %v4543 = vpop.f32.mrb[0].mxu0
        %v4544 = vadd.f32 0.0, %v4543
        %v4545 = vpop.f32.mrb[0].mxu0
        %4546 = vmatprep.mubr.bf16.mxu0 0
        %4547 = vmatmul.mubr.bf16.gmra.mrb[0].mxu0 %v4461
        %v4548 = vpop.f32.mrb[0].mxu0
        %v4549 = vadd.f32 0.0, %v4548
        %v4550 = vpop.f32.mrb[0].mxu0
        %v4551 = vpop.f32.mrb[0].mxu0
        %v4552 = vadd.f32 0.0, %v4551
        %v4553 = vpop.f32.mrb[0].mxu0
        %4554 = vmatprep.mubr.bf16.mxu0 0
        %4555 = vmatmul.mubr.bf16.gmra.mrb[0].mxu0 %v4464
        %v4556 = vpop.f32.mrb[0].mxu0
        %v4557 = vadd.f32 0.0, %v4556
        %v4558 = vpop.f32.mrb[0].mxu0
        %v4559 = vpop.f32.mrb[0].mxu0
        %v4560 = vadd.f32 0.0, %v4559
        %v4561 = vpop.f32.mrb[0].mxu0
        %4562 = vdwg.mxu0
        %4563 = vrot.lane.b32.xlu0 %v1082, 80
        %v4564 = vpop.permute.xlu0 %4563
        %4565 = vrot.lane.b32.xlu0 %v1083, 80
        %v4566 = vpop.permute.xlu0 %4565
        %4567 = vrot.lane.b32.xlu0 %v1084, 80
        %v4568 = vpop.permute.xlu0 %4567
        %4569 = vrot.lane.b32.xlu0 %v1085, 80
        %v4570 = vpop.permute.xlu0 %4569
        %4571 = vrot.lane.b32.xlu0 %v1086, 80
        %v4572 = vpop.permute.xlu0 %4571
        %4573 = vrot.lane.b32.xlu0 %v1087, 80
        %v4574 = vpop.permute.xlu0 %4573
        %v4576 = vsel %vm1096, %v4564, 0
        %v4579 = vsel %vm1096, %v4566, 0
        %v4582 = vsel %vm1096, %v4568, 0
        %v4585 = vsel %vm1096, %v4570, 0
        %v4588 = vsel %vm1096, %v4572, 0
        %v4591 = vsel %vm1096, %v4574, 0
        %4593 = vmatprep.subr.bf16.mxu0 0
        %4594 = vmatpush1.bf16.msra.mxu0 %v1072
        %4595 = vmatprep.subr.bf16.mxu0 0
        %4596 = vmatpush1.bf16.msra.mxu0 0
        %4597 = vmatprep.subr.bf16.mxu0 0
        %4598 = vmatpush1.bf16.msra.mxu0 0
        %4599 = vmatprep.subr.bf16.mxu0 0
        %4600 = vmatpush1.bf16.msra.mxu0 0
        %4601 = vmatprep.subr.bf16.mxu0 0
        %4602 = vmatpush1.bf16.msra.mxu0 0
        %4603 = vmatprep.subr.bf16.mxu0 0
        %4604 = vmatpush1.bf16.msra.mxu0 0
        %4605 = vmatprep.subr.bf16.mxu0 0
        %4606 = vmatpush1.bf16.msra.mxu0 0
        %4607 = vmatprep.subr.bf16.mxu0 0
        %4608 = vmatpush1.bf16.msra.mxu0 0
        %4609 = vmatprep.subr.bf16.mxu0 0
        %4610 = vmatpush1.bf16.msra.mxu0 0
        %4611 = vmatprep.subr.bf16.mxu0 0
        %4612 = vmatpush1.bf16.msra.mxu0 0
        %4613 = vmatprep.subr.bf16.mxu0 0
        %4614 = vmatpush1.bf16.msra.mxu0 0
        %4615 = vmatprep.subr.bf16.mxu0 0
        %4616 = vmatpush1.bf16.msra.mxu0 0
        %4617 = vmatprep.subr.bf16.mxu0 0
        %4618 = vmatpush1.bf16.msra.mxu0 0
        %4619 = vmatprep.subr.bf16.mxu0 0
        %4620 = vmatpush1.bf16.msra.mxu0 0
        %4621 = vmatprep.subr.bf16.mxu0 0
        %4622 = vmatpush1.bf16.msra.mxu0 0
        %4623 = vmatprep.subr.bf16.mxu0 0
        %4624 = vmatpush1.bf16.msra.mxu0 0
        %4625 = vmatprep.mubr.bf16.mxu0 0
        %4626 = vmatmul.mubr.bf16.gmra.mrb[0].mxu0 %v4576
        %v4627 = vpop.f32.mrb[0].mxu0
        %v4628 = vadd.f32 0.0, %v4627
        %v4629 = vpop.f32.mrb[0].mxu0
        %v4630 = vpop.f32.mrb[0].mxu0
        %v4631 = vadd.f32 0.0, %v4630
        %v4632 = vpop.f32.mrb[0].mxu0
        %4633 = vmatprep.mubr.bf16.mxu0 0
        %4634 = vmatmul.mubr.bf16.gmra.mrb[0].mxu0 %v4579
        %v4635 = vpop.f32.mrb[0].mxu0
        %v4636 = vadd.f32 0.0, %v4635
        %v4637 = vpop.f32.mrb[0].mxu0
        %v4638 = vpop.f32.mrb[0].mxu0
        %v4639 = vadd.f32 0.0, %v4638
        %v4640 = vpop.f32.mrb[0].mxu0
        %4641 = vmatprep.mubr.bf16.mxu0 0
        %4642 = vmatmul.mubr.bf16.gmra.mrb[0].mxu0 %v4582
        %v4643 = vpop.f32.mrb[0].mxu0
        %v4644 = vadd.f32 0.0, %v4643
        %v4645 = vpop.f32.mrb[0].mxu0
        %v4646 = vpop.f32.mrb[0].mxu0
        %v4647 = vadd.f32 0.0, %v4646
        %v4648 = vpop.f32.mrb[0].mxu0
        %4649 = vmatprep.mubr.bf16.mxu0 0
        %4650 = vmatmul.mubr.bf16.gmra.mrb[0].mxu0 %v4585
        %v4651 = vpop.f32.mrb[0].mxu0
        %v4652 = vadd.f32 0.0, %v4651
        %v4653 = vpop.f32.mrb[0].mxu0
        %v4654 = vpop.f32.mrb[0].mxu0
        %v4655 = vadd.f32 0.0, %v4654
        %v4656 = vpop.f32.mrb[0].mxu0
        %4657 = vmatprep.mubr.bf16.mxu0 0
        %4658 = vmatmul.mubr.bf16.gmra.mrb[0].mxu0 %v4588
        %v4659 = vpop.f32.mrb[0].mxu0
        %v4660 = vadd.f32 0.0, %v4659
        %v4661 = vpop.f32.mrb[0].mxu0
        %v4662 = vpop.f32.mrb[0].mxu0
        %v4663 = vadd.f32 0.0, %v4662
        %v4664 = vpop.f32.mrb[0].mxu0
        %4665 = vmatprep.mubr.bf16.mxu0 0
        %4666 = vmatmul.mubr.bf16.gmra.mrb[0].mxu0 %v4591
        %v4667 = vpop.f32.mrb[0].mxu0
        %v4668 = vadd.f32 0.0, %v4667
        %v4669 = vpop.f32.mrb[0].mxu0
        %v4670 = vpop.f32.mrb[0].mxu0
        %v4671 = vadd.f32 0.0, %v4670
        %v4672 = vpop.f32.mrb[0].mxu0
        %4673 = vdwg.mxu0
        %4674 = vmax.xlane.f32.xlu0 %v4628
        %v4675 = vpop.xlane.xlu0 %4674
        %4676 = vmax.xlane.f32.xlu0 %v4631
        %v4677 = vpop.xlane.xlu0 %4676
        %4678 = vmax.xlane.f32.xlu0 %v4636
        %v4679 = vpop.xlane.xlu0 %4678
        %4680 = vmax.xlane.f32.xlu0 %v4639
        %v4681 = vpop.xlane.xlu0 %4680
        %4682 = vmax.xlane.f32.xlu0 %v4644
        %v4683 = vpop.xlane.xlu0 %4682
        %4684 = vmax.xlane.f32.xlu0 %v4647
        %v4685 = vpop.xlane.xlu0 %4684
        %4686 = vmax.xlane.f32.xlu0 %v4652
        %v4687 = vpop.xlane.xlu0 %4686
        %4688 = vmax.xlane.f32.xlu0 %v4655
        %v4689 = vpop.xlane.xlu0 %4688
        %4690 = vmax.xlane.f32.xlu0 %v4660
        %v4691 = vpop.xlane.xlu0 %4690
        %4692 = vmax.xlane.f32.xlu0 %v4663
        %v4693 = vpop.xlane.xlu0 %4692
        %4694 = vmax.xlane.f32.xlu0 %v4668
        %v4695 = vpop.xlane.xlu0 %4694
        %4696 = vmax.xlane.f32.xlu0 %v4671
        %v4697 = vpop.xlane.xlu0 %4696
        %v4698 = vsub.f32 %v4628, %v4675
        %v4699 = vsub.f32 %v4631, %v4677
        %v4700 = vsub.f32 %v4636, %v4679
        %v4701 = vsub.f32 %v4639, %v4681
        %v4702 = vsub.f32 %v4644, %v4683
        %v4703 = vsub.f32 %v4647, %v4685
        %v4704 = vsub.f32 %v4652, %v4687
        %v4705 = vsub.f32 %v4655, %v4689
        %v4706 = vsub.f32 %v4660, %v4691
        %v4707 = vsub.f32 %v4663, %v4693
        %v4708 = vsub.f32 %v4668, %v4695
        %v4709 = vsub.f32 %v4671, %v4697
        %v4710 = vmul.f32 %v4698, 1.442695
        %v4711 = vpow.pop %v4710
        %v4712 = vmul.f32 %v4699, 1.442695
        %v4713 = vpow.pop %v4712
        %v4714 = vmul.f32 %v4700, 1.442695
        %v4715 = vpow.pop %v4714
        %v4716 = vmul.f32 %v4701, 1.442695
        %v4717 = vpow.pop %v4716
        %v4718 = vmul.f32 %v4702, 1.442695
        %v4719 = vpow.pop %v4718
        %v4720 = vmul.f32 %v4703, 1.442695
        %v4721 = vpow.pop %v4720
        %v4722 = vmul.f32 %v4704, 1.442695
        %v4723 = vpow.pop %v4722
        %v4724 = vmul.f32 %v4705, 1.442695
        %v4725 = vpow.pop %v4724
        %v4726 = vmul.f32 %v4706, 1.442695
        %v4727 = vpow.pop %v4726
        %v4728 = vmul.f32 %v4707, 1.442695
        %v4729 = vpow.pop %v4728
        %v4730 = vmul.f32 %v4708, 1.442695
        %v4731 = vpow.pop %v4730
        %v4732 = vmul.f32 %v4709, 1.442695
        %v4733 = vpow.pop %v4732
        %4734 = vadd.xlane.f32.xlu0 %v4711
        %v4735 = vpop.xlane.xlu0 %4734
        %4736 = vadd.xlane.f32.xlu0 %v4713
        %v4737 = vpop.xlane.xlu0 %4736
        %4738 = vadd.xlane.f32.xlu0 %v4715
        %v4739 = vpop.xlane.xlu0 %4738
        %4740 = vadd.xlane.f32.xlu0 %v4717
        %v4741 = vpop.xlane.xlu0 %4740
        %4742 = vadd.xlane.f32.xlu0 %v4719
        %v4743 = vpop.xlane.xlu0 %4742
        %4744 = vadd.xlane.f32.xlu0 %v4721
        %v4745 = vpop.xlane.xlu0 %4744
        %4746 = vadd.xlane.f32.xlu0 %v4723
        %v4747 = vpop.xlane.xlu0 %4746
        %4748 = vadd.xlane.f32.xlu0 %v4725
        %v4749 = vpop.xlane.xlu0 %4748
        %4750 = vadd.xlane.f32.xlu0 %v4727
        %v4751 = vpop.xlane.xlu0 %4750
        %4752 = vadd.xlane.f32.xlu0 %v4729
        %v4753 = vpop.xlane.xlu0 %4752
        %4754 = vadd.xlane.f32.xlu0 %v4731
        %v4755 = vpop.xlane.xlu0 %4754
        %4756 = vadd.xlane.f32.xlu0 %v4733
        %v4757 = vpop.xlane.xlu0 %4756
        %v4758 = vrcp.pop %v4735
        %v4759 = vrcp.pop %v4737
        %v4760 = vrcp.pop %v4739
        %v4761 = vrcp.pop %v4741
        %v4762 = vrcp.pop %v4743
        %v4763 = vrcp.pop %v4745
        %v4764 = vrcp.pop %v4747
        %v4765 = vrcp.pop %v4749
        %v4766 = vrcp.pop %v4751
        %v4767 = vrcp.pop %v4753
        %v4768 = vrcp.pop %v4755
        %v4769 = vrcp.pop %v4757
        %v4770 = vmul.f32 %v4711, %v4758
        %v4771 = vmul.f32 %v4713, %v4759
        %v4772 = vmul.f32 %v4715, %v4760
        %v4773 = vmul.f32 %v4717, %v4761
        %v4774 = vmul.f32 %v4719, %v4762
        %v4775 = vmul.f32 %v4721, %v4763
        %v4776 = vmul.f32 %v4723, %v4764
        %v4777 = vmul.f32 %v4725, %v4765
        %v4778 = vmul.f32 %v4727, %v4766
        %v4779 = vmul.f32 %v4729, %v4767
        %v4780 = vmul.f32 %v4731, %v4768
        %v4781 = vmul.f32 %v4733, %v4769
        %v4782 = vpack.c.bf16 %v4771, %v4770
        %v4783 = vpack.c.bf16 %v4773, %v4772
        %v4784 = vpack.c.bf16 %v4775, %v4774
        %v4785 = vpack.c.bf16 %v4777, %v4776
        %v4786 = vpack.c.bf16 %v4779, %v4778
        %v4787 = vpack.c.bf16 %v4781, %v4780
        %4788 = vrot.lane.b32.xlu0 %v1074, 16
        %v4789 = vpop.permute.xlu0 %4788
        %4790 = vrot.lane.b32.xlu0 %v1075, 16
        %v4791 = vpop.permute.xlu0 %4790
        %4792 = vrot.lane.b32.xlu0 %v1076, 16
        %v4793 = vpop.permute.xlu0 %4792
        %4794 = vrot.lane.b32.xlu0 %v1077, 16
        %v4795 = vpop.permute.xlu0 %4794
        %4796 = vrot.lane.b32.xlu0 %v1078, 16
        %v4797 = vpop.permute.xlu0 %4796
        %4798 = vrot.lane.b32.xlu0 %v1079, 16
        %v4799 = vpop.permute.xlu0 %4798
        %4800 = vrot.lane.b32.xlu0 %v1080, 16
        %v4801 = vpop.permute.xlu0 %4800
        %4802 = vrot.lane.b32.xlu0 %v1081, 16
        %v4803 = vpop.permute.xlu0 %4802
        %4812 = vmatprep.subr.bf16.mxu0 0
        %4813 = vmatpush1.bf16.msra.mxu0 %v4789
        %4814 = vmatprep.subr.bf16.mxu0 0
        %4815 = vmatpush1.bf16.msra.mxu0 %v4791
        %4816 = vmatprep.subr.bf16.mxu0 0
        %4817 = vmatpush1.bf16.msra.mxu0 %v4793
        %4818 = vmatprep.subr.bf16.mxu0 0
        %4819 = vmatpush1.bf16.msra.mxu0 %v4795
        %4820 = vmatprep.subr.bf16.mxu0 0
        %4821 = vmatpush1.bf16.msra.mxu0 %v4797
        %4822 = vmatprep.subr.bf16.mxu0 0
        %4823 = vmatpush1.bf16.msra.mxu0 %v4799
        %4824 = vmatprep.subr.bf16.mxu0 0
        %4825 = vmatpush1.bf16.msra.mxu0 %v4801
        %4826 = vmatprep.subr.bf16.mxu0 0
        %4827 = vmatpush1.bf16.msra.mxu0 %v4803
        %4828 = vmatprep.subr.bf16.mxu0 0
        %4829 = vmatpush1.bf16.msra.mxu0 0
        %4830 = vmatprep.subr.bf16.mxu0 0
        %4831 = vmatpush1.bf16.msra.mxu0 0
        %4832 = vmatprep.subr.bf16.mxu0 0
        %4833 = vmatpush1.bf16.msra.mxu0 0
        %4834 = vmatprep.subr.bf16.mxu0 0
        %4835 = vmatpush1.bf16.msra.mxu0 0
        %4836 = vmatprep.subr.bf16.mxu0 0
        %4837 = vmatpush1.bf16.msra.mxu0 0
        %4838 = vmatprep.subr.bf16.mxu0 0
        %4839 = vmatpush1.bf16.msra.mxu0 0
        %4840 = vmatprep.subr.bf16.mxu0 0
        %4841 = vmatpush1.bf16.msra.mxu0 0
        %4842 = vmatprep.subr.bf16.mxu0 0
        %4843 = vmatpush1.bf16.msra.mxu0 0
        %4844 = vmatprep.mubr.bf16.mxu0 0
        %4845 = vmatmul.mubr.bf16.gmra.mrb[0].mxu0 %v4782
        %v4846 = vpop.f32.mrb[0].mxu0
        %v4847 = vadd.f32 0.0, %v4846
        %v4848 = vpop.f32.mrb[0].mxu0
        %v4849 = vpop.f32.mrb[0].mxu0
        %v4850 = vadd.f32 0.0, %v4849
        %v4851 = vpop.f32.mrb[0].mxu0
        %4852 = vmatprep.mubr.bf16.mxu0 0
        %4853 = vmatmul.mubr.bf16.gmra.mrb[0].mxu0 %v4783
        %v4854 = vpop.f32.mrb[0].mxu0
        %v4855 = vadd.f32 0.0, %v4854
        %v4856 = vpop.f32.mrb[0].mxu0
        %v4857 = vpop.f32.mrb[0].mxu0
        %v4858 = vadd.f32 0.0, %v4857
        %v4859 = vpop.f32.mrb[0].mxu0
        %4860 = vmatprep.mubr.bf16.mxu0 0
        %4861 = vmatmul.mubr.bf16.gmra.mrb[0].mxu0 %v4784
        %v4862 = vpop.f32.mrb[0].mxu0
        %v4863 = vadd.f32 0.0, %v4862
        %v4864 = vpop.f32.mrb[0].mxu0
        %v4865 = vpop.f32.mrb[0].mxu0
        %v4866 = vadd.f32 0.0, %v4865
        %v4867 = vpop.f32.mrb[0].mxu0
        %4868 = vmatprep.mubr.bf16.mxu0 0
        %4869 = vmatmul.mubr.bf16.gmra.mrb[0].mxu0 %v4785
        %v4870 = vpop.f32.mrb[0].mxu0
        %v4871 = vadd.f32 0.0, %v4870
        %v4872 = vpop.f32.mrb[0].mxu0
        %v4873 = vpop.f32.mrb[0].mxu0
        %v4874 = vadd.f32 0.0, %v4873
        %v4875 = vpop.f32.mrb[0].mxu0
        %4876 = vmatprep.mubr.bf16.mxu0 0
        %4877 = vmatmul.mubr.bf16.gmra.mrb[0].mxu0 %v4786
        %v4878 = vpop.f32.mrb[0].mxu0
        %v4879 = vadd.f32 0.0, %v4878
        %v4880 = vpop.f32.mrb[0].mxu0
        %v4881 = vpop.f32.mrb[0].mxu0
        %v4882 = vadd.f32 0.0, %v4881
        %v4883 = vpop.f32.mrb[0].mxu0
        %4884 = vmatprep.mubr.bf16.mxu0 0
        %4885 = vmatmul.mubr.bf16.gmra.mrb[0].mxu0 %v4787
        %v4886 = vpop.f32.mrb[0].mxu0
        %v4887 = vadd.f32 0.0, %v4886
        %v4888 = vpop.f32.mrb[0].mxu0
        %v4889 = vpop.f32.mrb[0].mxu0
        %v4890 = vadd.f32 0.0, %v4889
        %v4891 = vpop.f32.mrb[0].mxu0
        %4892 = vdwg.mxu0
        %v4893 = vpack.c.bf16 %v4504, %v4501
        %v4894 = vpack.c.bf16 %v4512, %v4509
        %v4895 = vpack.c.bf16 %v4520, %v4517
        %v4896 = vpack.c.bf16 %v4528, %v4525
        %v4897 = vpack.c.bf16 %v4536, %v4533
        %v4898 = vpack.c.bf16 %v4544, %v4541
        %v4899 = vpack.c.bf16 %v4552, %v4549
        %v4900 = vpack.c.bf16 %v4560, %v4557
        %v4901 = vpack.c.bf16 %v4850, %v4847
        %v4902 = vpack.c.bf16 %v4858, %v4855
        %v4903 = vpack.c.bf16 %v4866, %v4863
        %v4904 = vpack.c.bf16 %v4874, %v4871
        %v4905 = vpack.c.bf16 %v4882, %v4879
        %v4906 = vpack.c.bf16 %v4890, %v4887
        %v4909 = vunpack.c.l.b16 %v1094
        %v4910 = vunpack.c.l.b16 %v1095
        %v4911 = vpack.c.b16 %v4910, %v4909
        %v4914 = vsel %vm1096, %v4893, 0
        %v4917 = vsel %vm1096, %v4894, 0
        %v4920 = vsel %vm1096, %v4895, 0
        %v4923 = vsel %vm1096, %v4896, 0
        %v4926 = vsel %vm1096, %v4897, 0
        %v4929 = vsel %vm1096, %v4898, 0
        %v4932 = vsel %vm1096, %v4899, 0
        %v4935 = vsel %vm1096, %v4900, 0
        %v4938 = vsel %vm1096, %v4901, 0
        %v4941 = vsel %vm1096, %v4902, 0
        %v4944 = vsel %vm1096, %v4903, 0
        %v4947 = vsel %vm1096, %v4904, 0
        %v4950 = vsel %vm1096, %v4905, 0
        %v4953 = vsel %vm1096, %v4906, 0
        %4955 = vmatprep.subr.bf16.mxu0 0
        %4956 = vmatpush1.bf16.msra.mxu0 %v4911
        %4957 = vmatprep.subr.bf16.mxu0 0
        %4958 = vmatpush1.bf16.msra.mxu0 0
        %4959 = vmatprep.subr.bf16.mxu0 0
        %4960 = vmatpush1.bf16.msra.mxu0 0
        %4961 = vmatprep.subr.bf16.mxu0 0
        %4962 = vmatpush1.bf16.msra.mxu0 0
        %4963 = vmatprep.subr.bf16.mxu0 0
        %4964 = vmatpush1.bf16.msra.mxu0 0
        %4965 = vmatprep.subr.bf16.mxu0 0
        %4966 = vmatpush1.bf16.msra.mxu0 0
        %4967 = vmatprep.subr.bf16.mxu0 0
        %4968 = vmatpush1.bf16.msra.mxu0 0
        %4969 = vmatprep.subr.bf16.mxu0 0
        %4970 = vmatpush1.bf16.msra.mxu0 0
        %4971 = vmatprep.subr.bf16.mxu0 0
        %4972 = vmatpush1.bf16.msra.mxu0 0
        %4973 = vmatprep.subr.bf16.mxu0 0
        %4974 = vmatpush1.bf16.msra.mxu0 0
        %4975 = vmatprep.subr.bf16.mxu0 0
        %4976 = vmatpush1.bf16.msra.mxu0 0
        %4977 = vmatprep.subr.bf16.mxu0 0
        %4978 = vmatpush1.bf16.msra.mxu0 0
        %4979 = vmatprep.subr.bf16.mxu0 0
        %4980 = vmatpush1.bf16.msra.mxu0 0
        %4981 = vmatprep.subr.bf16.mxu0 0
        %4982 = vmatpush1.bf16.msra.mxu0 0
        %4983 = vmatprep.subr.bf16.mxu0 0
        %4984 = vmatpush1.bf16.msra.mxu0 0
        %4985 = vmatprep.subr.bf16.mxu0 0
        %4986 = vmatpush1.bf16.msra.mxu0 0
        %4987 = vmatprep.mubr.bf16.mxu0 0
        %4988 = vmatmul.mubr.bf16.gmra.mrb[0].mxu0 %v4914
        %v4989 = vpop.f32.mrb[0].mxu0
        %v4990 = vadd.f32 0.0, %v4989
        %v4991 = vpop.f32.mrb[0].mxu0
        %v4992 = vpop.f32.mrb[0].mxu0
        %v4993 = vadd.f32 0.0, %v4992
        %v4994 = vpop.f32.mrb[0].mxu0
        %4995 = vmatprep.mubr.bf16.mxu0 0
        %4996 = vmatmul.mubr.bf16.gmra.mrb[0].mxu0 %v4917
        %v4997 = vpop.f32.mrb[0].mxu0
        %v4998 = vadd.f32 0.0, %v4997
        %v4999 = vpop.f32.mrb[0].mxu0
        %v5000 = vpop.f32.mrb[0].mxu0
        %v5001 = vadd.f32 0.0, %v5000
        %v5002 = vpop.f32.mrb[0].mxu0
        %5003 = vmatprep.mubr.bf16.mxu0 0
        %5004 = vmatmul.mubr.bf16.gmra.mrb[0].mxu0 %v4920
        %v5005 = vpop.f32.mrb[0].mxu0
        %v5006 = vadd.f32 0.0, %v5005
        %v5007 = vpop.f32.mrb[0].mxu0
        %v5008 = vpop.f32.mrb[0].mxu0
        %v5009 = vadd.f32 0.0, %v5008
        %v5010 = vpop.f32.mrb[0].mxu0
        %5011 = vmatprep.mubr.bf16.mxu0 0
        %5012 = vmatmul.mubr.bf16.gmra.mrb[0].mxu0 %v4923
        %v5013 = vpop.f32.mrb[0].mxu0
        %v5014 = vadd.f32 0.0, %v5013
        %v5015 = vpop.f32.mrb[0].mxu0
        %v5016 = vpop.f32.mrb[0].mxu0
        %v5017 = vadd.f32 0.0, %v5016
        %v5018 = vpop.f32.mrb[0].mxu0
        %5019 = vmatprep.mubr.bf16.mxu0 0
        %5020 = vmatmul.mubr.bf16.gmra.mrb[0].mxu0 %v4926
        %v5021 = vpop.f32.mrb[0].mxu0
        %v5022 = vadd.f32 0.0, %v5021
        %v5023 = vpop.f32.mrb[0].mxu0
        %v5024 = vpop.f32.mrb[0].mxu0
        %v5025 = vadd.f32 0.0, %v5024
        %v5026 = vpop.f32.mrb[0].mxu0
        %5027 = vmatprep.mubr.bf16.mxu0 0
        %5028 = vmatmul.mubr.bf16.gmra.mrb[0].mxu0 %v4929
        %v5029 = vpop.f32.mrb[0].mxu0
        %v5030 = vadd.f32 0.0, %v5029
        %v5031 = vpop.f32.mrb[0].mxu0
        %v5032 = vpop.f32.mrb[0].mxu0
        %v5033 = vadd.f32 0.0, %v5032
        %v5034 = vpop.f32.mrb[0].mxu0
        %5035 = vmatprep.mubr.bf16.mxu0 0
        %5036 = vmatmul.mubr.bf16.gmra.mrb[0].mxu0 %v4932
        %v5037 = vpop.f32.mrb[0].mxu0
        %v5038 = vadd.f32 0.0, %v5037
        %v5039 = vpop.f32.mrb[0].mxu0
        %v5040 = vpop.f32.mrb[0].mxu0
        %v5041 = vadd.f32 0.0, %v5040
        %v5042 = vpop.f32.mrb[0].mxu0
        %5043 = vmatprep.mubr.bf16.mxu0 0
        %5044 = vmatmul.mubr.bf16.gmra.mrb[0].mxu0 %v4935
        %v5045 = vpop.f32.mrb[0].mxu0
        %v5046 = vadd.f32 0.0, %v5045
        %v5047 = vpop.f32.mrb[0].mxu0
        %v5048 = vpop.f32.mrb[0].mxu0
        %v5049 = vadd.f32 0.0, %v5048
        %v5050 = vpop.f32.mrb[0].mxu0
        %5051 = vmatprep.mubr.bf16.mxu0 0
        %5052 = vmatmul.mubr.bf16.gmra.mrb[0].mxu0 %v4938
        %v5053 = vpop.f32.mrb[0].mxu0
        %v5054 = vadd.f32 0.0, %v5053
        %v5055 = vpop.f32.mrb[0].mxu0
        %v5056 = vpop.f32.mrb[0].mxu0
        %v5057 = vadd.f32 0.0, %v5056
        %v5058 = vpop.f32.mrb[0].mxu0
        %5059 = vmatprep.mubr.bf16.mxu0 0
        %5060 = vmatmul.mubr.bf16.gmra.mrb[0].mxu0 %v4941
        %v5061 = vpop.f32.mrb[0].mxu0
        %v5062 = vadd.f32 0.0, %v5061
        %v5063 = vpop.f32.mrb[0].mxu0
        %v5064 = vpop.f32.mrb[0].mxu0
        %v5065 = vadd.f32 0.0, %v5064
        %v5066 = vpop.f32.mrb[0].mxu0
        %5067 = vmatprep.mubr.bf16.mxu0 0
        %5068 = vmatmul.mubr.bf16.gmra.mrb[0].mxu0 %v4944
        %v5069 = vpop.f32.mrb[0].mxu0
        %v5070 = vadd.f32 0.0, %v5069
        %v5071 = vpop.f32.mrb[0].mxu0
        %v5072 = vpop.f32.mrb[0].mxu0
        %v5073 = vadd.f32 0.0, %v5072
        %v5074 = vpop.f32.mrb[0].mxu0
        %5075 = vmatprep.mubr.bf16.mxu0 0
        %5076 = vmatmul.mubr.bf16.gmra.mrb[0].mxu0 %v4947
        %v5077 = vpop.f32.mrb[0].mxu0
        %v5078 = vadd.f32 0.0, %v5077
        %v5079 = vpop.f32.mrb[0].mxu0
        %v5080 = vpop.f32.mrb[0].mxu0
        %v5081 = vadd.f32 0.0, %v5080
        %v5082 = vpop.f32.mrb[0].mxu0
        %5083 = vmatprep.mubr.bf16.mxu0 0
        %5084 = vmatmul.mubr.bf16.gmra.mrb[0].mxu0 %v4950
        %v5085 = vpop.f32.mrb[0].mxu0
        %v5086 = vadd.f32 0.0, %v5085
        %v5087 = vpop.f32.mrb[0].mxu0
        %v5088 = vpop.f32.mrb[0].mxu0
        %v5089 = vadd.f32 0.0, %v5088
        %v5090 = vpop.f32.mrb[0].mxu0
        %5091 = vmatprep.mubr.bf16.mxu0 0
        %5092 = vmatmul.mubr.bf16.gmra.mrb[0].mxu0 %v4953
        %v5093 = vpop.f32.mrb[0].mxu0
        %v5094 = vadd.f32 0.0, %v5093
        %v5095 = vpop.f32.mrb[0].mxu0
        %v5096 = vpop.f32.mrb[0].mxu0
        %v5097 = vadd.f32 0.0, %v5096
        %v5098 = vpop.f32.mrb[0].mxu0
        %5099 = vdwg.mxu0
        %v5100 = vadd.f32 %v4075, %v4990
        %v5101 = vadd.f32 %v4076, %v4993
        %v5102 = vadd.f32 %v4077, %v4998
        %v5103 = vadd.f32 %v4078, %v5001
        %v5104 = vadd.f32 %v4079, %v5006
        %v5105 = vadd.f32 %v4080, %v5009
        %v5106 = vadd.f32 %v4081, %v5014
        %v5107 = vadd.f32 %v4082, %v5017
        %v5108 = vadd.f32 %v4083, %v5022
        %v5109 = vadd.f32 %v4084, %v5025
        %v5110 = vadd.f32 %v4085, %v5030
        %v5111 = vadd.f32 %v4086, %v5033
        %v5112 = vadd.f32 %v4087, %v5038
        %v5113 = vadd.f32 %v4088, %v5041
        %v5114 = vadd.f32 %v4089, %v5046
        %v5115 = vadd.f32 %v4090, %v5049
        %v5116 = vadd.f32 %v4091, %v5054
        %v5117 = vadd.f32 %v4092, %v5057
        %v5118 = vadd.f32 %v4093, %v5062
        %v5119 = vadd.f32 %v4094, %v5065
        %v5120 = vadd.f32 %v4095, %v5070
        %v5121 = vadd.f32 %v4096, %v5073
        %v5122 = vadd.f32 %v4097, %v5078
        %v5123 = vadd.f32 %v4098, %v5081
        %v5124 = vadd.f32 %v4099, %v5086
        %v5125 = vadd.f32 %v4100, %v5089
        %v5126 = vadd.f32 %v4101, %v5094
        %v5127 = vadd.f32 %v4102, %v5097
        %v5128 = vld [vmem:[%s7] sm:$0x1]
        %v5130 = vlaneseq
        %v5131 = vshrl.u32 %v5130, 7
        %v5132 = vsub.s32 0, %v5131
        %v5133 = vrot.slane %v5128, %v5132
        %v5135 = vadd.f32 %v5100, %v5133
        %v5136 = vadd.f32 %v5101, %v5133
        %v5137 = vadd.f32 %v5102, %v5133
        %v5138 = vadd.f32 %v5103, %v5133
        %v5139 = vadd.f32 %v5104, %v5133
        %v5140 = vadd.f32 %v5105, %v5133
        %v5141 = vadd.f32 %v5106, %v5133
        %v5142 = vadd.f32 %v5107, %v5133
        %v5143 = vadd.f32 %v5108, %v5133
        %v5144 = vadd.f32 %v5109, %v5133
        %v5145 = vadd.f32 %v5110, %v5133
        %v5146 = vadd.f32 %v5111, %v5133
        %v5147 = vadd.f32 %v5112, %v5133
        %v5148 = vadd.f32 %v5113, %v5133
        %v5149 = vadd.f32 %v5114, %v5133
        %v5150 = vadd.f32 %v5115, %v5133
        %v5151 = vadd.f32 %v5116, %v5133
        %v5152 = vadd.f32 %v5117, %v5133
        %v5153 = vadd.f32 %v5118, %v5133
        %v5154 = vadd.f32 %v5119, %v5133
        %v5155 = vadd.f32 %v5120, %v5133
        %v5156 = vadd.f32 %v5121, %v5133
        %v5157 = vadd.f32 %v5122, %v5133
        %v5158 = vadd.f32 %v5123, %v5133
        %v5159 = vadd.f32 %v5124, %v5133
        %v5160 = vadd.f32 %v5125, %v5133
        %v5161 = vadd.f32 %v5126, %v5133
        %v5162 = vadd.f32 %v5127, %v5133
        %v5163 = vld [vmem:[#allocation10] sm:$0xf]
        %v5164 = vld [vmem:[#allocation10 + $0x4] sm:$0xf]
        %v5165 = vld [vmem:[#allocation10 + $0x8] sm:$0xf]
        %v5166 = vld [vmem:[#allocation10 + $0xc] sm:$0xf]
        %v5167 = vld [vmem:[#allocation10 + $0x10] sm:$0xf]
        %v5168 = vld [vmem:[#allocation10 + $0x14] sm:$0xf]
        %v5169 = vld [vmem:[#allocation10 + $0x18] sm:$0xf]
        %v5170 = vld [vmem:[#allocation10 + $0x1c] sm:$0xf]
        %v5171 = vpack.c.bf16 %v5136, %v5135
        %v5172 = vpack.c.bf16 %v5138, %v5137
        %v5173 = vpack.c.bf16 %v5140, %v5139
        %v5174 = vpack.c.bf16 %v5142, %v5141
        %v5175 = vpack.c.bf16 %v5144, %v5143
        %v5176 = vpack.c.bf16 %v5146, %v5145
        %v5177 = vpack.c.bf16 %v5148, %v5147
        %v5178 = vpack.c.bf16 %v5150, %v5149
        %v5179 = vpack.c.bf16 %v5152, %v5151
        %v5180 = vpack.c.bf16 %v5154, %v5153
        %v5181 = vpack.c.bf16 %v5156, %v5155
        %v5182 = vpack.c.bf16 %v5158, %v5157
        %v5183 = vpack.c.bf16 %v5160, %v5159
        %v5184 = vpack.c.bf16 %v5162, %v5161
        %v5185 = vld [vmem:[%s9] sm:$0xf]
        %v5186 = vld [vmem:[%s9 + $0x4] sm:$0xf]
        %v5187 = vld [vmem:[%s9 + $0x8] sm:$0xf]
        %v5188 = vld [vmem:[%s9 + $0xc] sm:$0xf]
        %v5189 = vld [vmem:[%s9 + $0x10] sm:$0xf]
        %v5190 = vld [vmem:[%s9 + $0x14] sm:$0xf]
        %v5191 = vld [vmem:[%s9 + $0x18] sm:$0xf]
        %v5192 = vld [vmem:[%s9 + $0x1c] sm:$0xf]
        %v5201 = vunpack.c.l.b16 %v5185
        %v5202 = vunpack.c.l.b16 %v5186
        %v5203 = vunpack.c.l.b16 %v5187
        %v5204 = vunpack.c.l.b16 %v5188
        %v5205 = vunpack.c.l.b16 %v5189
        %v5206 = vunpack.c.l.b16 %v5190
        %v5207 = vunpack.c.l.b16 %v5191
        %v5208 = vunpack.c.l.b16 %v5192
        %v5209 = vpack.c.b16 %v5202, %v5201
        %v5210 = vpack.c.b16 %v5204, %v5203
        %v5211 = vpack.c.b16 %v5206, %v5205
        %v5212 = vpack.c.b16 %v5208, %v5207
        %v5218 = vsel %vm717, %v5171, 0
        %v5221 = vsel %vm717, %v5172, 0
        %v5224 = vsel %vm717, %v5173, 0
        %v5227 = vsel %vm717, %v5174, 0
        %v5230 = vsel %vm717, %v5175, 0
        %v5233 = vsel %vm717, %v5176, 0
        %v5236 = vsel %vm717, %v5177, 0
        %v5239 = vsel %vm717, %v5178, 0
        %v5242 = vsel %vm717, %v5179, 0
        %v5245 = vsel %vm717, %v5180, 0
        %v5248 = vsel %vm717, %v5181, 0
        %v5251 = vsel %vm717, %v5182, 0
        %v5254 = vsel %vm717, %v5183, 0
        %v5257 = vsel %vm717, %v5184, 0
        %5259 = vmatprep.subr.bf16.mxu0 0
        %5260 = vmatpush1.bf16.msra.mxu0 %v5209
        %5261 = vmatprep.subr.bf16.mxu0 0
        %5262 = vmatpush1.bf16.msra.mxu0 %v5210
        %5263 = vmatprep.subr.bf16.mxu0 0
        %5264 = vmatpush1.bf16.msra.mxu0 %v5211
        %5265 = vmatprep.subr.bf16.mxu0 0
        %5266 = vmatpush1.bf16.msra.mxu0 %v5212
        %5267 = vmatprep.subr.bf16.mxu0 0
        %5268 = vmatpush1.bf16.msra.mxu0 0
        %5269 = vmatprep.subr.bf16.mxu0 0
        %5270 = vmatpush1.bf16.msra.mxu0 0
        %5271 = vmatprep.subr.bf16.mxu0 0
        %5272 = vmatpush1.bf16.msra.mxu0 0
        %5273 = vmatprep.subr.bf16.mxu0 0
        %5274 = vmatpush1.bf16.msra.mxu0 0
        %5275 = vmatprep.subr.bf16.mxu0 0
        %5276 = vmatpush1.bf16.msra.mxu0 0
        %5277 = vmatprep.subr.bf16.mxu0 0
        %5278 = vmatpush1.bf16.msra.mxu0 0
        %5279 = vmatprep.subr.bf16.mxu0 0
        %5280 = vmatpush1.bf16.msra.mxu0 0
        %5281 = vmatprep.subr.bf16.mxu0 0
        %5282 = vmatpush1.bf16.msra.mxu0 0
        %5283 = vmatprep.subr.bf16.mxu0 0
        %5284 = vmatpush1.bf16.msra.mxu0 0
        %5285 = vmatprep.subr.bf16.mxu0 0
        %5286 = vmatpush1.bf16.msra.mxu0 0
        %5287 = vmatprep.subr.bf16.mxu0 0
        %5288 = vmatpush1.bf16.msra.mxu0 0
        %5289 = vmatprep.subr.bf16.mxu0 0
        %5290 = vmatpush1.bf16.msra.mxu0 0
        %5291 = vmatprep.mubr.bf16.mxu0 0
        %5292 = vmatmul.mubr.bf16.gmra.mrb[0].mxu0 %v5218
        %v5293 = vpop.f32.mrb[0].mxu0
        %v5294 = vadd.f32 0.0, %v5293
        %v5295 = vpop.f32.mrb[0].mxu0
        %v5296 = vpop.f32.mrb[0].mxu0
        %v5297 = vadd.f32 0.0, %v5296
        %v5298 = vpop.f32.mrb[0].mxu0
        %5299 = vmatprep.mubr.bf16.mxu0 0
        %5300 = vmatmul.mubr.bf16.gmra.mrb[0].mxu0 %v5221
        %v5301 = vpop.f32.mrb[0].mxu0
        %v5302 = vadd.f32 0.0, %v5301
        %v5303 = vpop.f32.mrb[0].mxu0
        %v5304 = vpop.f32.mrb[0].mxu0
        %v5305 = vadd.f32 0.0, %v5304
        %v5306 = vpop.f32.mrb[0].mxu0
        %5307 = vmatprep.mubr.bf16.mxu0 0
        %5308 = vmatmul.mubr.bf16.gmra.mrb[0].mxu0 %v5224
        %v5309 = vpop.f32.mrb[0].mxu0
        %v5310 = vadd.f32 0.0, %v5309
        %v5311 = vpop.f32.mrb[0].mxu0
        %v5312 = vpop.f32.mrb[0].mxu0
        %v5313 = vadd.f32 0.0, %v5312
        %v5314 = vpop.f32.mrb[0].mxu0
        %5315 = vmatprep.mubr.bf16.mxu0 0
        %5316 = vmatmul.mubr.bf16.gmra.mrb[0].mxu0 %v5227
        %v5317 = vpop.f32.mrb[0].mxu0
        %v5318 = vadd.f32 0.0, %v5317
        %v5319 = vpop.f32.mrb[0].mxu0
        %v5320 = vpop.f32.mrb[0].mxu0
        %v5321 = vadd.f32 0.0, %v5320
        %v5322 = vpop.f32.mrb[0].mxu0
        %5323 = vmatprep.mubr.bf16.mxu0 0
        %5324 = vmatmul.mubr.bf16.gmra.mrb[0].mxu0 %v5230
        %v5325 = vpop.f32.mrb[0].mxu0
        %v5326 = vadd.f32 0.0, %v5325
        %v5327 = vpop.f32.mrb[0].mxu0
        %v5328 = vpop.f32.mrb[0].mxu0
        %v5329 = vadd.f32 0.0, %v5328
        %v5330 = vpop.f32.mrb[0].mxu0
        %5331 = vmatprep.mubr.bf16.mxu0 0
        %5332 = vmatmul.mubr.bf16.gmra.mrb[0].mxu0 %v5233
        %v5333 = vpop.f32.mrb[0].mxu0
        %v5334 = vadd.f32 0.0, %v5333
        %v5335 = vpop.f32.mrb[0].mxu0
        %v5336 = vpop.f32.mrb[0].mxu0
        %v5337 = vadd.f32 0.0, %v5336
        %v5338 = vpop.f32.mrb[0].mxu0
        %5339 = vmatprep.mubr.bf16.mxu0 0
        %5340 = vmatmul.mubr.bf16.gmra.mrb[0].mxu0 %v5236
        %v5341 = vpop.f32.mrb[0].mxu0
        %v5342 = vadd.f32 0.0, %v5341
        %v5343 = vpop.f32.mrb[0].mxu0
        %v5344 = vpop.f32.mrb[0].mxu0
        %v5345 = vadd.f32 0.0, %v5344
        %v5346 = vpop.f32.mrb[0].mxu0
        %5347 = vmatprep.mubr.bf16.mxu0 0
        %5348 = vmatmul.mubr.bf16.gmra.mrb[0].mxu0 %v5239
        %v5349 = vpop.f32.mrb[0].mxu0
        %v5350 = vadd.f32 0.0, %v5349
        %v5351 = vpop.f32.mrb[0].mxu0
        %v5352 = vpop.f32.mrb[0].mxu0
        %v5353 = vadd.f32 0.0, %v5352
        %v5354 = vpop.f32.mrb[0].mxu0
        %5355 = vmatprep.mubr.bf16.mxu0 0
        %5356 = vmatmul.mubr.bf16.gmra.mrb[0].mxu0 %v5242
        %v5357 = vpop.f32.mrb[0].mxu0
        %v5358 = vadd.f32 0.0, %v5357
        %v5359 = vpop.f32.mrb[0].mxu0
        %v5360 = vpop.f32.mrb[0].mxu0
        %v5361 = vadd.f32 0.0, %v5360
        %v5362 = vpop.f32.mrb[0].mxu0
        %5363 = vmatprep.mubr.bf16.mxu0 0
        %5364 = vmatmul.mubr.bf16.gmra.mrb[0].mxu0 %v5245
        %v5365 = vpop.f32.mrb[0].mxu0
        %v5366 = vadd.f32 0.0, %v5365
        %v5367 = vpop.f32.mrb[0].mxu0
        %v5368 = vpop.f32.mrb[0].mxu0
        %v5369 = vadd.f32 0.0, %v5368
        %v5370 = vpop.f32.mrb[0].mxu0
        %5371 = vmatprep.mubr.bf16.mxu0 0
        %5372 = vmatmul.mubr.bf16.gmra.mrb[0].mxu0 %v5248
        %v5373 = vpop.f32.mrb[0].mxu0
        %v5374 = vadd.f32 0.0, %v5373
        %v5375 = vpop.f32.mrb[0].mxu0
        %v5376 = vpop.f32.mrb[0].mxu0
        %v5377 = vadd.f32 0.0, %v5376
        %v5378 = vpop.f32.mrb[0].mxu0
        %5379 = vmatprep.mubr.bf16.mxu0 0
        %5380 = vmatmul.mubr.bf16.gmra.mrb[0].mxu0 %v5251
        %v5381 = vpop.f32.mrb[0].mxu0
        %v5382 = vadd.f32 0.0, %v5381
        %v5383 = vpop.f32.mrb[0].mxu0
        %v5384 = vpop.f32.mrb[0].mxu0
        %v5385 = vadd.f32 0.0, %v5384
        %v5386 = vpop.f32.mrb[0].mxu0
        %5387 = vmatprep.mubr.bf16.mxu0 0
        %5388 = vmatmul.mubr.bf16.gmra.mrb[0].mxu0 %v5254
        %v5389 = vpop.f32.mrb[0].mxu0
        %v5390 = vadd.f32 0.0, %v5389
        %v5391 = vpop.f32.mrb[0].mxu0
        %v5392 = vpop.f32.mrb[0].mxu0
        %v5393 = vadd.f32 0.0, %v5392
        %v5394 = vpop.f32.mrb[0].mxu0
        %5395 = vmatprep.mubr.bf16.mxu0 0
        %5396 = vmatmul.mubr.bf16.gmra.mrb[0].mxu0 %v5257
        %v5397 = vpop.f32.mrb[0].mxu0
        %v5398 = vadd.f32 0.0, %v5397
        %v5399 = vpop.f32.mrb[0].mxu0
        %v5400 = vpop.f32.mrb[0].mxu0
        %v5401 = vadd.f32 0.0, %v5400
        %v5402 = vpop.f32.mrb[0].mxu0
        %5403 = vdwg.mxu0
        %v5412 = vunpack.c.l.b16 %v5163
        %v5413 = vunpack.c.l.b16 %v5164
        %v5414 = vunpack.c.l.b16 %v5165
        %v5415 = vunpack.c.l.b16 %v5166
        %v5416 = vunpack.c.l.b16 %v5167
        %v5417 = vunpack.c.l.b16 %v5168
        %v5418 = vunpack.c.l.b16 %v5169
        %v5419 = vunpack.c.l.b16 %v5170
        %v5420 = vpack.c.b16 %v5413, %v5412
        %v5421 = vpack.c.b16 %v5415, %v5414
        %v5422 = vpack.c.b16 %v5417, %v5416
        %v5423 = vpack.c.b16 %v5419, %v5418
        %5428 = vmatprep.subr.bf16.mxu0 0
        %5429 = vmatpush1.bf16.msra.mxu0 %v5420
        %5430 = vmatprep.subr.bf16.mxu0 0
        %5431 = vmatpush1.bf16.msra.mxu0 %v5421
        %5432 = vmatprep.subr.bf16.mxu0 0
        %5433 = vmatpush1.bf16.msra.mxu0 %v5422
        %5434 = vmatprep.subr.bf16.mxu0 0
        %5435 = vmatpush1.bf16.msra.mxu0 %v5423
        %5436 = vmatprep.subr.bf16.mxu0 0
        %5437 = vmatpush1.bf16.msra.mxu0 0
        %5438 = vmatprep.subr.bf16.mxu0 0
        %5439 = vmatpush1.bf16.msra.mxu0 0
        %5440 = vmatprep.subr.bf16.mxu0 0
        %5441 = vmatpush1.bf16.msra.mxu0 0
        %5442 = vmatprep.subr.bf16.mxu0 0
        %5443 = vmatpush1.bf16.msra.mxu0 0
        %5444 = vmatprep.subr.bf16.mxu0 0
        %5445 = vmatpush1.bf16.msra.mxu0 0
        %5446 = vmatprep.subr.bf16.mxu0 0
        %5447 = vmatpush1.bf16.msra.mxu0 0
        %5448 = vmatprep.subr.bf16.mxu0 0
        %5449 = vmatpush1.bf16.msra.mxu0 0
        %5450 = vmatprep.subr.bf16.mxu0 0
        %5451 = vmatpush1.bf16.msra.mxu0 0
        %5452 = vmatprep.subr.bf16.mxu0 0
        %5453 = vmatpush1.bf16.msra.mxu0 0
        %5454 = vmatprep.subr.bf16.mxu0 0
        %5455 = vmatpush1.bf16.msra.mxu0 0
        %5456 = vmatprep.subr.bf16.mxu0 0
        %5457 = vmatpush1.bf16.msra.mxu0 0
        %5458 = vmatprep.subr.bf16.mxu0 0
        %5459 = vmatpush1.bf16.msra.mxu0 0
        %5460 = vmatprep.mubr.bf16.mxu0 0
        %5461 = vmatmul.mubr.bf16.gmra.mrb[0].mxu0 %v719
        %v5462 = vpop.f32.mrb[0].mxu0
        %v5463 = vadd.f32 %v5294, %v5462
        %v5464 = vpop.f32.mrb[0].mxu0
        %v5465 = vpop.f32.mrb[0].mxu0
        %v5466 = vadd.f32 %v5297, %v5465
        %v5467 = vpop.f32.mrb[0].mxu0
        %5468 = vmatprep.mubr.bf16.mxu0 0
        %5469 = vmatmul.mubr.bf16.gmra.mrb[0].mxu0 %v722
        %v5470 = vpop.f32.mrb[0].mxu0
        %v5471 = vadd.f32 %v5302, %v5470
        %v5472 = vpop.f32.mrb[0].mxu0
        %v5473 = vpop.f32.mrb[0].mxu0
        %v5474 = vadd.f32 %v5305, %v5473
        %v5475 = vpop.f32.mrb[0].mxu0
        %5476 = vmatprep.mubr.bf16.mxu0 0
        %5477 = vmatmul.mubr.bf16.gmra.mrb[0].mxu0 %v725
        %v5478 = vpop.f32.mrb[0].mxu0
        %v5479 = vadd.f32 %v5310, %v5478
        %v5480 = vpop.f32.mrb[0].mxu0
        %v5481 = vpop.f32.mrb[0].mxu0
        %v5482 = vadd.f32 %v5313, %v5481
        %v5483 = vpop.f32.mrb[0].mxu0
        %5484 = vmatprep.mubr.bf16.mxu0 0
        %5485 = vmatmul.mubr.bf16.gmra.mrb[0].mxu0 %v728
        %v5486 = vpop.f32.mrb[0].mxu0
        %v5487 = vadd.f32 %v5318, %v5486
        %v5488 = vpop.f32.mrb[0].mxu0
        %v5489 = vpop.f32.mrb[0].mxu0
        %v5490 = vadd.f32 %v5321, %v5489
        %v5491 = vpop.f32.mrb[0].mxu0
        %5492 = vmatprep.mubr.bf16.mxu0 0
        %5493 = vmatmul.mubr.bf16.gmra.mrb[0].mxu0 %v731
        %v5494 = vpop.f32.mrb[0].mxu0
        %v5495 = vadd.f32 %v5326, %v5494
        %v5496 = vpop.f32.mrb[0].mxu0
        %v5497 = vpop.f32.mrb[0].mxu0
        %v5498 = vadd.f32 %v5329, %v5497
        %v5499 = vpop.f32.mrb[0].mxu0
        %5500 = vmatprep.mubr.bf16.mxu0 0
        %5501 = vmatmul.mubr.bf16.gmra.mrb[0].mxu0 %v734
        %v5502 = vpop.f32.mrb[0].mxu0
        %v5503 = vadd.f32 %v5334, %v5502
        %v5504 = vpop.f32.mrb[0].mxu0
        %v5505 = vpop.f32.mrb[0].mxu0
        %v5506 = vadd.f32 %v5337, %v5505
        %v5507 = vpop.f32.mrb[0].mxu0
        %5508 = vmatprep.mubr.bf16.mxu0 0
        %5509 = vmatmul.mubr.bf16.gmra.mrb[0].mxu0 %v737
        %v5510 = vpop.f32.mrb[0].mxu0
        %v5511 = vadd.f32 %v5342, %v5510
        %v5512 = vpop.f32.mrb[0].mxu0
        %v5513 = vpop.f32.mrb[0].mxu0
        %v5514 = vadd.f32 %v5345, %v5513
        %v5515 = vpop.f32.mrb[0].mxu0
        %5516 = vmatprep.mubr.bf16.mxu0 0
        %5517 = vmatmul.mubr.bf16.gmra.mrb[0].mxu0 %v740
        %v5518 = vpop.f32.mrb[0].mxu0
        %v5519 = vadd.f32 %v5350, %v5518
        %v5520 = vpop.f32.mrb[0].mxu0
        %v5521 = vpop.f32.mrb[0].mxu0
        %v5522 = vadd.f32 %v5353, %v5521
        %v5523 = vpop.f32.mrb[0].mxu0
        %5524 = vmatprep.mubr.bf16.mxu0 0
        %5525 = vmatmul.mubr.bf16.gmra.mrb[0].mxu0 %v743
        %v5526 = vpop.f32.mrb[0].mxu0
        %v5527 = vadd.f32 %v5358, %v5526
        %v5528 = vpop.f32.mrb[0].mxu0
        %v5529 = vpop.f32.mrb[0].mxu0
        %v5530 = vadd.f32 %v5361, %v5529
        %v5531 = vpop.f32.mrb[0].mxu0
        %5532 = vmatprep.mubr.bf16.mxu0 0
        %5533 = vmatmul.mubr.bf16.gmra.mrb[0].mxu0 %v746
        %v5534 = vpop.f32.mrb[0].mxu0
        %v5535 = vadd.f32 %v5366, %v5534
        %v5536 = vpop.f32.mrb[0].mxu0
        %v5537 = vpop.f32.mrb[0].mxu0
        %v5538 = vadd.f32 %v5369, %v5537
        %v5539 = vpop.f32.mrb[0].mxu0
        %5540 = vmatprep.mubr.bf16.mxu0 0
        %5541 = vmatmul.mubr.bf16.gmra.mrb[0].mxu0 %v749
        %v5542 = vpop.f32.mrb[0].mxu0
        %v5543 = vadd.f32 %v5374, %v5542
        %v5544 = vpop.f32.mrb[0].mxu0
        %v5545 = vpop.f32.mrb[0].mxu0
        %v5546 = vadd.f32 %v5377, %v5545
        %v5547 = vpop.f32.mrb[0].mxu0
        %5548 = vmatprep.mubr.bf16.mxu0 0
        %5549 = vmatmul.mubr.bf16.gmra.mrb[0].mxu0 %v752
        %v5550 = vpop.f32.mrb[0].mxu0
        %v5551 = vadd.f32 %v5382, %v5550
        %v5552 = vpop.f32.mrb[0].mxu0
        %v5553 = vpop.f32.mrb[0].mxu0
        %v5554 = vadd.f32 %v5385, %v5553
        %v5555 = vpop.f32.mrb[0].mxu0
        %5556 = vmatprep.mubr.bf16.mxu0 0
        %5557 = vmatmul.mubr.bf16.gmra.mrb[0].mxu0 %v755
        %v5558 = vpop.f32.mrb[0].mxu0
        %v5559 = vadd.f32 %v5390, %v5558
        %v5560 = vpop.f32.mrb[0].mxu0
        %v5561 = vpop.f32.mrb[0].mxu0
        %v5562 = vadd.f32 %v5393, %v5561
        %v5563 = vpop.f32.mrb[0].mxu0
        %5564 = vmatprep.mubr.bf16.mxu0 0
        %5565 = vmatmul.mubr.bf16.gmra.mrb[0].mxu0 %v758
        %v5566 = vpop.f32.mrb[0].mxu0
        %v5567 = vadd.f32 %v5398, %v5566
        %v5568 = vpop.f32.mrb[0].mxu0
        %v5569 = vpop.f32.mrb[0].mxu0
        %v5570 = vadd.f32 %v5401, %v5569
        %v5571 = vpop.f32.mrb[0].mxu0
        %5572 = vdwg.mxu0
        %v5573 = vld [vmem:[%s10] sm:$0x1]
        %v5575 = vlaneseq
        %v5576 = vshrl.u32 %v5575, 7
        %v5577 = vsub.s32 0, %v5576
        %v5578 = vrot.slane %v5573, %v5577
        %v5580 = vadd.f32 %v5463, %v5578
        %v5581 = vadd.f32 %v5466, %v5578
        %v5582 = vadd.f32 %v5471, %v5578
        %v5583 = vadd.f32 %v5474, %v5578
        %v5584 = vadd.f32 %v5479, %v5578
        %v5585 = vadd.f32 %v5482, %v5578
        %v5586 = vadd.f32 %v5487, %v5578
        %v5587 = vadd.f32 %v5490, %v5578
        %v5588 = vadd.f32 %v5495, %v5578
        %v5589 = vadd.f32 %v5498, %v5578
        %v5590 = vadd.f32 %v5503, %v5578
        %v5591 = vadd.f32 %v5506, %v5578
        %v5592 = vadd.f32 %v5511, %v5578
        %v5593 = vadd.f32 %v5514, %v5578
        %v5594 = vadd.f32 %v5519, %v5578
        %v5595 = vadd.f32 %v5522, %v5578
        %v5596 = vadd.f32 %v5527, %v5578
        %v5597 = vadd.f32 %v5530, %v5578
        %v5598 = vadd.f32 %v5535, %v5578
        %v5599 = vadd.f32 %v5538, %v5578
        %v5600 = vadd.f32 %v5543, %v5578
        %v5601 = vadd.f32 %v5546, %v5578
        %v5602 = vadd.f32 %v5551, %v5578
        %v5603 = vadd.f32 %v5554, %v5578
        %v5604 = vadd.f32 %v5559, %v5578
        %v5605 = vadd.f32 %v5562, %v5578
        %v5606 = vadd.f32 %v5567, %v5578
        %v5607 = vadd.f32 %v5570, %v5578
        %v5608 = vpack.c.bf16 %v5581, %v5580
        %v5609 = vpack.c.bf16 %v5583, %v5582
        %v5610 = vpack.c.bf16 %v5585, %v5584
        %v5611 = vpack.c.bf16 %v5587, %v5586
        %v5612 = vpack.c.bf16 %v5589, %v5588
        %v5613 = vpack.c.bf16 %v5591, %v5590
        %v5614 = vpack.c.bf16 %v5593, %v5592
        %v5615 = vpack.c.bf16 %v5595, %v5594
        %v5616 = vpack.c.bf16 %v5597, %v5596
        %v5617 = vpack.c.bf16 %v5599, %v5598
        %v5618 = vpack.c.bf16 %v5601, %v5600
        %v5619 = vpack.c.bf16 %v5603, %v5602
        %v5620 = vpack.c.bf16 %v5605, %v5604
        %v5621 = vpack.c.bf16 %v5607, %v5606
        %v5622 = vld [vmem:[%s11] sm:$0xf]
        %v5623 = vld [vmem:[%s11 + $0x4] sm:$0xf]
        %v5624 = vld [vmem:[%s11 + $0x8] sm:$0xf]
        %v5625 = vld [vmem:[%s11 + $0xc] sm:$0xf]
        %v5626 = vld [vmem:[%s11 + $0x10] sm:$0xf]
        %v5627 = vld [vmem:[%s11 + $0x14] sm:$0xf]
        %v5628 = vld [vmem:[%s11 + $0x18] sm:$0xf]
        %v5629 = vld [vmem:[%s11 + $0x1c] sm:$0xf]
        %v5630 = vld [vmem:[%s11 + $0x20] sm:$0xf]
        %v5631 = vld [vmem:[%s11 + $0x24] sm:$0xf]
        %v5632 = vld [vmem:[%s11 + $0x28] sm:$0xf]
        %v5633 = vld [vmem:[%s11 + $0x2c] sm:$0xf]
        %v5634 = vld [vmem:[%s11 + $0x30] sm:$0xf]
        %v5635 = vld [vmem:[%s11 + $0x34] sm:$0xf]
        %v5636 = vld [vmem:[%s11 + $0x38] sm:$0xf]
        %v5637 = vld [vmem:[%s11 + $0x3c] sm:$0xf]
        %v5638 = vld [vmem:[%s12] sm:$0x1]
        %v5640 = vlaneseq
        %v5641 = vshrl.u32 %v5640, 7
        %v5642 = vsub.s32 0, %v5641
        %v5643 = vrot.slane %v5638, %v5642
        %v5661 = vunpack.c.l.b16 %v5622
        %v5662 = vunpack.c.l.b16 %v5623
        %v5663 = vunpack.c.l.b16 %v5624
        %v5664 = vunpack.c.l.b16 %v5625
        %v5665 = vunpack.c.l.b16 %v5626
        %v5666 = vunpack.c.l.b16 %v5627
        %v5667 = vunpack.c.l.b16 %v5628
        %v5668 = vunpack.c.l.b16 %v5629
        %v5669 = vunpack.c.l.b16 %v5630
        %v5670 = vunpack.c.l.b16 %v5631
        %v5671 = vunpack.c.l.b16 %v5632
        %v5672 = vunpack.c.l.b16 %v5633
        %v5673 = vunpack.c.l.b16 %v5634
        %v5674 = vunpack.c.l.b16 %v5635
        %v5675 = vunpack.c.l.b16 %v5636
        %v5676 = vunpack.c.l.b16 %v5637
        %v5677 = vpack.c.b16 %v5662, %v5661
        %v5678 = vpack.c.b16 %v5664, %v5663
        %v5679 = vpack.c.b16 %v5666, %v5665
        %v5680 = vpack.c.b16 %v5668, %v5667
        %v5681 = vpack.c.b16 %v5670, %v5669
        %v5682 = vpack.c.b16 %v5672, %v5671
        %v5683 = vpack.c.b16 %v5674, %v5673
        %v5684 = vpack.c.b16 %v5676, %v5675
        %5693 = vmatprep.subr.bf16.mxu0 0
        %5694 = vmatpush1.bf16.msra.mxu0 %v5677
        %5695 = vmatprep.subr.bf16.mxu0 0
        %5696 = vmatpush1.bf16.msra.mxu0 %v5678
        %5697 = vmatprep.subr.bf16.mxu0 0
        %5698 = vmatpush1.bf16.msra.mxu0 %v5679
        %5699 = vmatprep.subr.bf16.mxu0 0
        %5700 = vmatpush1.bf16.msra.mxu0 %v5680
        %5701 = vmatprep.subr.bf16.mxu0 0
        %5702 = vmatpush1.bf16.msra.mxu0 %v5681
        %5703 = vmatprep.subr.bf16.mxu0 0
        %5704 = vmatpush1.bf16.msra.mxu0 %v5682
        %5705 = vmatprep.subr.bf16.mxu0 0
        %5706 = vmatpush1.bf16.msra.mxu0 %v5683
        %5707 = vmatprep.subr.bf16.mxu0 0
        %5708 = vmatpush1.bf16.msra.mxu0 %v5684
        %5709 = vmatprep.subr.bf16.mxu0 0
        %5710 = vmatpush1.bf16.msra.mxu0 0
        %5711 = vmatprep.subr.bf16.mxu0 0
        %5712 = vmatpush1.bf16.msra.mxu0 0
        %5713 = vmatprep.subr.bf16.mxu0 0
        %5714 = vmatpush1.bf16.msra.mxu0 0
        %5715 = vmatprep.subr.bf16.mxu0 0
        %5716 = vmatpush1.bf16.msra.mxu0 0
        %5717 = vmatprep.subr.bf16.mxu0 0
        %5718 = vmatpush1.bf16.msra.mxu0 0
        %5719 = vmatprep.subr.bf16.mxu0 0
        %5720 = vmatpush1.bf16.msra.mxu0 0
        %5721 = vmatprep.subr.bf16.mxu0 0
        %5722 = vmatpush1.bf16.msra.mxu0 0
        %5723 = vmatprep.subr.bf16.mxu0 0
        %5724 = vmatpush1.bf16.msra.mxu0 0
        %5725 = vmatprep.mubr.bf16.mxu0 0
        %5726 = vmatmul.mubr.bf16.gmra.mrb[0].mxu0 %v5608
        %v5727 = vpop.f32.mrb[0].mxu0
        %v5728 = vadd.f32 %v5643, %v5727
        %v5729 = vpop.f32.mrb[0].mxu0
        %v5730 = vpop.f32.mrb[0].mxu0
        %v5731 = vadd.f32 %v5643, %v5730
        %v5732 = vpop.f32.mrb[0].mxu0
        %5733 = vmatprep.mubr.bf16.mxu0 0
        %5734 = vmatmul.mubr.bf16.gmra.mrb[0].mxu0 %v5609
        %v5735 = vpop.f32.mrb[0].mxu0
        %v5736 = vadd.f32 %v5643, %v5735
        %v5737 = vpop.f32.mrb[0].mxu0
        %v5738 = vpop.f32.mrb[0].mxu0
        %v5739 = vadd.f32 %v5643, %v5738
        %v5740 = vpop.f32.mrb[0].mxu0
        %5741 = vmatprep.mubr.bf16.mxu0 0
        %5742 = vmatmul.mubr.bf16.gmra.mrb[0].mxu0 %v5610
        %v5743 = vpop.f32.mrb[0].mxu0
        %v5744 = vadd.f32 %v5643, %v5743
        %v5745 = vpop.f32.mrb[0].mxu0
        %v5746 = vpop.f32.mrb[0].mxu0
        %v5747 = vadd.f32 %v5643, %v5746
        %v5748 = vpop.f32.mrb[0].mxu0
        %5749 = vmatprep.mubr.bf16.mxu0 0
        %5750 = vmatmul.mubr.bf16.gmra.mrb[0].mxu0 %v5611
        %v5751 = vpop.f32.mrb[0].mxu0
        %v5752 = vadd.f32 %v5643, %v5751
        %v5753 = vpop.f32.mrb[0].mxu0
        %v5754 = vpop.f32.mrb[0].mxu0
        %v5755 = vadd.f32 %v5643, %v5754
        %v5756 = vpop.f32.mrb[0].mxu0
        %5757 = vmatprep.mubr.bf16.mxu0 0
        %5758 = vmatmul.mubr.bf16.gmra.mrb[0].mxu0 %v5612
        %v5759 = vpop.f32.mrb[0].mxu0
        %v5760 = vadd.f32 %v5643, %v5759
        %v5761 = vpop.f32.mrb[0].mxu0
        %v5762 = vpop.f32.mrb[0].mxu0
        %v5763 = vadd.f32 %v5643, %v5762
        %v5764 = vpop.f32.mrb[0].mxu0
        %5765 = vmatprep.mubr.bf16.mxu0 0
        %5766 = vmatmul.mubr.bf16.gmra.mrb[0].mxu0 %v5613
        %v5767 = vpop.f32.mrb[0].mxu0
        %v5768 = vadd.f32 %v5643, %v5767
        %v5769 = vpop.f32.mrb[0].mxu0
        %v5770 = vpop.f32.mrb[0].mxu0
        %v5771 = vadd.f32 %v5643, %v5770
        %v5772 = vpop.f32.mrb[0].mxu0
        %5773 = vmatprep.mubr.bf16.mxu0 0
        %5774 = vmatmul.mubr.bf16.gmra.mrb[0].mxu0 %v5614
        %v5775 = vpop.f32.mrb[0].mxu0
        %v5776 = vadd.f32 %v5643, %v5775
        %v5777 = vpop.f32.mrb[0].mxu0
        %v5778 = vpop.f32.mrb[0].mxu0
        %v5779 = vadd.f32 %v5643, %v5778
        %v5780 = vpop.f32.mrb[0].mxu0
        %5781 = vmatprep.mubr.bf16.mxu0 0
        %5782 = vmatmul.mubr.bf16.gmra.mrb[0].mxu0 %v5615
        %v5783 = vpop.f32.mrb[0].mxu0
        %v5784 = vadd.f32 %v5643, %v5783
        %v5785 = vpop.f32.mrb[0].mxu0
        %v5786 = vpop.f32.mrb[0].mxu0
        %v5787 = vadd.f32 %v5643, %v5786
        %v5788 = vpop.f32.mrb[0].mxu0
        %5789 = vmatprep.mubr.bf16.mxu0 0
        %5790 = vmatmul.mubr.bf16.gmra.mrb[0].mxu0 %v5616
        %v5791 = vpop.f32.mrb[0].mxu0
        %v5792 = vadd.f32 %v5643, %v5791
        %v5793 = vpop.f32.mrb[0].mxu0
        %v5794 = vpop.f32.mrb[0].mxu0
        %v5795 = vadd.f32 %v5643, %v5794
        %v5796 = vpop.f32.mrb[0].mxu0
        %5797 = vmatprep.mubr.bf16.mxu0 0
        %5798 = vmatmul.mubr.bf16.gmra.mrb[0].mxu0 %v5617
        %v5799 = vpop.f32.mrb[0].mxu0
        %v5800 = vadd.f32 %v5643, %v5799
        %v5801 = vpop.f32.mrb[0].mxu0
        %v5802 = vpop.f32.mrb[0].mxu0
        %v5803 = vadd.f32 %v5643, %v5802
        %v5804 = vpop.f32.mrb[0].mxu0
        %5805 = vmatprep.mubr.bf16.mxu0 0
        %5806 = vmatmul.mubr.bf16.gmra.mrb[0].mxu0 %v5618
        %v5807 = vpop.f32.mrb[0].mxu0
        %v5808 = vadd.f32 %v5643, %v5807
        %v5809 = vpop.f32.mrb[0].mxu0
        %v5810 = vpop.f32.mrb[0].mxu0
        %v5811 = vadd.f32 %v5643, %v5810
        %v5812 = vpop.f32.mrb[0].mxu0
        %5813 = vmatprep.mubr.bf16.mxu0 0
        %5814 = vmatmul.mubr.bf16.gmra.mrb[0].mxu0 %v5619
        %v5815 = vpop.f32.mrb[0].mxu0
        %v5816 = vadd.f32 %v5643, %v5815
        %v5817 = vpop.f32.mrb[0].mxu0
        %v5818 = vpop.f32.mrb[0].mxu0
        %v5819 = vadd.f32 %v5643, %v5818
        %v5820 = vpop.f32.mrb[0].mxu0
        %5821 = vmatprep.mubr.bf16.mxu0 0
        %5822 = vmatmul.mubr.bf16.gmra.mrb[0].mxu0 %v5620
        %v5823 = vpop.f32.mrb[0].mxu0
        %v5824 = vadd.f32 %v5643, %v5823
        %v5825 = vpop.f32.mrb[0].mxu0
        %v5826 = vpop.f32.mrb[0].mxu0
        %v5827 = vadd.f32 %v5643, %v5826
        %v5828 = vpop.f32.mrb[0].mxu0
        %5829 = vmatprep.mubr.bf16.mxu0 0
        %5830 = vmatmul.mubr.bf16.gmra.mrb[0].mxu0 %v5621
        %v5831 = vpop.f32.mrb[0].mxu0
        %v5832 = vadd.f32 %v5643, %v5831
        %v5833 = vpop.f32.mrb[0].mxu0
        %v5834 = vpop.f32.mrb[0].mxu0
        %v5835 = vadd.f32 %v5643, %v5834
        %v5836 = vpop.f32.mrb[0].mxu0
        %5837 = vdwg.mxu0
        %v5838 = vadd.f32 %v608, %v5728
        %v5839 = vadd.f32 %v609, %v5731
        %v5840 = vadd.f32 %v610, %v5736
        %v5841 = vadd.f32 %v611, %v5739
        %v5842 = vadd.f32 %v612, %v5744
        %v5843 = vadd.f32 %v613, %v5747
        %v5844 = vadd.f32 %v614, %v5752
        %v5845 = vadd.f32 %v615, %v5755
        %v5846 = vadd.f32 %v616, %v5760
        %v5847 = vadd.f32 %v617, %v5763
        %v5848 = vadd.f32 %v618, %v5768
        %v5849 = vadd.f32 %v619, %v5771
        %v5850 = vadd.f32 %v620, %v5776
        %v5851 = vadd.f32 %v621, %v5779
        %v5852 = vadd.f32 %v622, %v5784
        %v5853 = vadd.f32 %v623, %v5787
        %v5854 = vadd.f32 %v640, %v5792
        %v5855 = vadd.f32 %v641, %v5795
        %v5856 = vadd.f32 %v642, %v5800
        %v5857 = vadd.f32 %v643, %v5803
        %v5858 = vadd.f32 %v644, %v5808
        %v5859 = vadd.f32 %v645, %v5811
        %v5860 = vadd.f32 %v646, %v5816
        %v5861 = vadd.f32 %v647, %v5819
        %v5862 = vadd.f32 %v648, %v5824
        %v5863 = vadd.f32 %v649, %v5827
        %v5864 = vadd.f32 %v650, %v5832
        %v5865 = vadd.f32 %v651, %v5835
        %5866 = vxpose.xlu0.b32.start [1/16] %v5838, 128
        %5867 = vxpose.xlu0.b32.cont [2/16] %v5839, 128
        %5868 = vxpose.xlu0.b32.cont [3/16] %v5840, 128
        %5869 = vxpose.xlu0.b32.cont [4/16] %v5841, 128
        %5870 = vxpose.xlu0.b32.cont [5/16] %v5842, 128
        %5871 = vxpose.xlu0.b32.cont [6/16] %v5843, 128
        %5872 = vxpose.xlu0.b32.cont [7/16] %v5844, 128
        %5873 = vxpose.xlu0.b32.cont [8/16] %v5845, 128
        %5874 = vxpose.xlu0.b32.cont [9/16] %v5846, 128
        %5875 = vxpose.xlu0.b32.cont [10/16] %v5847, 128
        %5876 = vxpose.xlu0.b32.cont [11/16] %v5848, 128
        %5877 = vxpose.xlu0.b32.cont [12/16] %v5849, 128
        %5878 = vxpose.xlu0.b32.cont [13/16] %v5850, 128
        %5879 = vxpose.xlu0.b32.cont [14/16] %v5851, 128
        %5880 = vxpose.xlu0.b32.cont [15/16] %v5852, 128
        %5881 = vxpose.xlu0.b32.end [16/16] %v5853, 128
        %v5882 = vpop.trf.xlu0
        %v5883 = vpop.trf.xlu0
        %v5884 = vpop.trf.xlu0
        %v5885 = vpop.trf.xlu0
        %v5886 = vpop.trf.xlu0
        %v5887 = vpop.trf.xlu0
        %v5888 = vpop.trf.xlu0
        %v5889 = vpop.trf.xlu0
        %v5890 = vpop.trf.xlu0
        %v5891 = vpop.trf.xlu0
        %v5892 = vpop.trf.xlu0
        %v5893 = vpop.trf.xlu0
        %v5894 = vpop.trf.xlu0
        %v5895 = vpop.trf.xlu0
        %v5896 = vpop.trf.xlu0
        %v5897 = vpop.trf.xlu0
        %5898 = vxpose.xlu0.b32.start [1/16] %v5854, 128
        %5899 = vxpose.xlu0.b32.cont [2/16] %v5855, 128
        %5900 = vxpose.xlu0.b32.cont [3/16] %v5856, 128
        %5901 = vxpose.xlu0.b32.cont [4/16] %v5857, 128
        %5902 = vxpose.xlu0.b32.cont [5/16] %v5858, 128
        %5903 = vxpose.xlu0.b32.cont [6/16] %v5859, 128
        %5904 = vxpose.xlu0.b32.cont [7/16] %v5860, 128
        %5905 = vxpose.xlu0.b32.cont [8/16] %v5861, 128
        %5906 = vxpose.xlu0.b32.cont [9/16] %v5862, 128
        %5907 = vxpose.xlu0.b32.cont [10/16] %v5863, 128
        %5908 = vxpose.xlu0.b32.cont [11/16] %v5864, 128
        %5909 = vxpose.xlu0.b32.cont [12/16] %v5865, 128
        %5910 = vxpose.xlu0.b32.cont [13/16] 0.0, 128
        %5911 = vxpose.xlu0.b32.cont [14/16] 0.0, 128
        %5912 = vxpose.xlu0.b32.cont [15/16] 0.0, 128
        %5913 = vxpose.xlu0.b32.end [16/16] 0.0, 128
        %v5914 = vpop.trf.xlu0
        %v5915 = vpop.trf.xlu0
        %v5916 = vpop.trf.xlu0
        %v5917 = vpop.trf.xlu0
        %v5918 = vpop.trf.xlu0
        %v5919 = vpop.trf.xlu0
        %v5920 = vpop.trf.xlu0
        %v5921 = vpop.trf.xlu0
        %v5922 = vpop.trf.xlu0
        %v5923 = vpop.trf.xlu0
        %v5924 = vpop.trf.xlu0
        %v5925 = vpop.trf.xlu0
        %v5926 = vpop.trf.xlu0
        %v5927 = vpop.trf.xlu0
        %v5928 = vpop.trf.xlu0
        %v5929 = vpop.trf.xlu0
        %5930 = vst [vmem:[%s562] sm:$0xff] %v5882
        %5931 = vst [vmem:[%s562 + $0x8] sm:$0xff] %v5883
        %5932 = vst [vmem:[%s562 + $0x10] sm:$0xff] %v5884
        %5933 = vst [vmem:[%s562 + $0x18] sm:$0xff] %v5885
        %5934 = vst [vmem:[%s562 + $0x20] sm:$0xff] %v5886
        %5935 = vst [vmem:[%s562 + $0x28] sm:$0xff] %v5887
        %5936 = vst [vmem:[%s562 + $0x30] sm:$0xff] %v5888
        %5937 = vst [vmem:[%s562 + $0x38] sm:$0xff] %v5889
        %5938 = vst.msk [vmem:[%s569] sm:$0xff] %vm1218, %v5914
        %5939 = vst.msk [vmem:[%s569 + $0x8] sm:$0xff] %vm1218, %v5915
        %5940 = vst.msk [vmem:[%s569 + $0x10] sm:$0xff] %vm1218, %v5916
        %5941 = vst.msk [vmem:[%s569 + $0x18] sm:$0xff] %vm1218, %v5917
        %5942 = vst.msk [vmem:[%s569 + $0x20] sm:$0xff] %vm1218, %v5918
        %5943 = vst.msk [vmem:[%s569 + $0x28] sm:$0xff] %vm1218, %v5919
        %5944 = vst.msk [vmem:[%s569 + $0x30] sm:$0xff] %vm1218, %v5920
        %5945 = vst.msk [vmem:[%s569 + $0x38] sm:$0xff] %vm1218, %v5921
        %s5946 = sand.u32 %s328, 1
        %s5947 = scalar_lea.sflag [#allocation4], %s5946
        %s5948 = sand.u32 %s328, 1
        %s5949 = smul.addr %s5948, 64
        %s5950 = scalar_lea.vmem [#allocation11], %s5949
        %s5951 = sand.u32 %s354, 1
        %s5952 = scalar_lea.sflag [#allocation13], %s5951
        %s5953 = sand.u32 %s354, 1
        %s5954 = smul.addr %s5953, 64
        %s5955 = scalar_lea.vmem [#allocation12], %s5954
        // Predicated region
        $region93: #{tpu_custom_call.1} parent=71 // pred_check
          %p5956 = pneg %p338
        $region94: #{tpu_custom_call.1} parent=71 // pred_check_branch
          %5958 = sbr.rel (%p5956) target = $region96
        $region95: #{tpu_custom_call.1} parent=71 // pred_region
          %s5960 = ssub.s32 1024, 1024
          %5961 = vsyncadd %s5947, %s5960
          %s5962 = smul.addr %s37, 8
          %s5963 = smul.addr %s5962, 128
          %s5964 = scalar_lea.hbm %s13, %s5963
          %s5965 = sshll.u32 %s5950, 4
          %s5966 = int_to_ptr.vmem [resolvable:$true] %s5965
          %5971 = dma.vmem_to_hbm [thread:$0]  %s5966, 1024, %s5964, %s5947, 128, 128, 8
        $region96: #{tpu_custom_call.1} parent=71 // pred_fallthru
          _
        // Predicated region
        $region97: #{tpu_custom_call.1} parent=71 // pred_check
          %p5972 = pneg %p364
        $region98: #{tpu_custom_call.1} parent=71 // pred_check_branch
          %5974 = sbr.rel (%p5972) target = $region100
        $region99: #{tpu_custom_call.1} parent=71 // pred_region
          %s5976 = ssub.s32 1024, 1024
          %5977 = vsyncadd %s5952, %s5976
          %s5978 = smul.addr %s37, 8
          %s5979 = smul.addr %s5978, 128
          %s5980 = scalar_lea.hbm %s14, %s5979
          %s5981 = sshll.u32 %s5955, 4
          %s5982 = int_to_ptr.vmem [resolvable:$true] %s5981
          %5987 = dma.vmem_to_hbm [thread:$0]  %s5982, 1024, %s5980, %s5952, 128, 128, 8
        $region100: #{tpu_custom_call.1} parent=71 // pred_fallthru
          _
      $region72: #{tpu_custom_call.1} parent=5 // pred_fallthru
        _
      %p5988 = scmp.le.s32.totalorder 2, %s32
      // Predicated region
      $region101: #{tpu_custom_call.1} parent=5 // pred_check
        %p5989 = pneg %p5988
      $region102: #{tpu_custom_call.1} parent=5 // pred_check_branch
        %5991 = sbr.rel (%p5989) target = $region104
      $region103: #{tpu_custom_call.1} parent=5 // pred_region
        %s5992 = ssub.s32 %s32, 2
        // Predicated region
        $region105: #{tpu_custom_call.1} parent=103 // pred_check
          %p5993 = pneg %p344
        $region106: #{tpu_custom_call.1} parent=103 // pred_check_branch
          %5995 = sbr.rel (%p5993) target = $region108
        $region107: #{tpu_custom_call.1} parent=103 // pred_region
          %s5996 = sand.u32 %s329, 1
          %s5997 = scalar_lea.sflag [#allocation4], %s5996
          %s5998 = sand.u32 %s329, 1
          %s5999 = smul.addr %s5998, 64
          %s6000 = scalar_lea.vmem [#allocation11], %s5999
          %6001 = dma.done %s5997, 1024
        $region108: #{tpu_custom_call.1} parent=103 // pred_fallthru
          _
        // Predicated region
        $region109: #{tpu_custom_call.1} parent=103 // pred_check
          %p6002 = pneg %p370
        $region110: #{tpu_custom_call.1} parent=103 // pred_check_branch
          %6004 = sbr.rel (%p6002) target = $region112
        $region111: #{tpu_custom_call.1} parent=103 // pred_region
          %s6005 = sand.u32 %s355, 1
          %s6006 = scalar_lea.sflag [#allocation13], %s6005
          %s6007 = sand.u32 %s355, 1
          %s6008 = smul.addr %s6007, 64
          %s6009 = scalar_lea.vmem [#allocation12], %s6008
          %6010 = dma.done %s6006, 1024
        $region112: #{tpu_custom_call.1} parent=103 // pred_fallthru
          _
      $region104: #{tpu_custom_call.1} parent=5 // pred_fallthru
        _
    $region6: #{tpu_custom_call.1} parent=1 // loop_footer
      %s36 = sadd.s32 1, %s32
    $region7: #{tpu_custom_call.1} parent=1 // loop_footer_branch
      %31 = sbr.rel target = $region3
    $region8: #{tpu_custom_call.1} parent=1 // loop_exit
      _
    %6011 = vsyncpa [#allocation3], 1
    %s6012 = scalar_lea.sflag [#allocation3], 1
    %6013 = vsyncpa %s6012, 1
    %6014 = vsyncpa [#allocation6], 1
    %6015 = vsyncpa [#allocation9], 1
    %6016 = vsyncpa [#allocation4], 1
    %s6017 = scalar_lea.sflag [#allocation4], 1
    %6018 = vsyncpa %s6017, 1
    %6019 = vsyncpa [#allocation13], 1
    %s6020 = scalar_lea.sflag [#allocation13], 1
    %6021 = vsyncpa %s6020, 1

</llo_original>
